<compile_context>
chip_gen: v7x
topology: tpu7x:2x2x1
jax: 0.10.0
libtpu: 0.0.40
codegen_flags: <defaults>
</compile_context>

<pallas_src>
import functools

import numpy as np
import jax
import jax.numpy as jnp
from jax.experimental import pallas as pl
from jax.experimental.pallas import tpu as pltpu


# ----------------------------------------------------------------------------
# small helpers
# ----------------------------------------------------------------------------

def _gelu_tanh(x):
    # TODO(synk): exact erf-based F.gelu replaced by the tanh approximation
    # (EUP-friendly; differs from erf GELU by <1e-3). Same approx used in the
    # plain-JAX reference so the check below stays tight.
    return 0.5 * x * (1.0 + jnp.tanh(0.7978845608028654 * (x + 0.044715 * x * x * x)))


def _num_samples(n, contraction_factor):
    # int(ceil(log(n)) * c), clipped to n  (matches _get_num_samples).
    return min(int(np.ceil(np.log(n)) * contraction_factor), n)


_VMEM = pl.BlockSpec(memory_space=pltpu.MemorySpace.VMEM)
_PARALLEL_1D = pltpu.CompilerParams(dimension_semantics=("parallel",))


# ----------------------------------------------------------------------------
# Pallas kernels
# ----------------------------------------------------------------------------

def _linear_kernel(x_ref, w_ref, b_ref, o_ref, *, activation):
    y = jnp.dot(x_ref[...], w_ref[...], preferred_element_type=jnp.float32)
    y = y + b_ref[...]
    if activation == "gelu":
        y = _gelu_tanh(y)
    o_ref[...] = y.astype(o_ref.dtype)


def pallas_linear(x2d, w, b, activation=None):
    m = x2d.shape[0]
    fout = w.shape[1]
    return pl.pallas_call(
        functools.partial(_linear_kernel, activation=activation),
        out_shape=jax.ShapeDtypeStruct((m, fout), jnp.float32),
        in_specs=[_VMEM, _VMEM, _VMEM],
        out_specs=_VMEM,
    )(x2d, w, b.reshape(1, fout))


def _ln(h, g, beta, eps):
    mean = jnp.mean(h, axis=-1, keepdims=True)
    hc = h - mean
    var = jnp.mean(hc * hc, axis=-1, keepdims=True)
    return hc * jax.lax.rsqrt(var + eps) * g + beta


def _attn_out_ln_q_kernel(attn_ref, res_ref, wo_ref, bo_ref, g_ref, beta_ref,
                          wq_ref, bq_ref, x1_ref, q2_ref, *, eps):
    # x1 = LN1(res + attn @ wo + bo);  q2 = x1 @ wq2 + bq2   (all fused)
    y = jnp.dot(attn_ref[...], wo_ref[...], preferred_element_type=jnp.float32) + bo_ref[...]
    x1 = _ln(res_ref[...] + y, g_ref[...], beta_ref[...], eps)
    x1_ref[...] = x1.astype(x1_ref.dtype)
    q2_ref[...] = (jnp.dot(x1, wq_ref[...], preferred_element_type=jnp.float32)
                   + bq_ref[...]).astype(q2_ref.dtype)


def pallas_attn_out_ln_q(attn, res, wo, bo, g, beta, wq, bq, eps=1e-5):
    m, f = res.shape
    fo = wq.shape[1]
    return pl.pallas_call(
        functools.partial(_attn_out_ln_q_kernel, eps=eps),
        out_shape=(jax.ShapeDtypeStruct((m, f), jnp.float32),
                   jax.ShapeDtypeStruct((m, fo), jnp.float32)),
        in_specs=[_VMEM] * 8,
        out_specs=(_VMEM, _VMEM),
    )(attn, res, wo, bo.reshape(1, -1), g.reshape(1, -1), beta.reshape(1, -1),
      wq, bq.reshape(1, -1))


def _attn_out_ln_ffn_kernel(attn_ref, res_ref, wo_ref, bo_ref, g2_ref, beta2_ref,
                            wc1_ref, bc1_ref, wc2_ref, bc2_ref, g3_ref, beta3_ref,
                            o_ref, *, eps):
    # x2 = LN2(res + attn @ wo2 + bo2)
    y = jnp.dot(attn_ref[...], wo_ref[...], preferred_element_type=jnp.float32) + bo_ref[...]
    x2 = _ln(res_ref[...] + y, g2_ref[...], beta2_ref[...], eps)
    # FFN (1x1 convs == per-position linears) + GELU, then LN3(x2 + ffn)
    hid = _gelu_tanh(jnp.dot(x2, wc1_ref[...], preferred_element_type=jnp.float32)
                     + bc1_ref[...])
    y2 = jnp.dot(hid, wc2_ref[...], preferred_element_type=jnp.float32) + bc2_ref[...]
    o_ref[...] = _ln(x2 + y2, g3_ref[...], beta3_ref[...], eps).astype(o_ref.dtype)


def pallas_attn_out_ln_ffn(attn, res, wo, bo, g2, beta2, wc1, bc1, wc2, bc2,
                           g3, beta3, eps=1e-5):
    m = res.shape[0]
    fout = wc2.shape[1]
    return pl.pallas_call(
        functools.partial(_attn_out_ln_ffn_kernel, eps=eps),
        out_shape=jax.ShapeDtypeStruct((m, fout), jnp.float32),
        in_specs=[_VMEM] * 12,
        out_specs=_VMEM,
    )(attn, res, wo, bo.reshape(1, -1), g2.reshape(1, -1), beta2.reshape(1, -1),
      wc1, bc1.reshape(1, -1), wc2, bc2.reshape(1, -1),
      g3.reshape(1, -1), beta3.reshape(1, -1))


def _mha_kernel(q_ref, k_ref, v_ref, o_ref, *, scale):
    # dense softmax attention over the heads of one batch element
    q, k, v = q_ref[...], k_ref[...], v_ref[...]
    s = jnp.einsum('bqd,bkd->bqk', q, k, preferred_element_type=jnp.float32) * scale
    m = jnp.max(s, axis=-1, keepdims=True)
    p = jnp.exp(s - m)
    p = p * pl.reciprocal(jnp.sum(p, axis=-1, keepdims=True), approx=True)
    o_ref[...] = jnp.einsum('bqk,bkd->bqd', p, v,
                            preferred_element_type=jnp.float32).astype(o_ref.dtype)


def pallas_mha(q, k, v, scale, batch):
    bh, lq, dh = q.shape
    s = k.shape[1]
    h = bh // batch
    qspec = pl.BlockSpec((h, lq, dh), lambda b: (b, 0, 0))
    kspec = pl.BlockSpec((h, s, dh), lambda b: (b, 0, 0))
    return pl.pallas_call(
        functools.partial(_mha_kernel, scale=float(scale)),
        out_shape=jax.ShapeDtypeStruct((bh, lq, dh), jnp.float32),
        grid=(batch,),
        in_specs=[qspec, kspec, kspec],
        out_specs=qspec,
        compiler_params=_PARALLEL_1D,
    )(q, k, v)


def _probsparse_kernel(q_ref, k_ref, v_ref, mtop_ref, o_ref, *, scale):
    # ProbSparse "apply" for is_decoding=True:
    #   gather selected queries -> scaled scores -> ProbMask -> softmax ->
    #   attn @ V -> cumulative-sum context -> scatter selected rows back.
    # Gather/scatter are one-hot matmuls (MXU).  Assumes m_top entries are
    # distinct and either in-range or equal to the sentinel L (padding); this
    # is guaranteed by top_k + the padding below.
    q = q_ref[...]                          # (H, L, Dh)
    k = k_ref[...]
    v = v_ref[...]
    m_top = mtop_ref[0]                     # (H, Lq') int32 original query positions
    hb, L, _ = q.shape
    lq = m_top.shape[-1]

    # one-hot of the selected query positions; sentinel rows (== L) are all-zero
    key_iota = jax.lax.broadcasted_iota(jnp.int32, (hb, lq, L), 2)
    onehot = (key_iota == m_top[:, :, None]).astype(jnp.float32)      # (H, Lq', L)

    # gather selected queries on the MXU (replaces the XLA take_along_axis)
    q_top = jnp.einsum('bql,bld->bqd', onehot, q, preferred_element_type=jnp.float32)

    # scaled scores + decoder ProbMask (key position > original query position)
    s = jnp.einsum('bqd,bkd->bqk', q_top, k, preferred_element_type=jnp.float32) * scale
    s = jnp.where(key_iota > m_top[:, :, None], -jnp.inf, s)

    # softmax (divide on the EUP via approximate reciprocal)
    m = jnp.max(s, axis=-1, keepdims=True)
    p = jnp.exp(s - m)
    p = p * pl.reciprocal(jnp.sum(p, axis=-1, keepdims=True), approx=True)
    attn = jnp.einsum('bqk,bkd->bqd', p, v, preferred_element_type=jnp.float32)

    # decoder context for non-selected queries: cumulative sum of V over keys,
    # realized as a lower-triangular matmul (MXU) instead of lax.cumsum.
    # The mask is built 2-D; only the matmul broadcast replicates it (tiny at
    # H*L*L here).  TODO(synk): tile over key blocks once L grows large.
    r_i = jax.lax.broadcasted_iota(jnp.int32, (L, L), 0)
    c_i = jax.lax.broadcasted_iota(jnp.int32, (L, L), 1)
    tri = (c_i <= r_i).astype(jnp.float32)
    v_cum = jnp.einsum('bqk,bkd->bqd', jnp.broadcast_to(tri, (hb, L, L)), v,
                       preferred_element_type=jnp.float32)

    # scatter attn rows back into v_cum at positions m_top via a one-hot matmul
    pos_iota = jax.lax.broadcasted_iota(jnp.int32, (hb, L, lq), 1)
    onehot_t = (pos_iota == m_top[:, None, :]).astype(jnp.float32)    # (H, L, Lq')
    scattered = jnp.einsum('blq,bqd->bld', onehot_t, attn,
                           preferred_element_type=jnp.float32)
    row_sel = jnp.sum(onehot_t, axis=-1, keepdims=True)               # (H, L, 1) in {0,1}
    o_ref[...] = (v_cum * (1.0 - row_sel) + scattered).astype(o_ref.dtype)
    # TODO(synk): per the v5e review item, a lane-dense (L, H*Dh) score/output
    # repacking would raise lane utilization further; skipped at these shapes.


def pallas_probsparse(q, k, v, m_top_bhq, scale):
    bh, L, dh = q.shape
    batch, h, lq = m_top_bhq.shape
    spec3 = pl.BlockSpec((h, L, dh), lambda b: (b, 0, 0))
    mspec = pl.BlockSpec((1, h, lq), lambda b: (b, 0, 0))
    return pl.pallas_call(
        functools.partial(_probsparse_kernel, scale=float(scale)),
        out_shape=jax.ShapeDtypeStruct((bh, L, dh), jnp.float32),
        grid=(batch,),
        in_specs=[spec3, spec3, spec3, mspec],
        out_specs=spec3,
        compiler_params=_PARALLEL_1D,
    )(q, k, v, m_top_bhq)


# ----------------------------------------------------------------------------
# plain-JAX equivalents (correctness reference only)
# ----------------------------------------------------------------------------

def jnp_linear(x2d, w, b, activation=None):
    y = x2d @ w + b
    return _gelu_tanh(y) if activation == "gelu" else y


def jnp_add_layernorm(x2d, r2d, g, b, eps=1e-5):
    h = x2d + r2d
    mean = h.mean(-1, keepdims=True)
    var = ((h - mean) ** 2).mean(-1, keepdims=True)
    return (h - mean) * jax.lax.rsqrt(var + eps) * g + b


def jnp_mha(q, k, v, scale):
    s = jnp.einsum('bqd,bkd->bqk', q, k) * scale
    return jnp.einsum('bqk,bkd->bqd', jax.nn.softmax(s, axis=-1), v)


def jnp_probsparse(q, k, v, m_top, scale):
    b_idx = jnp.arange(q.shape[0])[:, None]
    q_top = q[b_idx, m_top]
    s = jnp.einsum('bqd,bkd->bqk', q_top, k) * scale
    col = jnp.arange(k.shape[1])[None, None, :]
    s = jnp.where(col > m_top[:, :, None], -jnp.inf, s)
    attn = jnp.einsum('bqk,bkd->bqd', jax.nn.softmax(s, axis=-1), v)
    out = jnp.cumsum(v, axis=1)
    return out.at[b_idx, m_top].set(attn)


# ----------------------------------------------------------------------------
# CrossAttentionBlock forward
# ----------------------------------------------------------------------------

def _split_heads(x, b, n, h, dh):
    # (B*N, H*Dh) -> (B*H, N, Dh)
    return x.reshape(b, n, h, dh).transpose(0, 2, 1, 3).reshape(b * h, n, dh)


def _merge_heads(x, b, n, h, dh):
    # (B*H, N, Dh) -> (B*N, H*Dh)   (standard head concatenation)
    return x.reshape(b, h, n, dh).transpose(0, 2, 1, 3).reshape(b * n, h * dh)


def cross_attention_block_forward(params, mb_feats, mb_enc_feats, sample_idx,
                                  m_top_override=None, *, num_heads,
                                  contraction_factor, use_pallas=True):
    B, L, F = mb_feats.shape
    S = mb_enc_feats.shape[1]
    H = num_heads
    Dh = F // H
    scale = 1.0 / float(np.sqrt(Dh))

    # TODO(synk): Dropout layers are treated as identity (inference mode).
    xf = mb_feats.reshape(B * L, F)
    ef = mb_enc_feats.reshape(B * S, F)

    linear = pallas_linear if use_pallas else jnp_linear

    # ---- 1. ProbSparse self-attention (is_decoding=True, mix=True) ----
    qkv = linear(xf, params["w_qkv1"], params["b_qkv1"])        # fused (F,3F) matmul
    q = _split_heads(qkv[:, 0 * F:1 * F], B, L, H, Dh)
    k = _split_heads(qkv[:, 1 * F:2 * F], B, L, H, Dh)
    v = _split_heads(qkv[:, 2 * F:3 * F], B, L, H, Dh)

    n_q_samp = _num_samples(L, contraction_factor)
    if m_top_override is None:
        # TODO(synk): random key sampling + top-k query selection are
        # data-dependent control flow with no clean Pallas equivalent; kept in
        # plain JAX under the same jit so XLA fuses the gather.
        k_samp = jnp.take(k, sample_idx, axis=1)                # (B*H, L, Lk', Dh)
        s_samp = jnp.einsum('bld,bljd->blj', q, k_samp)         # unscaled sampled scores
        measure = s_samp.max(-1) - s_samp.sum(-1) / L
        m_top = jax.lax.top_k(measure, n_q_samp)[1].astype(jnp.int32)   # (B*H, Lq')
    else:
        m_top = m_top_override

    if use_pallas:
        # pad Lq' up to a multiple of 8 sublanes with a sentinel index == L:
        # padded rows never gather/scatter and never get a fully-masked softmax.
        lq_pad = -(-n_q_samp // 8) * 8
        m_top_pad = jnp.pad(m_top, ((0, 0), (0, lq_pad - n_q_samp)),
                            constant_values=L)
        v_new = pallas_probsparse(q, k, v, m_top_pad.reshape(B, H, lq_pad), scale)
    else:
        v_new = jnp_probsparse(q, k, v, m_top, scale)

    # mix=True: reinterpret the contiguous (B, H, L, Dh) block as (B, L, H*Dh),
    # exactly like the PyTorch .view() (intentional parity: no head transpose).
    attn1 = v_new.reshape(B * L, H * Dh)

    # ---- out-proj + residual + norm1 (+ fused q2 projection) ----
    if use_pallas:
        x1, q2f = pallas_attn_out_ln_q(attn1, xf, params["wo1"], params["bo1"],
                                       params["g1"], params["beta1"],
                                       params["wq2"], params["bq2"])
    else:
        y = jnp_linear(attn1, params["wo1"], params["bo1"])
        x1 = jnp_add_layernorm(xf, y, params["g1"], params["beta1"])
        q2f = jnp_linear(x1, params["wq2"], params["bq2"])

    # ---- 2. dense cross-attention against the encoder features ----
    kv2 = linear(ef, params["w_kv2"], params["b_kv2"])          # fused (F,2F) matmul
    q2 = _split_heads(q2f, B, L, H, Dh)
    k2 = _split_heads(kv2[:, :F], B, S, H, Dh)
    v2 = _split_heads(kv2[:, F:], B, S, H, Dh)
    if use_pallas:
        attn2 = pallas_mha(q2, k2, v2, scale, B)
    else:
        attn2 = jnp_mha(q2, k2, v2, scale)
    attn2 = _merge_heads(attn2, B, L, H, Dh)                    # standard head concat

    # ---- out-proj2 + residual + norm2 + FFN + residual + norm3 (one kernel) ----
    if use_pallas:
        out = pallas_attn_out_ln_ffn(attn2, x1, params["wo2"], params["bo2"],
                                     params["g2"], params["beta2"],
                                     params["wc1"], params["bc1"],
                                     params["wc2"], params["bc2"],
                                     params["g3"], params["beta3"])
    else:
        y = jnp_linear(attn2, params["wo2"], params["bo2"])
        x2 = jnp_add_layernorm(x1, y, params["g2"], params["beta2"])
        hid = jnp_linear(x2, params["wc1"], params["bc1"], activation="gelu")
        y2 = jnp_linear(hid, params["wc2"], params["bc2"])
        out = jnp_add_layernorm(x2, y2, params["g3"], params["beta3"])

    return out.reshape(B, L, -1), m_top


# ----------------------------------------------------------------------------
# parameters
# ----------------------------------------------------------------------------

def init_params(key, num_in_feats, num_out_feats, num_heads, expansion_rate):
    F = num_in_feats
    d = num_out_feats // num_heads * num_heads
    Fh = int(expansion_rate * num_out_feats)
    assert d == F, "residual connections require num_out_feats//H*H == num_in_feats"
    layers = [("wq1", F, d), ("wk1", F, d), ("wv1", F, d), ("wo1", d, F),
              ("wq2", F, d), ("wk2", F, d), ("wv2", F, d), ("wo2", d, F),
              ("wc1", F, Fh), ("wc2", Fh, num_out_feats)]
    raw = {}
    keys = jax.random.split(key, 2 * len(layers))
    for i, (name, fin, fout) in enumerate(layers):
        raw[name] = (jax.random.normal(keys[2 * i], (fin, fout), jnp.float32)
                     / float(np.sqrt(fin)))
        raw["b" + name[1:]] = 0.1 * jax.random.normal(keys[2 * i + 1], (fout,),
                                                      jnp.float32)
    params = {
        # fused projection weights (one matmul per projection stage)
        "w_qkv1": jnp.concatenate([raw["wq1"], raw["wk1"], raw["wv1"]], axis=1),
        "b_qkv1": jnp.concatenate([raw["bq1"], raw["bk1"], raw["bv1"]], axis=0),
        "wo1": raw["wo1"], "bo1": raw["bo1"],
        "wq2": raw["wq2"], "bq2": raw["bq2"],
        "w_kv2": jnp.concatenate([raw["wk2"], raw["wv2"]], axis=1),
        "b_kv2": jnp.concatenate([raw["bk2"], raw["bv2"]], axis=0),
        "wo2": raw["wo2"], "bo2": raw["bo2"],
        "wc1": raw["wc1"], "bc1": raw["bc1"],
        "wc2": raw["wc2"], "bc2": raw["bc2"],
    }
    for i in (1, 2, 3):
        params[f"g{i}"] = jnp.ones((F,), jnp.float32)
        params[f"beta{i}"] = jnp.zeros((F,), jnp.float32)
    return params


# ----------------------------------------------------------------------------
# main
# ----------------------------------------------------------------------------

if __name__ == "__main__":
    num_in_feats = 32       # d_model (== num_out_feats so the residuals line up)
    num_out_feats = 32
    num_heads = 4           # head dim = 8
    contraction_factor = 5
    expansion_rate = 1.0
    B, L, S = 2, 16, 16     # batch, decoder length, encoder length

    root = jax.random.PRNGKey(0)
    k_par, k_x, k_enc, k_idx = jax.random.split(root, 4)

    params = init_params(k_par, num_in_feats, num_out_feats, num_heads,
                         expansion_rate)
    mb_feats = jax.random.normal(k_x, (B, L, num_in_feats), jnp.float32)
    mb_enc_feats = jax.random.normal(k_enc, (B, S, num_in_feats), jnp.float32)

    # random key-sample indices (torch.randint equivalent), shared by both paths
    n_k_samp = _num_samples(L, contraction_factor)
    sample_idx = jax.random.randint(k_idx, (L, n_k_samp), 0, L, dtype=jnp.int32)

    fwd = jax.jit(functools.partial(
        cross_attention_block_forward, num_heads=num_heads,
        contraction_factor=contraction_factor, use_pallas=True))
    out, m_top = fwd(params, mb_feats, mb_enc_feats, sample_idx)
    out = jax.block_until_ready(out)
    assert out.shape == (B, L, num_out_feats)
    assert bool(jnp.all(jnp.isfinite(out)))

    # plain-JAX reference with identical weights / sampling / query selection.
    # Tolerance 5e-3 (was 1e-1): real masking/scatter bugs are O(1) errors;
    # the residual slack only covers the approximate-reciprocal softmax divide
    # and MXU f32 accumulation-order differences.
    fwd_ref = jax.jit(functools.partial(
        cross_attention_block_forward, num_heads=num_heads,
        contraction_factor=contraction_factor, use_pallas=False))
    ref, _ = fwd_ref(params, mb_feats, mb_enc_feats, sample_idx, m_top)
    ref = jax.block_until_ready(ref)
    np.testing.assert_allclose(np.asarray(out), np.asarray(ref),
                               rtol=5e-3, atol=5e-3)

    print("KERNEL_OK")
</pallas_src>

<mosaic_0001>
module attributes {stable_mosaic.version = 11 : i64} {
  func.func @_linear_kernel(%arg0: memref<32x32xf32, #tpu.memory_space<vmem>>, %arg1: memref<32x96xf32, #tpu.memory_space<vmem>>, %arg2: memref<1x96xf32, #tpu.memory_space<vmem>>, %arg3: memref<32x96xf32, #tpu.memory_space<vmem>>) attributes {dimension_semantics = [], scalar_prefetch = 0 : i64, scratch_operands = 0 : i64, tpu.core_type = #tpu.core_type<tc>} {
    %c0 = arith.constant 0 : index
    %c0_0 = arith.constant 0 : index
    %0 = vector.load %arg0[%c0, %c0_0] : memref<32x32xf32, #tpu.memory_space<vmem>>, vector<32x32xf32>
    %c0_1 = arith.constant 0 : index
    %c0_2 = arith.constant 0 : index
    %1 = vector.load %arg1[%c0_1, %c0_2] : memref<32x96xf32, #tpu.memory_space<vmem>>, vector<32x96xf32>
    %cst = arith.constant dense<0.000000e+00> : vector<32x96xf32>
    %2 = tpu.matmul %0, %1, %cst {dimension_numbers = #tpu.dot_dimension_numbers<[1], [0], [0], [1], [0, 0, 1, 1], [], []>} : vector<32x32xf32>, vector<32x96xf32>, vector<32x96xf32> -> vector<32x96xf32>
    %c0_3 = arith.constant 0 : index
    %c0_4 = arith.constant 0 : index
    %3 = vector.load %arg2[%c0_3, %c0_4] : memref<1x96xf32, #tpu.memory_space<vmem>>, vector<1x96xf32>
    %4 = vector.broadcast %3 : vector<1x96xf32> to vector<32x96xf32>
    %5 = arith.addf %2, %4 : vector<32x96xf32>
    %c0_5 = arith.constant 0 : index
    %c0_6 = arith.constant 0 : index
    %6 = vector.load %arg3[%c0_5, %c0_6] : memref<32x96xf32, #tpu.memory_space<vmem>>, vector<32x96xf32>
    tpu.vector_store %arg3[%c0_5, %c0_6], %5 {strides = array<i32>} : memref<32x96xf32, #tpu.memory_space<vmem>>, vector<32x96xf32>,
    return
  }
}

module attributes {stable_mosaic.version = 11 : i64} {
  func.func @_attn_out_ln_q_kernel(%arg0: memref<32x32xf32, #tpu.memory_space<vmem>>, %arg1: memref<32x32xf32, #tpu.memory_space<vmem>>, %arg2: memref<32x32xf32, #tpu.memory_space<vmem>>, %arg3: memref<1x32xf32, #tpu.memory_space<vmem>>, %arg4: memref<1x32xf32, #tpu.memory_space<vmem>>, %arg5: memref<1x32xf32, #tpu.memory_space<vmem>>, %arg6: memref<32x32xf32, #tpu.memory_space<vmem>>, %arg7: memref<1x32xf32, #tpu.memory_space<vmem>>, %arg8: memref<32x32xf32, #tpu.memory_space<vmem>>, %arg9: memref<32x32xf32, #tpu.memory_space<vmem>>) attributes {dimension_semantics = [], scalar_prefetch = 0 : i64, scratch_operands = 0 : i64, tpu.core_type = #tpu.core_type<tc>} {
    %c0 = arith.constant 0 : index
    %c0_0 = arith.constant 0 : index
    %0 = vector.load %arg0[%c0, %c0_0] : memref<32x32xf32, #tpu.memory_space<vmem>>, vector<32x32xf32>
    %c0_1 = arith.constant 0 : index
    %c0_2 = arith.constant 0 : index
    %1 = vector.load %arg2[%c0_1, %c0_2] : memref<32x32xf32, #tpu.memory_space<vmem>>, vector<32x32xf32>
    %cst = arith.constant dense<0.000000e+00> : vector<32x32xf32>
    %2 = tpu.matmul %0, %1, %cst {dimension_numbers = #tpu.dot_dimension_numbers<[1], [0], [0], [1], [0, 0, 1, 1], [], []>} : vector<32x32xf32>, vector<32x32xf32>, vector<32x32xf32> -> vector<32x32xf32>
    %c0_3 = arith.constant 0 : index
    %c0_4 = arith.constant 0 : index
    %3 = vector.load %arg3[%c0_3, %c0_4] : memref<1x32xf32, #tpu.memory_space<vmem>>, vector<1x32xf32>
    %4 = vector.broadcast %3 : vector<1x32xf32> to vector<32x32xf32>
    %5 = arith.addf %2, %4 : vector<32x32xf32>
    %c0_5 = arith.constant 0 : index
    %c0_6 = arith.constant 0 : index
    %6 = vector.load %arg1[%c0_5, %c0_6] : memref<32x32xf32, #tpu.memory_space<vmem>>, vector<32x32xf32>
    %7 = arith.addf %6, %5 : vector<32x32xf32>
    %c0_7 = arith.constant 0 : index
    %c0_8 = arith.constant 0 : index
    %8 = vector.load %arg4[%c0_7, %c0_8] : memref<1x32xf32, #tpu.memory_space<vmem>>, vector<1x32xf32>
    %c0_9 = arith.constant 0 : index
    %c0_10 = arith.constant 0 : index
    %9 = vector.load %arg5[%c0_9, %c0_10] : memref<1x32xf32, #tpu.memory_space<vmem>>, vector<1x32xf32>
    %cst_11 = arith.constant dense<0.000000e+00> : vector<32xf32>
    %10 = vector.multi_reduction <add>, %7, %cst_11 [1] : vector<32x32xf32> to vector<32xf32>
    %11 = vector.shape_cast %10 : vector<32xf32> to vector<32x1xf32>
    %cst_12 = arith.constant 3.200000e+01 : f32
    %12 = vector.broadcast %cst_12 : f32 to vector<32x1xf32>
    %13 = arith.divf %11, %12 : vector<32x1xf32>
    %14 = vector.broadcast %13 : vector<32x1xf32> to vector<32x32xf32>
    %15 = arith.subf %7, %14 : vector<32x32xf32>
    %16 = arith.mulf %15, %15 : vector<32x32xf32>
    %cst_13 = arith.constant dense<0.000000e+00> : vector<32xf32>
    %17 = vector.multi_reduction <add>, %16, %cst_13 [1] : vector<32x32xf32> to vector<32xf32>
    %18 = vector.shape_cast %17 : vector<32xf32> to vector<32x1xf32>
    %cst_14 = arith.constant 3.200000e+01 : f32
    %19 = vector.broadcast %cst_14 : f32 to vector<32x1xf32>
    %20 = arith.divf %18, %19 : vector<32x1xf32>
    %cst_15 = arith.constant 9.99999974E-6 : f32
    %21 = vector.broadcast %cst_15 : f32 to vector<32x1xf32>
    %22 = arith.addf %20, %21 : vector<32x1xf32>
    %23 = math.rsqrt %22 : vector<32x1xf32>
    %24 = vector.broadcast %23 : vector<32x1xf32> to vector<32x32xf32>
    %25 = arith.mulf %15, %24 : vector<32x32xf32>
    %26 = vector.broadcast %8 : vector<1x32xf32> to vector<32x32xf32>
    %27 = arith.mulf %25, %26 : vector<32x32xf32>
    %28 = vector.broadcast %9 : vector<1x32xf32> to vector<32x32xf32>
    %29 = arith.addf %27, %28 : vector<32x32xf32>
    %c0_16 = arith.constant 0 : index
    %c0_17 = arith.constant 0 : index
    %30 = vector.load %arg8[%c0_16, %c0_17] : memref<32x32xf32, #tpu.memory_space<vmem>>, vector<32x32xf32>
    tpu.vector_store %arg8[%c0_16, %c0_17], %29 {strides = array<i32>} : memref<32x32xf32, #tpu.memory_space<vmem>>, vector<32x32xf32>,
    %c0_18 = arith.constant 0 : index
    %c0_19 = arith.constant 0 : index
    %31 = vector.load %arg6[%c0_18, %c0_19] : memref<32x32xf32, #tpu.memory_space<vmem>>, vector<32x32xf32>
    %cst_20 = arith.constant dense<0.000000e+00> : vector<32x32xf32>
    %32 = tpu.matmul %29, %31, %cst_20 {dimension_numbers = #tpu.dot_dimension_numbers<[1], [0], [0], [1], [0, 0, 1, 1], [], []>} : vector<32x32xf32>, vector<32x32xf32>, vector<32x32xf32> -> vector<32x32xf32>
    %c0_21 = arith.constant 0 : index
    %c0_22 = arith.constant 0 : index
    %33 = vector.load %arg7[%c0_21, %c0_22] : memref<1x32xf32, #tpu.memory_space<vmem>>, vector<1x32xf32>
    %34 = vector.broadcast %33 : vector<1x32xf32> to vector<32x32xf32>
    %35 = arith.addf %32, %34 : vector<32x32xf32>
    %c0_23 = arith.constant 0 : index
    %c0_24 = arith.constant 0 : index
    %36 = vector.load %arg9[%c0_23, %c0_24] : memref<32x32xf32, #tpu.memory_space<vmem>>, vector<32x32xf32>
    tpu.vector_store %arg9[%c0_23, %c0_24], %35 {strides = array<i32>} : memref<32x32xf32, #tpu.memory_space<vmem>>, vector<32x32xf32>,
    return
  }
}

module attributes {stable_mosaic.version = 11 : i64} {
  func.func @_probsparse_kernel(%arg0: i32, %arg1: memref<4x16x8xf32, #tpu.memory_space<vmem>>, %arg2: memref<4x16x8xf32, #tpu.memory_space<vmem>>, %arg3: memref<4x16x8xf32, #tpu.memory_space<vmem>>, %arg4: memref<1x4x16xi32, #tpu.memory_space<vmem>>, %arg5: memref<4x16x8xf32, #tpu.memory_space<vmem>>) attributes {dimension_semantics = [#tpu.dimension_semantics<parallel>], iteration_bounds = array<i64: 2>, scalar_prefetch = 0 : i64, scratch_operands = 0 : i64, tpu.core_type = #tpu.core_type<tc>, window_params = [{transform_indices = @transform_0, window_bounds = array<i64: 4, 16, 8>}, {transform_indices = @transform_1, window_bounds = array<i64: 4, 16, 8>}, {transform_indices = @transform_2, window_bounds = array<i64: 4, 16, 8>}, {transform_indices = @transform_3, window_bounds = array<i64: 1, 4, 16>}, {transform_indices = @transform_4, window_bounds = array<i64: 4, 16, 8>}]} {
    %c0 = arith.constant 0 : index
    %c0_0 = arith.constant 0 : index
    %c0_1 = arith.constant 0 : index
    %0 = vector.load %arg1[%c0, %c0_0, %c0_1] : memref<4x16x8xf32, #tpu.memory_space<vmem>>, vector<4x16x8xf32>
    %c0_2 = arith.constant 0 : index
    %c0_3 = arith.constant 0 : index
    %c0_4 = arith.constant 0 : index
    %1 = vector.load %arg2[%c0_2, %c0_3, %c0_4] : memref<4x16x8xf32, #tpu.memory_space<vmem>>, vector<4x16x8xf32>
    %c0_5 = arith.constant 0 : index
    %c0_6 = arith.constant 0 : index
    %c0_7 = arith.constant 0 : index
    %2 = vector.load %arg3[%c0_5, %c0_6, %c0_7] : memref<4x16x8xf32, #tpu.memory_space<vmem>>, vector<4x16x8xf32>
    %c0_8 = arith.constant 0 : index
    %c0_9 = arith.constant 0 : index
    %c0_10 = arith.constant 0 : index
    %3 = vector.load %arg4[%c0_8, %c0_9, %c0_10] : memref<1x4x16xi32, #tpu.memory_space<vmem>>, vector<1x4x16xi32>
    %4 = vector.shape_cast %3 : vector<1x4x16xi32> to vector<4x16xi32>
    %5 = tpu.iota {dimensions = array<i32: 2>} : vector<4x16x16xi32>
    %6 = vector.shape_cast %4 : vector<4x16xi32> to vector<4x16x1xi32>
    %7 = vector.broadcast %6 : vector<4x16x1xi32> to vector<4x16x16xi32>
    %8 = arith.cmpi eq, %5, %7 : vector<4x16x16xi32>
    %9 = arith.extui %8 : vector<4x16x16xi1> to vector<4x16x16xi32>
    %10 = arith.sitofp %9 : vector<4x16x16xi32> to vector<4x16x16xf32>
    "tpu.trace_start"() <{level = 10 : i32, message = "bql,bld->bqd"}> : () -> ()
    %cst = arith.constant dense<0.000000e+00> : vector<4x16x8xf32>
    %11 = tpu.matmul %10, %0, %cst {dimension_numbers = #tpu.dot_dimension_numbers<[2], [1], [1], [2], [0, 0, 0, 1, 1, 2], [0], [0]>} : vector<4x16x16xf32>, vector<4x16x8xf32>, vector<4x16x8xf32> -> vector<4x16x8xf32>
    "tpu.trace_stop"() : () -> ()
    "tpu.trace_start"() <{level = 10 : i32, message = "bqd,bkd->bqk"}> : () -> ()
    %cst_11 = arith.constant dense<0.000000e+00> : vector<4x16x16xf32>
    %12 = tpu.matmul %11, %1, %cst_11 {dimension_numbers = #tpu.dot_dimension_numbers<[2], [2], [1], [1], [0, 0, 0, 1, 1, 1], [0], [0]>} : vector<4x16x8xf32>, vector<4x16x8xf32>, vector<4x16x16xf32> -> vector<4x16x16xf32>
    "tpu.trace_stop"() : () -> ()
    %cst_12 = arith.constant 0.353553385 : f32
    %13 = vector.broadcast %cst_12 : f32 to vector<4x16x16xf32>
    %14 = arith.mulf %12, %13 : vector<4x16x16xf32>
    %15 = vector.shape_cast %4 : vector<4x16xi32> to vector<4x16x1xi32>
    %16 = vector.broadcast %15 : vector<4x16x1xi32> to vector<4x16x16xi32>
    %17 = arith.cmpi sgt, %5, %16 : vector<4x16x16xi32>
    %cst_13 = arith.constant 0xFF800000 : f32
    %18 = vector.broadcast %cst_13 : f32 to vector<4x16x16xf32>
    %19 = arith.select %17, %18, %14 : vector<4x16x16xi1>, vector<4x16x16xf32>
    %cst_14 = arith.constant dense<0xFF800000> : vector<4x16xf32>
    %20 = vector.multi_reduction <maximumf>, %19, %cst_14 [2] : vector<4x16x16xf32> to vector<4x16xf32>
    %21 = vector.shape_cast %20 : vector<4x16xf32> to vector<4x16x1xf32>
    %22 = vector.broadcast %21 : vector<4x16x1xf32> to vector<4x16x16xf32>
    %23 = arith.subf %19, %22 : vector<4x16x16xf32>
    %24 = math.exp %23 : vector<4x16x16xf32>
    %cst_15 = arith.constant dense<0.000000e+00> : vector<4x16xf32>
    %25 = vector.multi_reduction <add>, %24, %cst_15 [2] : vector<4x16x16xf32> to vector<4x16xf32>
    %26 = vector.shape_cast %25 : vector<4x16xf32> to vector<4x16x1xf32>
    %27 = tpu.reciprocal %26 {approx = true} : vector<4x16x1xf32> -> vector<4x16x1xf32>
    %28 = vector.broadcast %27 : vector<4x16x1xf32> to vector<4x16x16xf32>
    %29 = arith.mulf %24, %28 : vector<4x16x16xf32>
    "tpu.trace_start"() <{level = 10 : i32, message = "bqk,bkd->bqd"}> : () -> ()
    %cst_16 = arith.constant dense<0.000000e+00> : vector<4x16x8xf32>
    %30 = tpu.matmul %29, %2, %cst_16 {dimension_numbers = #tpu.dot_dimension_numbers<[2], [1], [1], [2], [0, 0, 0, 1, 1, 2], [0], [0]>} : vector<4x16x16xf32>, vector<4x16x8xf32>, vector<4x16x8xf32> -> vector<4x16x8xf32>
    "tpu.trace_stop"() : () -> ()
    %31 = tpu.iota {dimensions = array<i32: 0>} : vector<16x16xi32>
    %32 = tpu.iota {dimensions = array<i32: 1>} : vector<16x16xi32>
    %33 = arith.cmpi sle, %32, %31 : vector<16x16xi32>
    %34 = arith.extui %33 : vector<16x16xi1> to vector<16x16xi32>
    %35 = arith.sitofp %34 : vector<16x16xi32> to vector<16x16xf32>
    %36 = vector.shape_cast %35 : vector<16x16xf32> to vector<1x16x16xf32>
    %37 = vector.broadcast %36 : vector<1x16x16xf32> to vector<4x16x16xf32>
    "tpu.trace_start"() <{level = 10 : i32, message = "bqk,bkd->bqd"}> : () -> ()
    %cst_17 = arith.constant dense<0.000000e+00> : vector<4x16x8xf32>
    %38 = tpu.matmul %37, %2, %cst_17 {dimension_numbers = #tpu.dot_dimension_numbers<[2], [1], [1], [2], [0, 0, 0, 1, 1, 2], [0], [0]>} : vector<4x16x16xf32>, vector<4x16x8xf32>, vector<4x16x8xf32> -> vector<4x16x8xf32>
    "tpu.trace_stop"() : () -> ()
    %39 = tpu.iota {dimensions = array<i32: 1>} : vector<4x16x16xi32>
    %40 = vector.shape_cast %4 : vector<4x16xi32> to vector<4x1x16xi32>
    %41 = vector.broadcast %40 : vector<4x1x16xi32> to vector<4x16x16xi32>
    %42 = arith.cmpi eq, %39, %41 : vector<4x16x16xi32>
    %43 = arith.extui %42 : vector<4x16x16xi1> to vector<4x16x16xi32>
    %44 = arith.sitofp %43 : vector<4x16x16xi32> to vector<4x16x16xf32>
    "tpu.trace_start"() <{level = 10 : i32, message = "blq,bqd->bld"}> : () -> ()
    %cst_18 = arith.constant dense<0.000000e+00> : vector<4x16x8xf32>
    %45 = tpu.matmul %44, %30, %cst_18 {dimension_numbers = #tpu.dot_dimension_numbers<[2], [1], [1], [2], [0, 0, 0, 1, 1, 2], [0], [0]>} : vector<4x16x16xf32>, vector<4x16x8xf32>, vector<4x16x8xf32> -> vector<4x16x8xf32>
    "tpu.trace_stop"() : () -> ()
    %cst_19 = arith.constant dense<0.000000e+00> : vector<4x16xf32>
    %46 = vector.multi_reduction <add>, %44, %cst_19 [2] : vector<4x16x16xf32> to vector<4x16xf32>
    %47 = vector.shape_cast %46 : vector<4x16xf32> to vector<4x16x1xf32>
    %cst_20 = arith.constant 1.000000e+00 : f32
    %48 = vector.broadcast %cst_20 : f32 to vector<4x16x1xf32>
    %49 = arith.subf %48, %47 : vector<4x16x1xf32>
    %50 = vector.broadcast %49 : vector<4x16x1xf32> to vector<4x16x8xf32>
    %51 = arith.mulf %38, %50 : vector<4x16x8xf32>
    %52 = arith.addf %51, %45 : vector<4x16x8xf32>
    %c0_21 = arith.constant 0 : index
    %c0_22 = arith.constant 0 : index
    %c0_23 = arith.constant 0 : index
    %53 = vector.load %arg5[%c0_21, %c0_22, %c0_23] : memref<4x16x8xf32, #tpu.memory_space<vmem>>, vector<4x16x8xf32>
    tpu.vector_store %arg5[%c0_21, %c0_22, %c0_23], %52 {strides = array<i32>} : memref<4x16x8xf32, #tpu.memory_space<vmem>>, vector<4x16x8xf32>,
    return
  }
  func.func @transform_0(%arg0: i32) -> (i32, i32, i32) {
    %c0_i32 = arith.constant 0 : i32
    %c0_i32_0 = arith.constant 0 : i32
    %c0_i32_1 = arith.constant 0 : i32
    return %arg0, %c0_i32, %c0_i32_0 : i32, i32, i32
  }
  func.func @transform_1(%arg0: i32) -> (i32, i32, i32) {
    %c0_i32 = arith.constant 0 : i32
    %c0_i32_0 = arith.constant 0 : i32
    %c0_i32_1 = arith.constant 0 : i32
    return %arg0, %c0_i32, %c0_i32_0 : i32, i32, i32
  }
  func.func @transform_2(%arg0: i32) -> (i32, i32, i32) {
    %c0_i32 = arith.constant 0 : i32
    %c0_i32_0 = arith.constant 0 : i32
    %c0_i32_1 = arith.constant 0 : i32
    return %arg0, %c0_i32, %c0_i32_0 : i32, i32, i32
  }
  func.func @transform_3(%arg0: i32) -> (i32, i32, i32) {
    %c0_i32 = arith.constant 0 : i32
    %c0_i32_0 = arith.constant 0 : i32
    %c0_i32_1 = arith.constant 0 : i32
    return %arg0, %c0_i32, %c0_i32_0 : i32, i32, i32
  }
  func.func @transform_4(%arg0: i32) -> (i32, i32, i32) {
    %c0_i32 = arith.constant 0 : i32
    %c0_i32_0 = arith.constant 0 : i32
    %c0_i32_1 = arith.constant 0 : i32
    return %arg0, %c0_i32, %c0_i32_0 : i32, i32, i32
  }
}

module attributes {stable_mosaic.version = 11 : i64} {
  func.func @_linear_kernel(%arg0: memref<32x32xf32, #tpu.memory_space<vmem>>, %arg1: memref<32x64xf32, #tpu.memory_space<vmem>>, %arg2: memref<1x64xf32, #tpu.memory_space<vmem>>, %arg3: memref<32x64xf32, #tpu.memory_space<vmem>>) attributes {dimension_semantics = [], scalar_prefetch = 0 : i64, scratch_operands = 0 : i64, tpu.core_type = #tpu.core_type<tc>} {
    %c0 = arith.constant 0 : index
    %c0_0 = arith.constant 0 : index
    %0 = vector.load %arg0[%c0, %c0_0] : memref<32x32xf32, #tpu.memory_space<vmem>>, vector<32x32xf32>
    %c0_1 = arith.constant 0 : index
    %c0_2 = arith.constant 0 : index
    %1 = vector.load %arg1[%c0_1, %c0_2] : memref<32x64xf32, #tpu.memory_space<vmem>>, vector<32x64xf32>
    %cst = arith.constant dense<0.000000e+00> : vector<32x64xf32>
    %2 = tpu.matmul %0, %1, %cst {dimension_numbers = #tpu.dot_dimension_numbers<[1], [0], [0], [1], [0, 0, 1, 1], [], []>} : vector<32x32xf32>, vector<32x64xf32>, vector<32x64xf32> -> vector<32x64xf32>
    %c0_3 = arith.constant 0 : index
    %c0_4 = arith.constant 0 : index
    %3 = vector.load %arg2[%c0_3, %c0_4] : memref<1x64xf32, #tpu.memory_space<vmem>>, vector<1x64xf32>
    %4 = vector.broadcast %3 : vector<1x64xf32> to vector<32x64xf32>
    %5 = arith.addf %2, %4 : vector<32x64xf32>
    %c0_5 = arith.constant 0 : index
    %c0_6 = arith.constant 0 : index
    %6 = vector.load %arg3[%c0_5, %c0_6] : memref<32x64xf32, #tpu.memory_space<vmem>>, vector<32x64xf32>
    tpu.vector_store %arg3[%c0_5, %c0_6], %5 {strides = array<i32>} : memref<32x64xf32, #tpu.memory_space<vmem>>, vector<32x64xf32>,
    return
  }
}

module attributes {stable_mosaic.version = 11 : i64} {
  func.func @_mha_kernel(%arg0: i32, %arg1: memref<4x16x8xf32, #tpu.memory_space<vmem>>, %arg2: memref<4x16x8xf32, #tpu.memory_space<vmem>>, %arg3: memref<4x16x8xf32, #tpu.memory_space<vmem>>, %arg4: memref<4x16x8xf32, #tpu.memory_space<vmem>>) attributes {dimension_semantics = [#tpu.dimension_semantics<parallel>], iteration_bounds = array<i64: 2>, scalar_prefetch = 0 : i64, scratch_operands = 0 : i64, tpu.core_type = #tpu.core_type<tc>, window_params = [{transform_indices = @transform_0, window_bounds = array<i64: 4, 16, 8>}, {transform_indices = @transform_1, window_bounds = array<i64: 4, 16, 8>}, {transform_indices = @transform_2, window_bounds = array<i64: 4, 16, 8>}, {transform_indices = @transform_3, window_bounds = array<i64: 4, 16, 8>}]} {
    %c0 = arith.constant 0 : index
    %c0_0 = arith.constant 0 : index
    %c0_1 = arith.constant 0 : index
    %0 = vector.load %arg1[%c0, %c0_0, %c0_1] : memref<4x16x8xf32, #tpu.memory_space<vmem>>, vector<4x16x8xf32>
    %c0_2 = arith.constant 0 : index
    %c0_3 = arith.constant 0 : index
    %c0_4 = arith.constant 0 : index
    %1 = vector.load %arg2[%c0_2, %c0_3, %c0_4] : memref<4x16x8xf32, #tpu.memory_space<vmem>>, vector<4x16x8xf32>
    %c0_5 = arith.constant 0 : index
    %c0_6 = arith.constant 0 : index
    %c0_7 = arith.constant 0 : index
    %2 = vector.load %arg3[%c0_5, %c0_6, %c0_7] : memref<4x16x8xf32, #tpu.memory_space<vmem>>, vector<4x16x8xf32>
    "tpu.trace_start"() <{level = 10 : i32, message = "bqd,bkd->bqk"}> : () -> ()
    %cst = arith.constant dense<0.000000e+00> : vector<4x16x16xf32>
    %3 = tpu.matmul %0, %1, %cst {dimension_numbers = #tpu.dot_dimension_numbers<[2], [2], [1], [1], [0, 0, 0, 1, 1, 1], [0], [0]>} : vector<4x16x8xf32>, vector<4x16x8xf32>, vector<4x16x16xf32> -> vector<4x16x16xf32>
    "tpu.trace_stop"() : () -> ()
    %cst_8 = arith.constant 0.353553385 : f32
    %4 = vector.broadcast %cst_8 : f32 to vector<4x16x16xf32>
    %5 = arith.mulf %3, %4 : vector<4x16x16xf32>
    %cst_9 = arith.constant dense<0xFF800000> : vector<4x16xf32>
    %6 = vector.multi_reduction <maximumf>, %5, %cst_9 [2] : vector<4x16x16xf32> to vector<4x16xf32>
    %7 = vector.shape_cast %6 : vector<4x16xf32> to vector<4x16x1xf32>
    %8 = vector.broadcast %7 : vector<4x16x1xf32> to vector<4x16x16xf32>
    %9 = arith.subf %5, %8 : vector<4x16x16xf32>
    %10 = math.exp %9 : vector<4x16x16xf32>
    %cst_10 = arith.constant dense<0.000000e+00> : vector<4x16xf32>
    %11 = vector.multi_reduction <add>, %10, %cst_10 [2] : vector<4x16x16xf32> to vector<4x16xf32>
    %12 = vector.shape_cast %11 : vector<4x16xf32> to vector<4x16x1xf32>
    %13 = tpu.reciprocal %12 {approx = true} : vector<4x16x1xf32> -> vector<4x16x1xf32>
    %14 = vector.broadcast %13 : vector<4x16x1xf32> to vector<4x16x16xf32>
    %15 = arith.mulf %10, %14 : vector<4x16x16xf32>
    "tpu.trace_start"() <{level = 10 : i32, message = "bqk,bkd->bqd"}> : () -> ()
    %cst_11 = arith.constant dense<0.000000e+00> : vector<4x16x8xf32>
    %16 = tpu.matmul %15, %2, %cst_11 {dimension_numbers = #tpu.dot_dimension_numbers<[2], [1], [1], [2], [0, 0, 0, 1, 1, 2], [0], [0]>} : vector<4x16x16xf32>, vector<4x16x8xf32>, vector<4x16x8xf32> -> vector<4x16x8xf32>
    "tpu.trace_stop"() : () -> ()
    %c0_12 = arith.constant 0 : index
    %c0_13 = arith.constant 0 : index
    %c0_14 = arith.constant 0 : index
    %17 = vector.load %arg4[%c0_12, %c0_13, %c0_14] : memref<4x16x8xf32, #tpu.memory_space<vmem>>, vector<4x16x8xf32>
    tpu.vector_store %arg4[%c0_12, %c0_13, %c0_14], %16 {strides = array<i32>} : memref<4x16x8xf32, #tpu.memory_space<vmem>>, vector<4x16x8xf32>,
    return
  }
  func.func @transform_0(%arg0: i32) -> (i32, i32, i32) {
    %c0_i32 = arith.constant 0 : i32
    %c0_i32_0 = arith.constant 0 : i32
    %c0_i32_1 = arith.constant 0 : i32
    return %arg0, %c0_i32, %c0_i32_0 : i32, i32, i32
  }
  func.func @transform_1(%arg0: i32) -> (i32, i32, i32) {
    %c0_i32 = arith.constant 0 : i32
    %c0_i32_0 = arith.constant 0 : i32
    %c0_i32_1 = arith.constant 0 : i32
    return %arg0, %c0_i32, %c0_i32_0 : i32, i32, i32
  }
  func.func @transform_2(%arg0: i32) -> (i32, i32, i32) {
    %c0_i32 = arith.constant 0 : i32
    %c0_i32_0 = arith.constant 0 : i32
    %c0_i32_1 = arith.constant 0 : i32
    return %arg0, %c0_i32, %c0_i32_0 : i32, i32, i32
  }
  func.func @transform_3(%arg0: i32) -> (i32, i32, i32) {
    %c0_i32 = arith.constant 0 : i32
    %c0_i32_0 = arith.constant 0 : i32
    %c0_i32_1 = arith.constant 0 : i32
    return %arg0, %c0_i32, %c0_i32_0 : i32, i32, i32
  }
}

module attributes {stable_mosaic.version = 11 : i64} {
  func.func @_attn_out_ln_ffn_kernel(%arg0: memref<32x32xf32, #tpu.memory_space<vmem>>, %arg1: memref<32x32xf32, #tpu.memory_space<vmem>>, %arg2: memref<32x32xf32, #tpu.memory_space<vmem>>, %arg3: memref<1x32xf32, #tpu.memory_space<vmem>>, %arg4: memref<1x32xf32, #tpu.memory_space<vmem>>, %arg5: memref<1x32xf32, #tpu.memory_space<vmem>>, %arg6: memref<32x32xf32, #tpu.memory_space<vmem>>, %arg7: memref<1x32xf32, #tpu.memory_space<vmem>>, %arg8: memref<32x32xf32, #tpu.memory_space<vmem>>, %arg9: memref<1x32xf32, #tpu.memory_space<vmem>>, %arg10: memref<1x32xf32, #tpu.memory_space<vmem>>, %arg11: memref<1x32xf32, #tpu.memory_space<vmem>>, %arg12: memref<32x32xf32, #tpu.memory_space<vmem>>) attributes {dimension_semantics = [], scalar_prefetch = 0 : i64, scratch_operands = 0 : i64, tpu.core_type = #tpu.core_type<tc>} {
    %c0 = arith.constant 0 : index
    %c0_0 = arith.constant 0 : index
    %0 = vector.load %arg0[%c0, %c0_0] : memref<32x32xf32, #tpu.memory_space<vmem>>, vector<32x32xf32>
    %c0_1 = arith.constant 0 : index
    %c0_2 = arith.constant 0 : index
    %1 = vector.load %arg2[%c0_1, %c0_2] : memref<32x32xf32, #tpu.memory_space<vmem>>, vector<32x32xf32>
    %cst = arith.constant dense<0.000000e+00> : vector<32x32xf32>
    %2 = tpu.matmul %0, %1, %cst {dimension_numbers = #tpu.dot_dimension_numbers<[1], [0], [0], [1], [0, 0, 1, 1], [], []>} : vector<32x32xf32>, vector<32x32xf32>, vector<32x32xf32> -> vector<32x32xf32>
    %c0_3 = arith.constant 0 : index
    %c0_4 = arith.constant 0 : index
    %3 = vector.load %arg3[%c0_3, %c0_4] : memref<1x32xf32, #tpu.memory_space<vmem>>, vector<1x32xf32>
    %4 = vector.broadcast %3 : vector<1x32xf32> to vector<32x32xf32>
    %5 = arith.addf %2, %4 : vector<32x32xf32>
    %c0_5 = arith.constant 0 : index
    %c0_6 = arith.constant 0 : index
    %6 = vector.load %arg1[%c0_5, %c0_6] : memref<32x32xf32, #tpu.memory_space<vmem>>, vector<32x32xf32>
    %7 = arith.addf %6, %5 : vector<32x32xf32>
    %c0_7 = arith.constant 0 : index
    %c0_8 = arith.constant 0 : index
    %8 = vector.load %arg4[%c0_7, %c0_8] : memref<1x32xf32, #tpu.memory_space<vmem>>, vector<1x32xf32>
    %c0_9 = arith.constant 0 : index
    %c0_10 = arith.constant 0 : index
    %9 = vector.load %arg5[%c0_9, %c0_10] : memref<1x32xf32, #tpu.memory_space<vmem>>, vector<1x32xf32>
    %cst_11 = arith.constant dense<0.000000e+00> : vector<32xf32>
    %10 = vector.multi_reduction <add>, %7, %cst_11 [1] : vector<32x32xf32> to vector<32xf32>
    %11 = vector.shape_cast %10 : vector<32xf32> to vector<32x1xf32>
    %cst_12 = arith.constant 3.200000e+01 : f32
    %12 = vector.broadcast %cst_12 : f32 to vector<32x1xf32>
    %13 = arith.divf %11, %12 : vector<32x1xf32>
    %14 = vector.broadcast %13 : vector<32x1xf32> to vector<32x32xf32>
    %15 = arith.subf %7, %14 : vector<32x32xf32>
    %16 = arith.mulf %15, %15 : vector<32x32xf32>
    %cst_13 = arith.constant dense<0.000000e+00> : vector<32xf32>
    %17 = vector.multi_reduction <add>, %16, %cst_13 [1] : vector<32x32xf32> to vector<32xf32>
    %18 = vector.shape_cast %17 : vector<32xf32> to vector<32x1xf32>
    %cst_14 = arith.constant 3.200000e+01 : f32
    %19 = vector.broadcast %cst_14 : f32 to vector<32x1xf32>
    %20 = arith.divf %18, %19 : vector<32x1xf32>
    %cst_15 = arith.constant 9.99999974E-6 : f32
    %21 = vector.broadcast %cst_15 : f32 to vector<32x1xf32>
    %22 = arith.addf %20, %21 : vector<32x1xf32>
    %23 = math.rsqrt %22 : vector<32x1xf32>
    %24 = vector.broadcast %23 : vector<32x1xf32> to vector<32x32xf32>
    %25 = arith.mulf %15, %24 : vector<32x32xf32>
    %26 = vector.broadcast %8 : vector<1x32xf32> to vector<32x32xf32>
    %27 = arith.mulf %25, %26 : vector<32x32xf32>
    %28 = vector.broadcast %9 : vector<1x32xf32> to vector<32x32xf32>
    %29 = arith.addf %27, %28 : vector<32x32xf32>
    %c0_16 = arith.constant 0 : index
    %c0_17 = arith.constant 0 : index
    %30 = vector.load %arg6[%c0_16, %c0_17] : memref<32x32xf32, #tpu.memory_space<vmem>>, vector<32x32xf32>
    %cst_18 = arith.constant dense<0.000000e+00> : vector<32x32xf32>
    %31 = tpu.matmul %29, %30, %cst_18 {dimension_numbers = #tpu.dot_dimension_numbers<[1], [0], [0], [1], [0, 0, 1, 1], [], []>} : vector<32x32xf32>, vector<32x32xf32>, vector<32x32xf32> -> vector<32x32xf32>
    %c0_19 = arith.constant 0 : index
    %c0_20 = arith.constant 0 : index
    %32 = vector.load %arg7[%c0_19, %c0_20] : memref<1x32xf32, #tpu.memory_space<vmem>>, vector<1x32xf32>
    %33 = vector.broadcast %32 : vector<1x32xf32> to vector<32x32xf32>
    %34 = arith.addf %31, %33 : vector<32x32xf32>
    %cst_21 = arith.constant 5.000000e-01 : f32
    %35 = vector.broadcast %cst_21 : f32 to vector<32x32xf32>
    %36 = arith.mulf %35, %34 : vector<32x32xf32>
    %cst_22 = arith.constant 4.471500e-02 : f32
    %37 = vector.broadcast %cst_22 : f32 to vector<32x32xf32>
    %38 = arith.mulf %37, %34 : vector<32x32xf32>
    %39 = arith.mulf %38, %34 : vector<32x32xf32>
    %40 = arith.mulf %39, %34 : vector<32x32xf32>
    %41 = arith.addf %34, %40 : vector<32x32xf32>
    %cst_23 = arith.constant 0.797884583 : f32
    %42 = vector.broadcast %cst_23 : f32 to vector<32x32xf32>
    %43 = arith.mulf %42, %41 : vector<32x32xf32>
    %44 = math.tanh %43 : vector<32x32xf32>
    %cst_24 = arith.constant 1.000000e+00 : f32
    %45 = vector.broadcast %cst_24 : f32 to vector<32x32xf32>
    %46 = arith.addf %45, %44 : vector<32x32xf32>
    %47 = arith.mulf %36, %46 : vector<32x32xf32>
    %c0_25 = arith.constant 0 : index
    %c0_26 = arith.constant 0 : index
    %48 = vector.load %arg8[%c0_25, %c0_26] : memref<32x32xf32, #tpu.memory_space<vmem>>, vector<32x32xf32>
    %cst_27 = arith.constant dense<0.000000e+00> : vector<32x32xf32>
    %49 = tpu.matmul %47, %48, %cst_27 {dimension_numbers = #tpu.dot_dimension_numbers<[1], [0], [0], [1], [0, 0, 1, 1], [], []>} : vector<32x32xf32>, vector<32x32xf32>, vector<32x32xf32> -> vector<32x32xf32>
    %c0_28 = arith.constant 0 : index
    %c0_29 = arith.constant 0 : index
    %50 = vector.load %arg9[%c0_28, %c0_29] : memref<1x32xf32, #tpu.memory_space<vmem>>, vector<1x32xf32>
    %51 = vector.broadcast %50 : vector<1x32xf32> to vector<32x32xf32>
    %52 = arith.addf %49, %51 : vector<32x32xf32>
    %53 = arith.addf %29, %52 : vector<32x32xf32>
    %c0_30 = arith.constant 0 : index
    %c0_31 = arith.constant 0 : index
    %54 = vector.load %arg10[%c0_30, %c0_31] : memref<1x32xf32, #tpu.memory_space<vmem>>, vector<1x32xf32>
    %c0_32 = arith.constant 0 : index
    %c0_33 = arith.constant 0 : index
    %55 = vector.load %arg11[%c0_32, %c0_33] : memref<1x32xf32, #tpu.memory_space<vmem>>, vector<1x32xf32>
    %cst_34 = arith.constant dense<0.000000e+00> : vector<32xf32>
    %56 = vector.multi_reduction <add>, %53, %cst_34 [1] : vector<32x32xf32> to vector<32xf32>
    %57 = vector.shape_cast %56 : vector<32xf32> to vector<32x1xf32>
    %cst_35 = arith.constant 3.200000e+01 : f32
    %58 = vector.broadcast %cst_35 : f32 to vector<32x1xf32>
    %59 = arith.divf %57, %58 : vector<32x1xf32>
    %60 = vector.broadcast %59 : vector<32x1xf32> to vector<32x32xf32>
    %61 = arith.subf %53, %60 : vector<32x32xf32>
    %62 = arith.mulf %61, %61 : vector<32x32xf32>
    %cst_36 = arith.constant dense<0.000000e+00> : vector<32xf32>
    %63 = vector.multi_reduction <add>, %62, %cst_36 [1] : vector<32x32xf32> to vector<32xf32>
    %64 = vector.shape_cast %63 : vector<32xf32> to vector<32x1xf32>
    %cst_37 = arith.constant 3.200000e+01 : f32
    %65 = vector.broadcast %cst_37 : f32 to vector<32x1xf32>
    %66 = arith.divf %64, %65 : vector<32x1xf32>
    %cst_38 = arith.constant 9.99999974E-6 : f32
    %67 = vector.broadcast %cst_38 : f32 to vector<32x1xf32>
    %68 = arith.addf %66, %67 : vector<32x1xf32>
    %69 = math.rsqrt %68 : vector<32x1xf32>
    %70 = vector.broadcast %69 : vector<32x1xf32> to vector<32x32xf32>
    %71 = arith.mulf %61, %70 : vector<32x32xf32>
    %72 = vector.broadcast %54 : vector<1x32xf32> to vector<32x32xf32>
    %73 = arith.mulf %71, %72 : vector<32x32xf32>
    %74 = vector.broadcast %55 : vector<1x32xf32> to vector<32x32xf32>
    %75 = arith.addf %73, %74 : vector<32x32xf32>
    %c0_39 = arith.constant 0 : index
    %c0_40 = arith.constant 0 : index
    %76 = vector.load %arg12[%c0_39, %c0_40] : memref<32x32xf32, #tpu.memory_space<vmem>>, vector<32x32xf32>
    tpu.vector_store %arg12[%c0_39, %c0_40], %75 {strides = array<i32>} : memref<32x32xf32, #tpu.memory_space<vmem>>, vector<32x32xf32>,
    return
  }
}

</mosaic_0001>

<llo_original>
// kernel: cross_attention_block_forward.6
$region0: #{cross_attention_block_forward.6}
  #allocation0 [shape = 'u32[]', space=smem, size = 0x4, offset = 0x4, fixed_abs, tag = 'smem constant byte address 0x4 - core index']
  #allocation1 [shape = 'u32[144,128]{1,0:T(1,128)}', space=vmem, size = 0x12000, scoped, tag = 'internal scratch']
  %s0 = inlined_call_operand.vmem [shape: f32[32,32], index: 0, kind: input, shape index: {}]
  %s1 = inlined_call_operand.vmem [shape: f32[32,96], index: 1, kind: input, shape index: {}]
  %s2 = inlined_call_operand.vmem [shape: f32[1,96], index: 2, kind: input, shape index: {}]
  %s3 = inlined_call_operand.vmem [shape: f32[32,96], index: 3, kind: output, shape index: {}]
  %s4 = sld [smem:[#allocation0]]
  $region22: #{cross_attention_block_forward.6} parent=0
    _
  %s6 = ssub.s32 1, %s4
  %s7 = scalar_select 0, %s6, %s4
  // Predicated region
  $region2: #{cross_attention_block_forward.6} parent=0 // pred_check
    _
  $region3: #{cross_attention_block_forward.6} parent=0 // pred_check_branch
    %9 = sbr.rel (0) target = $region5
  $region4: #{cross_attention_block_forward.6} parent=0 // pred_region
    _
  $region5: #{cross_attention_block_forward.6} parent=0 // pred_fallthru
    _
  // Predicated region
  $region6: #{cross_attention_block_forward.6} parent=0 // pred_check
    _
  $region7: #{cross_attention_block_forward.6} parent=0 // pred_check_branch
    %11 = sbr.rel (0) target = $region9
  $region8: #{cross_attention_block_forward.6} parent=0 // pred_region
    _
  $region9: #{cross_attention_block_forward.6} parent=0 // pred_fallthru
    _
  // Predicated region
  $region10: #{cross_attention_block_forward.6} parent=0 // pred_check
    _
  $region11: #{cross_attention_block_forward.6} parent=0 // pred_check_branch
    %13 = sbr.rel (0) target = $region13
  $region12: #{cross_attention_block_forward.6} parent=0 // pred_region
    _
  $region13: #{cross_attention_block_forward.6} parent=0 // pred_fallthru
    _
  %v14 = vld [vmem:[%s0] sm:$0xff]
  %v15 = vld [vmem:[%s0 + $0x8] sm:$0xff]
  %v16 = vld [vmem:[%s0 + $0x10] sm:$0xff]
  %v17 = vld [vmem:[%s0 + $0x18] sm:$0xff]
  %v18 = vld [vmem:[%s1] sm:$0xff]
  %v19 = vld [vmem:[%s1 + $0x8] sm:$0xff]
  %v20 = vld [vmem:[%s1 + $0x10] sm:$0xff]
  %v21 = vld [vmem:[%s1 + $0x18] sm:$0xff]
  %v22 = vld [vmem:[%s2] sm:$0x1]
  %v24 = vlaneseq
  %v25 = vshrl.u32 %v24, 7
  %v26 = vsub.s32 0, %v25
  %v27 = vrot.slane %v22, %v26
  %vm29 = vcmask 261120
  %v31 = vsel %vm29, %v14, 0
  %v34 = vsel %vm29, %v15, 0
  %v37 = vsel %vm29, %v16, 0
  %v40 = vsel %vm29, %v17, 0
  %42 = vmatprep.subr.mxu0 0.0
  %43 = vmatpush1.msra.mxu0 %v18
  %44 = vmatprep.subr.mxu0 0.0
  %45 = vmatpush1.msra.mxu0 %v19
  %46 = vmatprep.subr.mxu0 0.0
  %47 = vmatpush1.msra.mxu0 %v20
  %48 = vmatprep.subr.mxu0 0.0
  %49 = vmatpush1.msra.mxu0 %v21
  %50 = vmatprep.subr.mxu0 0.0
  %51 = vmatpush1.msra.mxu0 0.0
  %52 = vmatprep.subr.mxu0 0.0
  %53 = vmatpush1.msra.mxu0 0.0
  %54 = vmatprep.subr.mxu0 0.0
  %55 = vmatpush1.msra.mxu0 0.0
  %56 = vmatprep.subr.mxu0 0.0
  %57 = vmatpush1.msra.mxu0 0.0
  %58 = vmatprep.subr.mxu0 0.0
  %59 = vmatpush1.msra.mxu0 0.0
  %60 = vmatprep.subr.mxu0 0.0
  %61 = vmatpush1.msra.mxu0 0.0
  %62 = vmatprep.subr.mxu0 0.0
  %63 = vmatpush1.msra.mxu0 0.0
  %64 = vmatprep.subr.mxu0 0.0
  %65 = vmatpush1.msra.mxu0 0.0
  %66 = vmatprep.subr.mxu0 0.0
  %67 = vmatpush1.msra.mxu0 0.0
  %68 = vmatprep.subr.mxu0 0.0
  %69 = vmatpush1.msra.mxu0 0.0
  %70 = vmatprep.subr.mxu0 0.0
  %71 = vmatpush1.msra.mxu0 0.0
  %72 = vmatprep.subr.mxu0 0.0
  %73 = vmatpush1.msra.mxu0 0.0
  %74 = vmatprep.subr.mxu0 0.0
  %75 = vmatpush1.msra.mxu0 0.0
  %76 = vmatprep.subr.mxu0 0.0
  %77 = vmatpush1.msra.mxu0 0.0
  %78 = vmatprep.subr.mxu0 0.0
  %79 = vmatpush1.msra.mxu0 0.0
  %80 = vmatprep.subr.mxu0 0.0
  %81 = vmatpush1.msra.mxu0 0.0
  %82 = vmatprep.subr.mxu0 0.0
  %83 = vmatpush1.msra.mxu0 0.0
  %84 = vmatprep.subr.mxu0 0.0
  %85 = vmatpush1.msra.mxu0 0.0
  %86 = vmatprep.subr.mxu0 0.0
  %87 = vmatpush1.msra.mxu0 0.0
  %88 = vmatprep.subr.mxu0 0.0
  %89 = vmatpush1.msra.mxu0 0.0
  %90 = vmatprep.subr.mxu0 0.0
  %91 = vmatpush1.msra.mxu0 0.0
  %92 = vmatprep.subr.mxu0 0.0
  %93 = vmatpush1.msra.mxu0 0.0
  %94 = vmatprep.subr.mxu0 0.0
  %95 = vmatpush1.msra.mxu0 0.0
  %96 = vmatprep.subr.mxu0 0.0
  %97 = vmatpush1.msra.mxu0 0.0
  %98 = vmatprep.subr.mxu0 0.0
  %99 = vmatpush1.msra.mxu0 0.0
  %100 = vmatprep.subr.mxu0 0.0
  %101 = vmatpush1.msra.mxu0 0.0
  %102 = vmatprep.subr.mxu0 0.0
  %103 = vmatpush1.msra.mxu0 0.0
  %104 = vmatprep.subr.mxu0 0.0
  %105 = vmatpush1.msra.mxu0 0.0
  %106 = vmatprep.mubr.f32.mxu0 0.0
  %107 = vmatmul.mubr.f32.gmra.mrb[0].mxu0 %v31
  %v108 = vpop.f32.mrb[0].mxu0
  %v109 = vadd.f32 %v27, %v108
  %v110 = vpop.f32.mrb[0].mxu0
  %111 = vmatprep.mubr.f32.mxu0 0.0
  %112 = vmatmul.mubr.f32.gmra.mrb[0].mxu0 %v34
  %v113 = vpop.f32.mrb[0].mxu0
  %v114 = vadd.f32 %v27, %v113
  %v115 = vpop.f32.mrb[0].mxu0
  %116 = vmatprep.mubr.f32.mxu0 0.0
  %117 = vmatmul.mubr.f32.gmra.mrb[0].mxu0 %v37
  %v118 = vpop.f32.mrb[0].mxu0
  %v119 = vadd.f32 %v27, %v118
  %v120 = vpop.f32.mrb[0].mxu0
  %121 = vmatprep.mubr.f32.mxu0 0.0
  %122 = vmatmul.mubr.f32.gmra.mrb[0].mxu0 %v40
  %v123 = vpop.f32.mrb[0].mxu0
  %v124 = vadd.f32 %v27, %v123
  %v125 = vpop.f32.mrb[0].mxu0
  %126 = vdwg.mxu0
  %vm127 = vcmask 785408
  %128 = vst.msk [vmem:[%s3] sm:$0xff] %vm127, %v109
  %129 = vst.msk [vmem:[%s3 + $0x8] sm:$0xff] %vm127, %v114
  %130 = vst.msk [vmem:[%s3 + $0x10] sm:$0xff] %vm127, %v119
  %131 = vst.msk [vmem:[%s3 + $0x18] sm:$0xff] %vm127, %v124
  // Predicated region
  $region14: #{cross_attention_block_forward.6} parent=0 // pred_check
    _
  $region15: #{cross_attention_block_forward.6} parent=0 // pred_check_branch
    %133 = sbr.rel (0) target = $region17
  $region16: #{cross_attention_block_forward.6} parent=0 // pred_region
    _
  $region17: #{cross_attention_block_forward.6} parent=0 // pred_fallthru
    _
  // Predicated region
  $region18: #{cross_attention_block_forward.6} parent=0 // pred_check
    _
  $region19: #{cross_attention_block_forward.6} parent=0 // pred_check_branch
    %135 = sbr.rel (0) target = $region21
  $region20: #{cross_attention_block_forward.6} parent=0 // pred_region
    _
  $region21: #{cross_attention_block_forward.6} parent=0 // pred_fallthru
    _

// kernel: cross_attention_block_forward.8
$region0: #{cross_attention_block_forward.8}
  #allocation0 [shape = 'u32[]', space=smem, size = 0x4, offset = 0x4, fixed_abs, tag = 'smem constant byte address 0x4 - core index']
  #allocation1 [shape = 'u32[144,128]{1,0:T(1,128)}', space=vmem, size = 0x12000, scoped, tag = 'internal scratch']
  %s0 = inlined_call_operand.vmem [shape: f32[32,32], index: 0, kind: input, shape index: {}]
  %s1 = inlined_call_operand.vmem [shape: f32[32,32], index: 1, kind: input, shape index: {}]
  %s2 = inlined_call_operand.vmem [shape: f32[32,32], index: 2, kind: input, shape index: {}]
  %s3 = inlined_call_operand.vmem [shape: f32[1,32], index: 3, kind: input, shape index: {}]
  %s4 = inlined_call_operand.vmem [shape: f32[1,32], index: 4, kind: input, shape index: {}]
  %s5 = inlined_call_operand.vmem [shape: f32[1,32], index: 5, kind: input, shape index: {}]
  %s6 = inlined_call_operand.vmem [shape: f32[32,32], index: 6, kind: input, shape index: {}]
  %s7 = inlined_call_operand.vmem [shape: f32[1,32], index: 7, kind: input, shape index: {}]
  %s8 = inlined_call_operand.vmem [shape: f32[32,32], index: 8, kind: output, shape index: {0}]
  %s9 = inlined_call_operand.vmem [shape: f32[32,32], index: 9, kind: output, shape index: {1}]
  %10 = xla_tuple %s8, %s9
  %s11 = sld [smem:[#allocation0]]
  $region50: #{cross_attention_block_forward.8} parent=0
    _
  %s13 = ssub.s32 1, %s11
  %s14 = scalar_select 0, %s13, %s11
  // Predicated region
  $region2: #{cross_attention_block_forward.8} parent=0 // pred_check
    _
  $region3: #{cross_attention_block_forward.8} parent=0 // pred_check_branch
    %16 = sbr.rel (0) target = $region5
  $region4: #{cross_attention_block_forward.8} parent=0 // pred_region
    _
  $region5: #{cross_attention_block_forward.8} parent=0 // pred_fallthru
    _
  // Predicated region
  $region6: #{cross_attention_block_forward.8} parent=0 // pred_check
    _
  $region7: #{cross_attention_block_forward.8} parent=0 // pred_check_branch
    %18 = sbr.rel (0) target = $region9
  $region8: #{cross_attention_block_forward.8} parent=0 // pred_region
    _
  $region9: #{cross_attention_block_forward.8} parent=0 // pred_fallthru
    _
  // Predicated region
  $region10: #{cross_attention_block_forward.8} parent=0 // pred_check
    _
  $region11: #{cross_attention_block_forward.8} parent=0 // pred_check_branch
    %20 = sbr.rel (0) target = $region13
  $region12: #{cross_attention_block_forward.8} parent=0 // pred_region
    _
  $region13: #{cross_attention_block_forward.8} parent=0 // pred_fallthru
    _
  // Predicated region
  $region14: #{cross_attention_block_forward.8} parent=0 // pred_check
    _
  $region15: #{cross_attention_block_forward.8} parent=0 // pred_check_branch
    %22 = sbr.rel (0) target = $region17
  $region16: #{cross_attention_block_forward.8} parent=0 // pred_region
    _
  $region17: #{cross_attention_block_forward.8} parent=0 // pred_fallthru
    _
  // Predicated region
  $region18: #{cross_attention_block_forward.8} parent=0 // pred_check
    _
  $region19: #{cross_attention_block_forward.8} parent=0 // pred_check_branch
    %24 = sbr.rel (0) target = $region21
  $region20: #{cross_attention_block_forward.8} parent=0 // pred_region
    _
  $region21: #{cross_attention_block_forward.8} parent=0 // pred_fallthru
    _
  // Predicated region
  $region22: #{cross_attention_block_forward.8} parent=0 // pred_check
    _
  $region23: #{cross_attention_block_forward.8} parent=0 // pred_check_branch
    %26 = sbr.rel (0) target = $region25
  $region24: #{cross_attention_block_forward.8} parent=0 // pred_region
    _
  $region25: #{cross_attention_block_forward.8} parent=0 // pred_fallthru
    _
  // Predicated region
  $region26: #{cross_attention_block_forward.8} parent=0 // pred_check
    _
  $region27: #{cross_attention_block_forward.8} parent=0 // pred_check_branch
    %28 = sbr.rel (0) target = $region29
  $region28: #{cross_attention_block_forward.8} parent=0 // pred_region
    _
  $region29: #{cross_attention_block_forward.8} parent=0 // pred_fallthru
    _
  // Predicated region
  $region30: #{cross_attention_block_forward.8} parent=0 // pred_check
    _
  $region31: #{cross_attention_block_forward.8} parent=0 // pred_check_branch
    %30 = sbr.rel (0) target = $region33
  $region32: #{cross_attention_block_forward.8} parent=0 // pred_region
    _
  $region33: #{cross_attention_block_forward.8} parent=0 // pred_fallthru
    _
  %v31 = vld [vmem:[%s0] sm:$0xff]
  %v32 = vld [vmem:[%s0 + $0x8] sm:$0xff]
  %v33 = vld [vmem:[%s0 + $0x10] sm:$0xff]
  %v34 = vld [vmem:[%s0 + $0x18] sm:$0xff]
  %v35 = vld [vmem:[%s2] sm:$0xff]
  %v36 = vld [vmem:[%s2 + $0x8] sm:$0xff]
  %v37 = vld [vmem:[%s2 + $0x10] sm:$0xff]
  %v38 = vld [vmem:[%s2 + $0x18] sm:$0xff]
  %v39 = vld [vmem:[%s3] sm:$0x1]
  %v41 = vlaneseq
  %v42 = vshrl.u32 %v41, 7
  %v43 = vsub.s32 0, %v42
  %v44 = vrot.slane %v39, %v43
  %vm46 = vcmask 261120
  %v48 = vsel %vm46, %v31, 0
  %v51 = vsel %vm46, %v32, 0
  %v54 = vsel %vm46, %v33, 0
  %v57 = vsel %vm46, %v34, 0
  %59 = vmatprep.subr.mxu0 0.0
  %60 = vmatpush1.msra.mxu0 %v35
  %61 = vmatprep.subr.mxu0 0.0
  %62 = vmatpush1.msra.mxu0 %v36
  %63 = vmatprep.subr.mxu0 0.0
  %64 = vmatpush1.msra.mxu0 %v37
  %65 = vmatprep.subr.mxu0 0.0
  %66 = vmatpush1.msra.mxu0 %v38
  %67 = vmatprep.subr.mxu0 0.0
  %68 = vmatpush1.msra.mxu0 0.0
  %69 = vmatprep.subr.mxu0 0.0
  %70 = vmatpush1.msra.mxu0 0.0
  %71 = vmatprep.subr.mxu0 0.0
  %72 = vmatpush1.msra.mxu0 0.0
  %73 = vmatprep.subr.mxu0 0.0
  %74 = vmatpush1.msra.mxu0 0.0
  %75 = vmatprep.subr.mxu0 0.0
  %76 = vmatpush1.msra.mxu0 0.0
  %77 = vmatprep.subr.mxu0 0.0
  %78 = vmatpush1.msra.mxu0 0.0
  %79 = vmatprep.subr.mxu0 0.0
  %80 = vmatpush1.msra.mxu0 0.0
  %81 = vmatprep.subr.mxu0 0.0
  %82 = vmatpush1.msra.mxu0 0.0
  %83 = vmatprep.subr.mxu0 0.0
  %84 = vmatpush1.msra.mxu0 0.0
  %85 = vmatprep.subr.mxu0 0.0
  %86 = vmatpush1.msra.mxu0 0.0
  %87 = vmatprep.subr.mxu0 0.0
  %88 = vmatpush1.msra.mxu0 0.0
  %89 = vmatprep.subr.mxu0 0.0
  %90 = vmatpush1.msra.mxu0 0.0
  %91 = vmatprep.subr.mxu0 0.0
  %92 = vmatpush1.msra.mxu0 0.0
  %93 = vmatprep.subr.mxu0 0.0
  %94 = vmatpush1.msra.mxu0 0.0
  %95 = vmatprep.subr.mxu0 0.0
  %96 = vmatpush1.msra.mxu0 0.0
  %97 = vmatprep.subr.mxu0 0.0
  %98 = vmatpush1.msra.mxu0 0.0
  %99 = vmatprep.subr.mxu0 0.0
  %100 = vmatpush1.msra.mxu0 0.0
  %101 = vmatprep.subr.mxu0 0.0
  %102 = vmatpush1.msra.mxu0 0.0
  %103 = vmatprep.subr.mxu0 0.0
  %104 = vmatpush1.msra.mxu0 0.0
  %105 = vmatprep.subr.mxu0 0.0
  %106 = vmatpush1.msra.mxu0 0.0
  %107 = vmatprep.subr.mxu0 0.0
  %108 = vmatpush1.msra.mxu0 0.0
  %109 = vmatprep.subr.mxu0 0.0
  %110 = vmatpush1.msra.mxu0 0.0
  %111 = vmatprep.subr.mxu0 0.0
  %112 = vmatpush1.msra.mxu0 0.0
  %113 = vmatprep.subr.mxu0 0.0
  %114 = vmatpush1.msra.mxu0 0.0
  %115 = vmatprep.subr.mxu0 0.0
  %116 = vmatpush1.msra.mxu0 0.0
  %117 = vmatprep.subr.mxu0 0.0
  %118 = vmatpush1.msra.mxu0 0.0
  %119 = vmatprep.subr.mxu0 0.0
  %120 = vmatpush1.msra.mxu0 0.0
  %121 = vmatprep.subr.mxu0 0.0
  %122 = vmatpush1.msra.mxu0 0.0
  %123 = vmatprep.mubr.f32.mxu0 0.0
  %124 = vmatmul.mubr.f32.gmra.mrb[0].mxu0 %v48
  %v125 = vpop.f32.mrb[0].mxu0
  %v126 = vadd.f32 %v44, %v125
  %v127 = vpop.f32.mrb[0].mxu0
  %128 = vmatprep.mubr.f32.mxu0 0.0
  %129 = vmatmul.mubr.f32.gmra.mrb[0].mxu0 %v51
  %v130 = vpop.f32.mrb[0].mxu0
  %v131 = vadd.f32 %v44, %v130
  %v132 = vpop.f32.mrb[0].mxu0
  %133 = vmatprep.mubr.f32.mxu0 0.0
  %134 = vmatmul.mubr.f32.gmra.mrb[0].mxu0 %v54
  %v135 = vpop.f32.mrb[0].mxu0
  %v136 = vadd.f32 %v44, %v135
  %v137 = vpop.f32.mrb[0].mxu0
  %138 = vmatprep.mubr.f32.mxu0 0.0
  %139 = vmatmul.mubr.f32.gmra.mrb[0].mxu0 %v57
  %v140 = vpop.f32.mrb[0].mxu0
  %v141 = vadd.f32 %v44, %v140
  %v142 = vpop.f32.mrb[0].mxu0
  %143 = vdwg.mxu0
  %v144 = vld [vmem:[%s1] sm:$0xff]
  %v145 = vld [vmem:[%s1 + $0x8] sm:$0xff]
  %v146 = vld [vmem:[%s1 + $0x10] sm:$0xff]
  %v147 = vld [vmem:[%s1 + $0x18] sm:$0xff]
  %v148 = vadd.f32 %v144, %v126
  %v149 = vadd.f32 %v145, %v131
  %v150 = vadd.f32 %v146, %v136
  %v151 = vadd.f32 %v147, %v141
  %v152 = vld [vmem:[%s4] sm:$0x1]
  %v153 = vld [vmem:[%s5] sm:$0x1]
  %v154 = vsel %vm46, %v148, 0.0
  %155 = vadd.xlane.f32.xlu0 %v154
  %v156 = vpop.xlane.xlu0 %155
  %v157 = vsel %vm46, %v149, 0.0
  %158 = vadd.xlane.f32.xlu0 %v157
  %v159 = vpop.xlane.xlu0 %158
  %v160 = vsel %vm46, %v150, 0.0
  %161 = vadd.xlane.f32.xlu0 %v160
  %v162 = vpop.xlane.xlu0 %161
  %v163 = vsel %vm46, %v151, 0.0
  %164 = vadd.xlane.f32.xlu0 %v163
  %v165 = vpop.xlane.xlu0 %164
  %v166 = vrcp.pop 32.0
  %v167 = vmul.f32 %v156, %v166
  %v168 = vmul.f32 %v159, %v166
  %v169 = vmul.f32 %v162, %v166
  %v170 = vmul.f32 %v165, %v166
  %v171 = vsub.f32 %v148, %v167
  %v172 = vsub.f32 %v149, %v168
  %v173 = vsub.f32 %v150, %v169
  %v174 = vsub.f32 %v151, %v170
  %v175 = vmul.f32 %v171, %v171
  %v176 = vmul.f32 %v172, %v172
  %v177 = vmul.f32 %v173, %v173
  %v178 = vmul.f32 %v174, %v174
  %v179 = vsel %vm46, %v175, 0.0
  %180 = vadd.xlane.f32.xlu0 %v179
  %v181 = vpop.xlane.xlu0 %180
  %v182 = vsel %vm46, %v176, 0.0
  %183 = vadd.xlane.f32.xlu0 %v182
  %v184 = vpop.xlane.xlu0 %183
  %v185 = vsel %vm46, %v177, 0.0
  %186 = vadd.xlane.f32.xlu0 %v185
  %v187 = vpop.xlane.xlu0 %186
  %v188 = vsel %vm46, %v178, 0.0
  %189 = vadd.xlane.f32.xlu0 %v188
  %v190 = vpop.xlane.xlu0 %189
  %v191 = vmul.f32 %v181, %v166
  %v192 = vmul.f32 %v184, %v166
  %v193 = vmul.f32 %v187, %v166
  %v194 = vmul.f32 %v190, %v166
  %v195 = vadd.f32 %v191, 1e-05
  %v196 = vadd.f32 %v192, 1e-05
  %v197 = vadd.f32 %v193, 1e-05
  %v198 = vadd.f32 %v194, 1e-05
  %v199 = vrsqrt.pop %v195
  %v200 = vrsqrt.pop %v196
  %v201 = vrsqrt.pop %v197
  %v202 = vrsqrt.pop %v198
  %v203 = vmul.f32 %v171, %v199
  %v204 = vmul.f32 %v172, %v200
  %v205 = vmul.f32 %v173, %v201
  %v206 = vmul.f32 %v174, %v202
  %v208 = vlaneseq
  %v209 = vshrl.u32 %v208, 7
  %v210 = vsub.s32 0, %v209
  %v211 = vrot.slane %v152, %v210
  %v213 = vmul.f32 %v203, %v211
  %v214 = vmul.f32 %v204, %v211
  %v215 = vmul.f32 %v205, %v211
  %v216 = vmul.f32 %v206, %v211
  %v218 = vlaneseq
  %v219 = vshrl.u32 %v218, 7
  %v220 = vsub.s32 0, %v219
  %v221 = vrot.slane %v153, %v220
  %v223 = vadd.f32 %v213, %v221
  %v224 = vadd.f32 %v214, %v221
  %v225 = vadd.f32 %v215, %v221
  %v226 = vadd.f32 %v216, %v221
  %227 = vst.msk [vmem:[%s8] sm:$0xff] %vm46, %v223
  %228 = vst.msk [vmem:[%s8 + $0x8] sm:$0xff] %vm46, %v224
  %229 = vst.msk [vmem:[%s8 + $0x10] sm:$0xff] %vm46, %v225
  %230 = vst.msk [vmem:[%s8 + $0x18] sm:$0xff] %vm46, %v226
  %v231 = vld [vmem:[%s6] sm:$0xff]
  %v232 = vld [vmem:[%s6 + $0x8] sm:$0xff]
  %v233 = vld [vmem:[%s6 + $0x10] sm:$0xff]
  %v234 = vld [vmem:[%s6 + $0x18] sm:$0xff]
  %v235 = vld [vmem:[%s7] sm:$0x1]
  %v237 = vlaneseq
  %v238 = vshrl.u32 %v237, 7
  %v239 = vsub.s32 0, %v238
  %v240 = vrot.slane %v235, %v239
  %v243 = vsel %vm46, %v223, 0
  %v246 = vsel %vm46, %v224, 0
  %v249 = vsel %vm46, %v225, 0
  %v252 = vsel %vm46, %v226, 0
  %254 = vmatprep.subr.mxu0 0.0
  %255 = vmatpush1.msra.mxu0 %v231
  %256 = vmatprep.subr.mxu0 0.0
  %257 = vmatpush1.msra.mxu0 %v232
  %258 = vmatprep.subr.mxu0 0.0
  %259 = vmatpush1.msra.mxu0 %v233
  %260 = vmatprep.subr.mxu0 0.0
  %261 = vmatpush1.msra.mxu0 %v234
  %262 = vmatprep.subr.mxu0 0.0
  %263 = vmatpush1.msra.mxu0 0.0
  %264 = vmatprep.subr.mxu0 0.0
  %265 = vmatpush1.msra.mxu0 0.0
  %266 = vmatprep.subr.mxu0 0.0
  %267 = vmatpush1.msra.mxu0 0.0
  %268 = vmatprep.subr.mxu0 0.0
  %269 = vmatpush1.msra.mxu0 0.0
  %270 = vmatprep.subr.mxu0 0.0
  %271 = vmatpush1.msra.mxu0 0.0
  %272 = vmatprep.subr.mxu0 0.0
  %273 = vmatpush1.msra.mxu0 0.0
  %274 = vmatprep.subr.mxu0 0.0
  %275 = vmatpush1.msra.mxu0 0.0
  %276 = vmatprep.subr.mxu0 0.0
  %277 = vmatpush1.msra.mxu0 0.0
  %278 = vmatprep.subr.mxu0 0.0
  %279 = vmatpush1.msra.mxu0 0.0
  %280 = vmatprep.subr.mxu0 0.0
  %281 = vmatpush1.msra.mxu0 0.0
  %282 = vmatprep.subr.mxu0 0.0
  %283 = vmatpush1.msra.mxu0 0.0
  %284 = vmatprep.subr.mxu0 0.0
  %285 = vmatpush1.msra.mxu0 0.0
  %286 = vmatprep.subr.mxu0 0.0
  %287 = vmatpush1.msra.mxu0 0.0
  %288 = vmatprep.subr.mxu0 0.0
  %289 = vmatpush1.msra.mxu0 0.0
  %290 = vmatprep.subr.mxu0 0.0
  %291 = vmatpush1.msra.mxu0 0.0
  %292 = vmatprep.subr.mxu0 0.0
  %293 = vmatpush1.msra.mxu0 0.0
  %294 = vmatprep.subr.mxu0 0.0
  %295 = vmatpush1.msra.mxu0 0.0
  %296 = vmatprep.subr.mxu0 0.0
  %297 = vmatpush1.msra.mxu0 0.0
  %298 = vmatprep.subr.mxu0 0.0
  %299 = vmatpush1.msra.mxu0 0.0
  %300 = vmatprep.subr.mxu0 0.0
  %301 = vmatpush1.msra.mxu0 0.0
  %302 = vmatprep.subr.mxu0 0.0
  %303 = vmatpush1.msra.mxu0 0.0
  %304 = vmatprep.subr.mxu0 0.0
  %305 = vmatpush1.msra.mxu0 0.0
  %306 = vmatprep.subr.mxu0 0.0
  %307 = vmatpush1.msra.mxu0 0.0
  %308 = vmatprep.subr.mxu0 0.0
  %309 = vmatpush1.msra.mxu0 0.0
  %310 = vmatprep.subr.mxu0 0.0
  %311 = vmatpush1.msra.mxu0 0.0
  %312 = vmatprep.subr.mxu0 0.0
  %313 = vmatpush1.msra.mxu0 0.0
  %314 = vmatprep.subr.mxu0 0.0
  %315 = vmatpush1.msra.mxu0 0.0
  %316 = vmatprep.subr.mxu0 0.0
  %317 = vmatpush1.msra.mxu0 0.0
  %318 = vmatprep.mubr.f32.mxu0 0.0
  %319 = vmatmul.mubr.f32.gmra.mrb[0].mxu0 %v243
  %v320 = vpop.f32.mrb[0].mxu0
  %v321 = vadd.f32 %v240, %v320
  %v322 = vpop.f32.mrb[0].mxu0
  %323 = vmatprep.mubr.f32.mxu0 0.0
  %324 = vmatmul.mubr.f32.gmra.mrb[0].mxu0 %v246
  %v325 = vpop.f32.mrb[0].mxu0
  %v326 = vadd.f32 %v240, %v325
  %v327 = vpop.f32.mrb[0].mxu0
  %328 = vmatprep.mubr.f32.mxu0 0.0
  %329 = vmatmul.mubr.f32.gmra.mrb[0].mxu0 %v249
  %v330 = vpop.f32.mrb[0].mxu0
  %v331 = vadd.f32 %v240, %v330
  %v332 = vpop.f32.mrb[0].mxu0
  %333 = vmatprep.mubr.f32.mxu0 0.0
  %334 = vmatmul.mubr.f32.gmra.mrb[0].mxu0 %v252
  %v335 = vpop.f32.mrb[0].mxu0
  %v336 = vadd.f32 %v240, %v335
  %v337 = vpop.f32.mrb[0].mxu0
  %338 = vdwg.mxu0
  %339 = vst.msk [vmem:[%s9] sm:$0xff] %vm46, %v321
  %340 = vst.msk [vmem:[%s9 + $0x8] sm:$0xff] %vm46, %v326
  %341 = vst.msk [vmem:[%s9 + $0x10] sm:$0xff] %vm46, %v331
  %342 = vst.msk [vmem:[%s9 + $0x18] sm:$0xff] %vm46, %v336
  // Predicated region
  $region34: #{cross_attention_block_forward.8} parent=0 // pred_check
    _
  $region35: #{cross_attention_block_forward.8} parent=0 // pred_check_branch
    %344 = sbr.rel (0) target = $region37
  $region36: #{cross_attention_block_forward.8} parent=0 // pred_region
    _
  $region37: #{cross_attention_block_forward.8} parent=0 // pred_fallthru
    _
  // Predicated region
  $region38: #{cross_attention_block_forward.8} parent=0 // pred_check
    _
  $region39: #{cross_attention_block_forward.8} parent=0 // pred_check_branch
    %346 = sbr.rel (0) target = $region41
  $region40: #{cross_attention_block_forward.8} parent=0 // pred_region
    _
  $region41: #{cross_attention_block_forward.8} parent=0 // pred_fallthru
    _
  // Predicated region
  $region42: #{cross_attention_block_forward.8} parent=0 // pred_check
    _
  $region43: #{cross_attention_block_forward.8} parent=0 // pred_check_branch
    %348 = sbr.rel (0) target = $region45
  $region44: #{cross_attention_block_forward.8} parent=0 // pred_region
    _
  $region45: #{cross_attention_block_forward.8} parent=0 // pred_fallthru
    _
  // Predicated region
  $region46: #{cross_attention_block_forward.8} parent=0 // pred_check
    _
  $region47: #{cross_attention_block_forward.8} parent=0 // pred_check_branch
    %350 = sbr.rel (0) target = $region49
  $region48: #{cross_attention_block_forward.8} parent=0 // pred_region
    _
  $region49: #{cross_attention_block_forward.8} parent=0 // pred_fallthru
    _

// kernel: cross_attention_block_forward.9
$region0: #{cross_attention_block_forward.9}
  #allocation0 [shape = 'u32[]', space=smem, size = 0x4, offset = 0x4, fixed_abs, tag = 'smem constant byte address 0x4 - core index']
  #allocation1 [shape = 'u32[144,128]{1,0:T(1,128)}', space=vmem, size = 0x12000, scoped, tag = 'internal scratch']
  %s0 = inlined_call_operand.vmem [shape: f32[32,32], index: 0, kind: input, shape index: {}]
  %s1 = inlined_call_operand.vmem [shape: f32[32,64], index: 1, kind: input, shape index: {}]
  %s2 = inlined_call_operand.vmem [shape: f32[1,64], index: 2, kind: input, shape index: {}]
  %s3 = inlined_call_operand.vmem [shape: f32[32,64], index: 3, kind: output, shape index: {}]
  %s4 = sld [smem:[#allocation0]]
  $region22: #{cross_attention_block_forward.9} parent=0
    _
  %s6 = ssub.s32 1, %s4
  %s7 = scalar_select 0, %s6, %s4
  // Predicated region
  $region2: #{cross_attention_block_forward.9} parent=0 // pred_check
    _
  $region3: #{cross_attention_block_forward.9} parent=0 // pred_check_branch
    %9 = sbr.rel (0) target = $region5
  $region4: #{cross_attention_block_forward.9} parent=0 // pred_region
    _
  $region5: #{cross_attention_block_forward.9} parent=0 // pred_fallthru
    _
  // Predicated region
  $region6: #{cross_attention_block_forward.9} parent=0 // pred_check
    _
  $region7: #{cross_attention_block_forward.9} parent=0 // pred_check_branch
    %11 = sbr.rel (0) target = $region9
  $region8: #{cross_attention_block_forward.9} parent=0 // pred_region
    _
  $region9: #{cross_attention_block_forward.9} parent=0 // pred_fallthru
    _
  // Predicated region
  $region10: #{cross_attention_block_forward.9} parent=0 // pred_check
    _
  $region11: #{cross_attention_block_forward.9} parent=0 // pred_check_branch
    %13 = sbr.rel (0) target = $region13
  $region12: #{cross_attention_block_forward.9} parent=0 // pred_region
    _
  $region13: #{cross_attention_block_forward.9} parent=0 // pred_fallthru
    _
  %v14 = vld [vmem:[%s0] sm:$0xff]
  %v15 = vld [vmem:[%s0 + $0x8] sm:$0xff]
  %v16 = vld [vmem:[%s0 + $0x10] sm:$0xff]
  %v17 = vld [vmem:[%s0 + $0x18] sm:$0xff]
  %v18 = vld [vmem:[%s1] sm:$0xff]
  %v19 = vld [vmem:[%s1 + $0x8] sm:$0xff]
  %v20 = vld [vmem:[%s1 + $0x10] sm:$0xff]
  %v21 = vld [vmem:[%s1 + $0x18] sm:$0xff]
  %v22 = vld [vmem:[%s2] sm:$0x1]
  %v24 = vlaneseq
  %v25 = vshrl.u32 %v24, 7
  %v26 = vsub.s32 0, %v25
  %v27 = vrot.slane %v22, %v26
  %vm29 = vcmask 261120
  %v31 = vsel %vm29, %v14, 0
  %v34 = vsel %vm29, %v15, 0
  %v37 = vsel %vm29, %v16, 0
  %v40 = vsel %vm29, %v17, 0
  %42 = vmatprep.subr.mxu0 0.0
  %43 = vmatpush1.msra.mxu0 %v18
  %44 = vmatprep.subr.mxu0 0.0
  %45 = vmatpush1.msra.mxu0 %v19
  %46 = vmatprep.subr.mxu0 0.0
  %47 = vmatpush1.msra.mxu0 %v20
  %48 = vmatprep.subr.mxu0 0.0
  %49 = vmatpush1.msra.mxu0 %v21
  %50 = vmatprep.subr.mxu0 0.0
  %51 = vmatpush1.msra.mxu0 0.0
  %52 = vmatprep.subr.mxu0 0.0
  %53 = vmatpush1.msra.mxu0 0.0
  %54 = vmatprep.subr.mxu0 0.0
  %55 = vmatpush1.msra.mxu0 0.0
  %56 = vmatprep.subr.mxu0 0.0
  %57 = vmatpush1.msra.mxu0 0.0
  %58 = vmatprep.subr.mxu0 0.0
  %59 = vmatpush1.msra.mxu0 0.0
  %60 = vmatprep.subr.mxu0 0.0
  %61 = vmatpush1.msra.mxu0 0.0
  %62 = vmatprep.subr.mxu0 0.0
  %63 = vmatpush1.msra.mxu0 0.0
  %64 = vmatprep.subr.mxu0 0.0
  %65 = vmatpush1.msra.mxu0 0.0
  %66 = vmatprep.subr.mxu0 0.0
  %67 = vmatpush1.msra.mxu0 0.0
  %68 = vmatprep.subr.mxu0 0.0
  %69 = vmatpush1.msra.mxu0 0.0
  %70 = vmatprep.subr.mxu0 0.0
  %71 = vmatpush1.msra.mxu0 0.0
  %72 = vmatprep.subr.mxu0 0.0
  %73 = vmatpush1.msra.mxu0 0.0
  %74 = vmatprep.subr.mxu0 0.0
  %75 = vmatpush1.msra.mxu0 0.0
  %76 = vmatprep.subr.mxu0 0.0
  %77 = vmatpush1.msra.mxu0 0.0
  %78 = vmatprep.subr.mxu0 0.0
  %79 = vmatpush1.msra.mxu0 0.0
  %80 = vmatprep.subr.mxu0 0.0
  %81 = vmatpush1.msra.mxu0 0.0
  %82 = vmatprep.subr.mxu0 0.0
  %83 = vmatpush1.msra.mxu0 0.0
  %84 = vmatprep.subr.mxu0 0.0
  %85 = vmatpush1.msra.mxu0 0.0
  %86 = vmatprep.subr.mxu0 0.0
  %87 = vmatpush1.msra.mxu0 0.0
  %88 = vmatprep.subr.mxu0 0.0
  %89 = vmatpush1.msra.mxu0 0.0
  %90 = vmatprep.subr.mxu0 0.0
  %91 = vmatpush1.msra.mxu0 0.0
  %92 = vmatprep.subr.mxu0 0.0
  %93 = vmatpush1.msra.mxu0 0.0
  %94 = vmatprep.subr.mxu0 0.0
  %95 = vmatpush1.msra.mxu0 0.0
  %96 = vmatprep.subr.mxu0 0.0
  %97 = vmatpush1.msra.mxu0 0.0
  %98 = vmatprep.subr.mxu0 0.0
  %99 = vmatpush1.msra.mxu0 0.0
  %100 = vmatprep.subr.mxu0 0.0
  %101 = vmatpush1.msra.mxu0 0.0
  %102 = vmatprep.subr.mxu0 0.0
  %103 = vmatpush1.msra.mxu0 0.0
  %104 = vmatprep.subr.mxu0 0.0
  %105 = vmatpush1.msra.mxu0 0.0
  %106 = vmatprep.mubr.f32.mxu0 0.0
  %107 = vmatmul.mubr.f32.gmra.mrb[0].mxu0 %v31
  %v108 = vpop.f32.mrb[0].mxu0
  %v109 = vadd.f32 %v27, %v108
  %v110 = vpop.f32.mrb[0].mxu0
  %111 = vmatprep.mubr.f32.mxu0 0.0
  %112 = vmatmul.mubr.f32.gmra.mrb[0].mxu0 %v34
  %v113 = vpop.f32.mrb[0].mxu0
  %v114 = vadd.f32 %v27, %v113
  %v115 = vpop.f32.mrb[0].mxu0
  %116 = vmatprep.mubr.f32.mxu0 0.0
  %117 = vmatmul.mubr.f32.gmra.mrb[0].mxu0 %v37
  %v118 = vpop.f32.mrb[0].mxu0
  %v119 = vadd.f32 %v27, %v118
  %v120 = vpop.f32.mrb[0].mxu0
  %121 = vmatprep.mubr.f32.mxu0 0.0
  %122 = vmatmul.mubr.f32.gmra.mrb[0].mxu0 %v40
  %v123 = vpop.f32.mrb[0].mxu0
  %v124 = vadd.f32 %v27, %v123
  %v125 = vpop.f32.mrb[0].mxu0
  %126 = vdwg.mxu0
  %vm127 = vcmask 523264
  %128 = vst.msk [vmem:[%s3] sm:$0xff] %vm127, %v109
  %129 = vst.msk [vmem:[%s3 + $0x8] sm:$0xff] %vm127, %v114
  %130 = vst.msk [vmem:[%s3 + $0x10] sm:$0xff] %vm127, %v119
  %131 = vst.msk [vmem:[%s3 + $0x18] sm:$0xff] %vm127, %v124
  // Predicated region
  $region14: #{cross_attention_block_forward.9} parent=0 // pred_check
    _
  $region15: #{cross_attention_block_forward.9} parent=0 // pred_check_branch
    %133 = sbr.rel (0) target = $region17
  $region16: #{cross_attention_block_forward.9} parent=0 // pred_region
    _
  $region17: #{cross_attention_block_forward.9} parent=0 // pred_fallthru
    _
  // Predicated region
  $region18: #{cross_attention_block_forward.9} parent=0 // pred_check
    _
  $region19: #{cross_attention_block_forward.9} parent=0 // pred_check_branch
    %135 = sbr.rel (0) target = $region21
  $region20: #{cross_attention_block_forward.9} parent=0 // pred_region
    _
  $region21: #{cross_attention_block_forward.9} parent=0 // pred_fallthru
    _

// kernel: cross_attention_block_forward.7
$region0: #{cross_attention_block_forward.7}
  #allocation0 [shape = 'u32[]', space=smem, size = 0x4, offset = 0x4, fixed_abs, tag = 'smem constant byte address 0x4 - core index']
  #allocation1 [shape = 'u32[144,128]{1,0:T(1,128)}', space=vmem, size = 0x12000, scoped, tag = 'internal scratch']
  %s0 = inlined_call_operand.vmem [shape: f32[8,16,8], index: 0, kind: input, shape index: {}]
  %s1 = inlined_call_operand.vmem [shape: f32[8,16,8], index: 1, kind: input, shape index: {}]
  %s2 = inlined_call_operand.vmem [shape: f32[8,16,8], index: 2, kind: input, shape index: {}]
  %s3 = inlined_call_operand.vmem [shape: s32[2,4,16], index: 3, kind: input, shape index: {}]
  %s4 = inlined_call_operand.vmem [shape: f32[8,16,8], index: 4, kind: output, shape index: {}]
  %s5 = sld [smem:[#allocation0]]
  $region49: #{cross_attention_block_forward.7} parent=0
    _
  %s7 = ssub.s32 1, %s5
  %s8 = scalar_select 0, %s7, %s5
  loop: start=0, step=1, limit=4
  $region2: #{cross_attention_block_forward.7} parent=0 // loop_pre_header
    _
  $region3: #{cross_attention_block_forward.7} parent=0 // loop_header
    %s10 = sphi 0, %s14
    %p11 = scmp.ge.s32.totalorder %s10, 4
    %s20 = sphi 0, %s22
    %s23 = sphi 0, %s20
    %s24 = sphi 0, %s23
    %s40 = sphi 0, %s24
    %s46 = sphi 0, %s48
    %s49 = sphi 0, %s46
    %s50 = sphi 0, %s49
    %s66 = sphi 0, %s50
    %s72 = sphi 0, %s74
    %s75 = sphi 0, %s72
    %s76 = sphi 0, %s75
    %s92 = sphi 0, %s76
    %s98 = sphi 0, %s100
    %s101 = sphi 0, %s98
    %s102 = sphi 0, %s101
    %s118 = sphi 0, %s102
    %s124 = sphi 0, %s126
    %s127 = sphi 0, %s124
    %s128 = sphi 0, %s127
    %s144 = sphi 0, %s128
  $region4: #{cross_attention_block_forward.7} parent=0 // loop_header_branch
    %13 = sbr.rel (%p11) target = $region8
  $region5: #{cross_attention_block_forward.7} parent=0 // loop_body
    %s15 = ssub.s32 %s10, 1
    %s16 = ssub.s32 %s10, 2
    %s17 = sadd.s32 %s10, 1
    %s18 = ssub.s32 %s10, %s17
    %p19 = scmp.eq.s32.totalorder %s18, 0
    %s21 = sadd.s32 %s20, 1
    %s22 = scalar_select %p19, %s20, %s21
    %p25 = pneg %p19
    %p26 = scmp.eq.s32.totalorder %s10, 1
    %p27 = por %p25, %p26
    %p28 = scmp.ne.s32.totalorder %s20, %s23
    %p29 = scmp.eq.s32.totalorder %s10, 0
    %p30 = por %p28, %p29
    %p31 = scmp.ne.s32.totalorder %s20, %s23
    %p32 = scmp.eq.s32.totalorder %s15, 1
    %p33 = por %p31, %p32
    %p34 = scmp.ne.s32.totalorder %s23, %s24
    %p35 = scmp.eq.s32.totalorder %s15, 0
    %p36 = por %p34, %p35
    %p37 = scmp.ne.s32.totalorder %s23, %s24
    %p38 = scmp.eq.s32.totalorder %s16, 1
    %p39 = por %p37, %p38
    %p41 = scmp.ne.s32.totalorder %s24, %s40
    %p42 = scmp.eq.s32.totalorder %s16, 0
    %p43 = por %p41, %p42
    %s44 = ssub.s32 %s10, %s17
    %p45 = scmp.eq.s32.totalorder %s44, 0
    %s47 = sadd.s32 %s46, 1
    %s48 = scalar_select %p45, %s46, %s47
    %p51 = pneg %p45
    %p52 = scmp.eq.s32.totalorder %s10, 1
    %p53 = por %p51, %p52
    %p54 = scmp.ne.s32.totalorder %s46, %s49
    %p55 = scmp.eq.s32.totalorder %s10, 0
    %p56 = por %p54, %p55
    %p57 = scmp.ne.s32.totalorder %s46, %s49
    %p58 = scmp.eq.s32.totalorder %s15, 1
    %p59 = por %p57, %p58
    %p60 = scmp.ne.s32.totalorder %s49, %s50
    %p61 = scmp.eq.s32.totalorder %s15, 0
    %p62 = por %p60, %p61
    %p63 = scmp.ne.s32.totalorder %s49, %s50
    %p64 = scmp.eq.s32.totalorder %s16, 1
    %p65 = por %p63, %p64
    %p67 = scmp.ne.s32.totalorder %s50, %s66
    %p68 = scmp.eq.s32.totalorder %s16, 0
    %p69 = por %p67, %p68
    %s70 = ssub.s32 %s10, %s17
    %p71 = scmp.eq.s32.totalorder %s70, 0
    %s73 = sadd.s32 %s72, 1
    %s74 = scalar_select %p71, %s72, %s73
    %p77 = pneg %p71
    %p78 = scmp.eq.s32.totalorder %s10, 1
    %p79 = por %p77, %p78
    %p80 = scmp.ne.s32.totalorder %s72, %s75
    %p81 = scmp.eq.s32.totalorder %s10, 0
    %p82 = por %p80, %p81
    %p83 = scmp.ne.s32.totalorder %s72, %s75
    %p84 = scmp.eq.s32.totalorder %s15, 1
    %p85 = por %p83, %p84
    %p86 = scmp.ne.s32.totalorder %s75, %s76
    %p87 = scmp.eq.s32.totalorder %s15, 0
    %p88 = por %p86, %p87
    %p89 = scmp.ne.s32.totalorder %s75, %s76
    %p90 = scmp.eq.s32.totalorder %s16, 1
    %p91 = por %p89, %p90
    %p93 = scmp.ne.s32.totalorder %s76, %s92
    %p94 = scmp.eq.s32.totalorder %s16, 0
    %p95 = por %p93, %p94
    %s96 = ssub.s32 %s10, %s17
    %p97 = scmp.eq.s32.totalorder %s96, 0
    %s99 = sadd.s32 %s98, 1
    %s100 = scalar_select %p97, %s98, %s99
    %p103 = pneg %p97
    %p104 = scmp.eq.s32.totalorder %s10, 1
    %p105 = por %p103, %p104
    %p106 = scmp.ne.s32.totalorder %s98, %s101
    %p107 = scmp.eq.s32.totalorder %s10, 0
    %p108 = por %p106, %p107
    %p109 = scmp.ne.s32.totalorder %s98, %s101
    %p110 = scmp.eq.s32.totalorder %s15, 1
    %p111 = por %p109, %p110
    %p112 = scmp.ne.s32.totalorder %s101, %s102
    %p113 = scmp.eq.s32.totalorder %s15, 0
    %p114 = por %p112, %p113
    %p115 = scmp.ne.s32.totalorder %s101, %s102
    %p116 = scmp.eq.s32.totalorder %s16, 1
    %p117 = por %p115, %p116
    %p119 = scmp.ne.s32.totalorder %s102, %s118
    %p120 = scmp.eq.s32.totalorder %s16, 0
    %p121 = por %p119, %p120
    %s122 = ssub.s32 %s10, %s17
    %p123 = scmp.eq.s32.totalorder %s122, 0
    %s125 = sadd.s32 %s124, 1
    %s126 = scalar_select %p123, %s124, %s125
    %p129 = pneg %p123
    %p130 = scmp.eq.s32.totalorder %s10, 1
    %p131 = por %p129, %p130
    %p132 = scmp.ne.s32.totalorder %s124, %s127
    %p133 = scmp.eq.s32.totalorder %s10, 0
    %p134 = por %p132, %p133
    %p135 = scmp.ne.s32.totalorder %s124, %s127
    %p136 = scmp.eq.s32.totalorder %s15, 1
    %p137 = por %p135, %p136
    %p138 = scmp.ne.s32.totalorder %s127, %s128
    %p139 = scmp.eq.s32.totalorder %s15, 0
    %p140 = por %p138, %p139
    %p141 = scmp.ne.s32.totalorder %s127, %s128
    %p142 = scmp.eq.s32.totalorder %s16, 1
    %p143 = por %p141, %p142
    %p145 = scmp.ne.s32.totalorder %s128, %s144
    %p146 = scmp.eq.s32.totalorder %s16, 0
    %p147 = por %p145, %p146
    %p148 = scmp.le.s32.totalorder 1, %s10
    %p149 = scmp.lt.s32.totalorder %s10, 3
    %p150 = pnand %p148, %p149
    %p151 = pneg %p150
    // Predicated region
    $region9: #{cross_attention_block_forward.7} parent=5 // pred_check
      _
    $region10: #{cross_attention_block_forward.7} parent=5 // pred_check_branch
      %153 = sbr.rel (%p150) target = $region12
    $region11: #{cross_attention_block_forward.7} parent=5 // pred_region
      %s154 = ssub.s32 %s10, 1
    $region12: #{cross_attention_block_forward.7} parent=5 // pred_fallthru
      _
    %p155 = scmp.lt.s32.totalorder %s10, 2
    // Predicated region
    $region13: #{cross_attention_block_forward.7} parent=5 // pred_check
      %p156 = pneg %p155
    $region14: #{cross_attention_block_forward.7} parent=5 // pred_check_branch
      %158 = sbr.rel (%p156) target = $region16
    $region15: #{cross_attention_block_forward.7} parent=5 // pred_region
      // Predicated region
      $region17: #{cross_attention_block_forward.7} parent=15 // pred_check
        %p159 = pneg %p30
      $region18: #{cross_attention_block_forward.7} parent=15 // pred_check_branch
        %161 = sbr.rel (%p159) target = $region20
      $region19: #{cross_attention_block_forward.7} parent=15 // pred_region
        %s162 = smul.u32 4, %s10
        %p163 = scmp.lt.s32.totalorder %s162, 7
        %s164 = scalar_select %p163, %s162, 7
        %s165 = smul.addr %s164, 2
        %s166 = smul.addr %s165, 8
        %s167 = scalar_lea.vmem %s0, %s166
        %s168 = smul.u32 4, %s10
      $region20: #{cross_attention_block_forward.7} parent=15 // pred_fallthru
        _
      // Predicated region
      $region21: #{cross_attention_block_forward.7} parent=15 // pred_check
        %p169 = pneg %p56
      $region22: #{cross_attention_block_forward.7} parent=15 // pred_check_branch
        %171 = sbr.rel (%p169) target = $region24
      $region23: #{cross_attention_block_forward.7} parent=15 // pred_region
        %s172 = smul.u32 4, %s10
        %p173 = scmp.lt.s32.totalorder %s172, 7
        %s174 = scalar_select %p173, %s172, 7
        %s175 = smul.addr %s174, 2
        %s176 = smul.addr %s175, 8
        %s177 = scalar_lea.vmem %s1, %s176
        %s178 = smul.u32 4, %s10
      $region24: #{cross_attention_block_forward.7} parent=15 // pred_fallthru
        _
      // Predicated region
      $region25: #{cross_attention_block_forward.7} parent=15 // pred_check
        %p179 = pneg %p82
      $region26: #{cross_attention_block_forward.7} parent=15 // pred_check_branch
        %181 = sbr.rel (%p179) target = $region28
      $region27: #{cross_attention_block_forward.7} parent=15 // pred_region
        %s182 = smul.u32 4, %s10
        %p183 = scmp.lt.s32.totalorder %s182, 7
        %s184 = scalar_select %p183, %s182, 7
        %s185 = smul.addr %s184, 2
        %s186 = smul.addr %s185, 8
        %s187 = scalar_lea.vmem %s2, %s186
        %s188 = smul.u32 4, %s10
      $region28: #{cross_attention_block_forward.7} parent=15 // pred_fallthru
        _
      // Predicated region
      $region29: #{cross_attention_block_forward.7} parent=15 // pred_check
        %p189 = pneg %p108
      $region30: #{cross_attention_block_forward.7} parent=15 // pred_check_branch
        %191 = sbr.rel (%p189) target = $region32
      $region31: #{cross_attention_block_forward.7} parent=15 // pred_region
        %p192 = scmp.lt.s32.totalorder %s10, 1
        %s193 = scalar_select %p192, %s10, 1
        %s194 = smul.addr %s193, 4
        %s195 = scalar_lea.vmem %s3, %s194
      $region32: #{cross_attention_block_forward.7} parent=15 // pred_fallthru
        _
    $region16: #{cross_attention_block_forward.7} parent=5 // pred_fallthru
      _
    %p196 = scmp.le.s32.totalorder 1, %s10
    %p197 = scmp.lt.s32.totalorder %s10, 3
    %p198 = pnand %p196, %p197
    %p199 = pneg %p198
    // Predicated region
    $region33: #{cross_attention_block_forward.7} parent=5 // pred_check
      _
    $region34: #{cross_attention_block_forward.7} parent=5 // pred_check_branch
      %201 = sbr.rel (%p198) target = $region36
    $region35: #{cross_attention_block_forward.7} parent=5 // pred_region
      %s202 = ssub.s32 %s10, 1
      %s203 = smul.u32 4, %s15
      %p204 = scmp.lt.s32.totalorder %s203, 7
      %s205 = scalar_select %p204, %s203, 7
      %s206 = smul.addr %s205, 2
      %s207 = smul.addr %s206, 8
      %s208 = scalar_lea.vmem %s0, %s207
      %p209 = pneg %p36
      %p210 = pneg %p33
      %s211 = smul.u32 4, %s15
      %p212 = scmp.lt.s32.totalorder %s211, 7
      %s213 = scalar_select %p212, %s211, 7
      %s214 = smul.addr %s213, 2
      %s215 = smul.addr %s214, 8
      %s216 = scalar_lea.vmem %s1, %s215
      %p217 = pneg %p62
      %p218 = pneg %p59
      %s219 = smul.u32 4, %s15
      %p220 = scmp.lt.s32.totalorder %s219, 7
      %s221 = scalar_select %p220, %s219, 7
      %s222 = smul.addr %s221, 2
      %s223 = smul.addr %s222, 8
      %s224 = scalar_lea.vmem %s2, %s223
      %p225 = pneg %p88
      %p226 = pneg %p85
      %p227 = scmp.lt.s32.totalorder %s15, 1
      %s228 = scalar_select %p227, %s15, 1
      %s229 = smul.addr %s228, 4
      %s230 = scalar_lea.vmem %s3, %s229
      %p231 = pneg %p114
      %p232 = pneg %p111
      %p233 = pneg %p140
      %p234 = pneg %p137
      %s235 = smul.u32 4, %s15
      %p236 = scmp.lt.s32.totalorder %s235, 7
      %s237 = scalar_select %p236, %s235, 7
      %s238 = smul.addr %s237, 2
      %s239 = smul.addr %s238, 8
      %s240 = scalar_lea.vmem %s4, %s239
      %s241 = smul.u32 4, %s15
      %p242 = scmp.lt.s32.totalorder %s241, 7
      %s243 = scalar_select %p242, %s241, 7
      %s244 = smul.addr %s243, 2
      %s245 = smul.addr %s244, 8
      %s246 = scalar_lea.vmem %s0, %s245
      %s247 = smul.u32 4, %s15
      %s248 = smul.u32 4, %s15
      %p249 = scmp.lt.s32.totalorder %s248, 7
      %s250 = scalar_select %p249, %s248, 7
      %s251 = smul.addr %s250, 2
      %s252 = smul.addr %s251, 8
      %s253 = scalar_lea.vmem %s1, %s252
      %s254 = smul.u32 4, %s15
      %s255 = smul.u32 4, %s15
      %p256 = scmp.lt.s32.totalorder %s255, 7
      %s257 = scalar_select %p256, %s255, 7
      %s258 = smul.addr %s257, 2
      %s259 = smul.addr %s258, 8
      %s260 = scalar_lea.vmem %s2, %s259
      %s261 = smul.u32 4, %s15
      %p262 = scmp.lt.s32.totalorder %s15, 1
      %s263 = scalar_select %p262, %s15, 1
      %s264 = smul.addr %s263, 4
      %s265 = scalar_lea.vmem %s3, %s264
      %s266 = smul.u32 4, %s15
      %p267 = scmp.lt.s32.totalorder %s266, 7
      %s268 = scalar_select %p267, %s266, 7
      %s269 = smul.addr %s268, 2
      %s270 = smul.addr %s269, 8
      %s271 = scalar_lea.vmem %s4, %s270
      %s272 = smul.u32 4, %s15
      %v273 = vld [vmem:[%s246] sm:$0xff]
      %v274 = vld [vmem:[%s246 + $0x8] sm:$0xff]
      %v275 = vld [vmem:[%s246 + $0x10] sm:$0xff]
      %v276 = vld [vmem:[%s246 + $0x18] sm:$0xff]
      %v277 = vld [vmem:[%s246 + $0x20] sm:$0xff]
      %v278 = vld [vmem:[%s246 + $0x28] sm:$0xff]
      %v279 = vld [vmem:[%s246 + $0x30] sm:$0xff]
      %v280 = vld [vmem:[%s246 + $0x38] sm:$0xff]
      %v281 = vld [vmem:[%s253] sm:$0xff]
      %v282 = vld [vmem:[%s253 + $0x8] sm:$0xff]
      %v283 = vld [vmem:[%s253 + $0x10] sm:$0xff]
      %v284 = vld [vmem:[%s253 + $0x18] sm:$0xff]
      %v285 = vld [vmem:[%s253 + $0x20] sm:$0xff]
      %v286 = vld [vmem:[%s253 + $0x28] sm:$0xff]
      %v287 = vld [vmem:[%s253 + $0x30] sm:$0xff]
      %v288 = vld [vmem:[%s253 + $0x38] sm:$0xff]
      %v289 = vld [vmem:[%s260] sm:$0xff]
      %v290 = vld [vmem:[%s260 + $0x8] sm:$0xff]
      %v291 = vld [vmem:[%s260 + $0x10] sm:$0xff]
      %v292 = vld [vmem:[%s260 + $0x18] sm:$0xff]
      %v293 = vld [vmem:[%s260 + $0x20] sm:$0xff]
      %v294 = vld [vmem:[%s260 + $0x28] sm:$0xff]
      %v295 = vld [vmem:[%s260 + $0x30] sm:$0xff]
      %v296 = vld [vmem:[%s260 + $0x38] sm:$0xff]
      %v297 = vld [vmem:[%s265] sm:$0xf]
      %v298 = vlaneseq
      %v299 = vand.u32 %v298, 127
      %v300 = vlaneseq
      %v301 = vshrl.u32 %v300, 7
      %v302 = vsub.s32 0, %v301
      %v303 = vrot.slane %v297, %v302
      %305 = vbcast.lane.b32.xlu0 %v303, 256
      %v306 = vpop.permute.xlu0 %305
      %s308 = sor.u32 256, 8
      %309 = vbcast.lane.b32.xlu0 %v303, %s308
      %v310 = vpop.permute.xlu0 %309
      %v311 = vlaneseq
      %v312 = vshrl.u32 %v311, 7
      %v313 = vsub.s32 1, %v312
      %v314 = vrot.slane %v297, %v313
      %316 = vbcast.lane.b32.xlu0 %v314, 256
      %v317 = vpop.permute.xlu0 %316
      %s319 = sor.u32 256, 8
      %320 = vbcast.lane.b32.xlu0 %v314, %s319
      %v321 = vpop.permute.xlu0 %320
      %v322 = vlaneseq
      %v323 = vshrl.u32 %v322, 7
      %v324 = vsub.s32 2, %v323
      %v325 = vrot.slane %v297, %v324
      %327 = vbcast.lane.b32.xlu0 %v325, 256
      %v328 = vpop.permute.xlu0 %327
      %s330 = sor.u32 256, 8
      %331 = vbcast.lane.b32.xlu0 %v325, %s330
      %v332 = vpop.permute.xlu0 %331
      %v333 = vlaneseq
      %v334 = vshrl.u32 %v333, 7
      %v335 = vsub.s32 3, %v334
      %v336 = vrot.slane %v297, %v335
      %338 = vbcast.lane.b32.xlu0 %v336, 256
      %v339 = vpop.permute.xlu0 %338
      %s341 = sor.u32 256, 8
      %342 = vbcast.lane.b32.xlu0 %v336, %s341
      %v343 = vpop.permute.xlu0 %342
      %vm344 = vcmp.eq.s32.totalorder %v299, %v306
      %vm345 = vcmp.eq.s32.totalorder %v299, %v310
      %vm346 = vcmp.eq.s32.totalorder %v299, %v317
      %vm347 = vcmp.eq.s32.totalorder %v299, %v321
      %vm348 = vcmp.eq.s32.totalorder %v299, %v328
      %vm349 = vcmp.eq.s32.totalorder %v299, %v332
      %vm350 = vcmp.eq.s32.totalorder %v299, %v339
      %vm351 = vcmp.eq.s32.totalorder %v299, %v343
      %v352 = vsel %vm344, 1, 0
      %v353 = vsel %vm345, 1, 0
      %v354 = vsel %vm346, 1, 0
      %v355 = vsel %vm347, 1, 0
      %v356 = vsel %vm348, 1, 0
      %v357 = vsel %vm349, 1, 0
      %v358 = vsel %vm350, 1, 0
      %v359 = vsel %vm351, 1, 0
      %v360 = vcvt.s32.f32 %v352
      %v361 = vcvt.s32.f32 %v353
      %v362 = vcvt.s32.f32 %v354
      %v363 = vcvt.s32.f32 %v355
      %v364 = vcvt.s32.f32 %v356
      %v365 = vcvt.s32.f32 %v357
      %v366 = vcvt.s32.f32 %v358
      %v367 = vcvt.s32.f32 %v359
      %vm368 = vcmask 130048
      %v370 = vsel %vm368, %v360, 0
      %v373 = vsel %vm368, %v361, 0
      %375 = vmatprep.subr.mxu0 0.0
      %376 = vmatpush1.msra.mxu0 %v273
      %377 = vmatprep.subr.mxu0 0.0
      %378 = vmatpush1.msra.mxu0 %v274
      %379 = vmatprep.subr.mxu0 0.0
      %380 = vmatpush1.msra.mxu0 0.0
      %381 = vmatprep.subr.mxu0 0.0
      %382 = vmatpush1.msra.mxu0 0.0
      %383 = vmatprep.subr.mxu0 0.0
      %384 = vmatpush1.msra.mxu0 0.0
      %385 = vmatprep.subr.mxu0 0.0
      %386 = vmatpush1.msra.mxu0 0.0
      %387 = vmatprep.subr.mxu0 0.0
      %388 = vmatpush1.msra.mxu0 0.0
      %389 = vmatprep.subr.mxu0 0.0
      %390 = vmatpush1.msra.mxu0 0.0
      %391 = vmatprep.subr.mxu0 0.0
      %392 = vmatpush1.msra.mxu0 0.0
      %393 = vmatprep.subr.mxu0 0.0
      %394 = vmatpush1.msra.mxu0 0.0
      %395 = vmatprep.subr.mxu0 0.0
      %396 = vmatpush1.msra.mxu0 0.0
      %397 = vmatprep.subr.mxu0 0.0
      %398 = vmatpush1.msra.mxu0 0.0
      %399 = vmatprep.subr.mxu0 0.0
      %400 = vmatpush1.msra.mxu0 0.0
      %401 = vmatprep.subr.mxu0 0.0
      %402 = vmatpush1.msra.mxu0 0.0
      %403 = vmatprep.subr.mxu0 0.0
      %404 = vmatpush1.msra.mxu0 0.0
      %405 = vmatprep.subr.mxu0 0.0
      %406 = vmatpush1.msra.mxu0 0.0
      %407 = vmatprep.subr.mxu0 0.0
      %408 = vmatpush1.msra.mxu0 0.0
      %409 = vmatprep.subr.mxu0 0.0
      %410 = vmatpush1.msra.mxu0 0.0
      %411 = vmatprep.subr.mxu0 0.0
      %412 = vmatpush1.msra.mxu0 0.0
      %413 = vmatprep.subr.mxu0 0.0
      %414 = vmatpush1.msra.mxu0 0.0
      %415 = vmatprep.subr.mxu0 0.0
      %416 = vmatpush1.msra.mxu0 0.0
      %417 = vmatprep.subr.mxu0 0.0
      %418 = vmatpush1.msra.mxu0 0.0
      %419 = vmatprep.subr.mxu0 0.0
      %420 = vmatpush1.msra.mxu0 0.0
      %421 = vmatprep.subr.mxu0 0.0
      %422 = vmatpush1.msra.mxu0 0.0
      %423 = vmatprep.subr.mxu0 0.0
      %424 = vmatpush1.msra.mxu0 0.0
      %425 = vmatprep.subr.mxu0 0.0
      %426 = vmatpush1.msra.mxu0 0.0
      %427 = vmatprep.subr.mxu0 0.0
      %428 = vmatpush1.msra.mxu0 0.0
      %429 = vmatprep.subr.mxu0 0.0
      %430 = vmatpush1.msra.mxu0 0.0
      %431 = vmatprep.subr.mxu0 0.0
      %432 = vmatpush1.msra.mxu0 0.0
      %433 = vmatprep.subr.mxu0 0.0
      %434 = vmatpush1.msra.mxu0 0.0
      %435 = vmatprep.subr.mxu0 0.0
      %436 = vmatpush1.msra.mxu0 0.0
      %437 = vmatprep.subr.mxu0 0.0
      %438 = vmatpush1.msra.mxu0 0.0
      %439 = vmatprep.mubr.f32.mxu0 0.0
      %440 = vmatmul.mubr.f32.gmra.mrb[0].mxu0 %v370
      %v441 = vpop.f32.mrb[0].mxu0
      %v442 = vadd.f32 0.0, %v441
      %v443 = vpop.f32.mrb[0].mxu0
      %444 = vmatprep.mubr.f32.mxu0 0.0
      %445 = vmatmul.mubr.f32.gmra.mrb[0].mxu0 %v373
      %v446 = vpop.f32.mrb[0].mxu0
      %v447 = vadd.f32 0.0, %v446
      %v448 = vpop.f32.mrb[0].mxu0
      %449 = vdwg.mxu0
      %v451 = vsel %vm368, %v362, 0
      %v454 = vsel %vm368, %v363, 0
      %456 = vmatprep.subr.mxu0 0.0
      %457 = vmatpush1.msra.mxu0 %v275
      %458 = vmatprep.subr.mxu0 0.0
      %459 = vmatpush1.msra.mxu0 %v276
      %460 = vmatprep.subr.mxu0 0.0
      %461 = vmatpush1.msra.mxu0 0.0
      %462 = vmatprep.subr.mxu0 0.0
      %463 = vmatpush1.msra.mxu0 0.0
      %464 = vmatprep.subr.mxu0 0.0
      %465 = vmatpush1.msra.mxu0 0.0
      %466 = vmatprep.subr.mxu0 0.0
      %467 = vmatpush1.msra.mxu0 0.0
      %468 = vmatprep.subr.mxu0 0.0
      %469 = vmatpush1.msra.mxu0 0.0
      %470 = vmatprep.subr.mxu0 0.0
      %471 = vmatpush1.msra.mxu0 0.0
      %472 = vmatprep.subr.mxu0 0.0
      %473 = vmatpush1.msra.mxu0 0.0
      %474 = vmatprep.subr.mxu0 0.0
      %475 = vmatpush1.msra.mxu0 0.0
      %476 = vmatprep.subr.mxu0 0.0
      %477 = vmatpush1.msra.mxu0 0.0
      %478 = vmatprep.subr.mxu0 0.0
      %479 = vmatpush1.msra.mxu0 0.0
      %480 = vmatprep.subr.mxu0 0.0
      %481 = vmatpush1.msra.mxu0 0.0
      %482 = vmatprep.subr.mxu0 0.0
      %483 = vmatpush1.msra.mxu0 0.0
      %484 = vmatprep.subr.mxu0 0.0
      %485 = vmatpush1.msra.mxu0 0.0
      %486 = vmatprep.subr.mxu0 0.0
      %487 = vmatpush1.msra.mxu0 0.0
      %488 = vmatprep.subr.mxu0 0.0
      %489 = vmatpush1.msra.mxu0 0.0
      %490 = vmatprep.subr.mxu0 0.0
      %491 = vmatpush1.msra.mxu0 0.0
      %492 = vmatprep.subr.mxu0 0.0
      %493 = vmatpush1.msra.mxu0 0.0
      %494 = vmatprep.subr.mxu0 0.0
      %495 = vmatpush1.msra.mxu0 0.0
      %496 = vmatprep.subr.mxu0 0.0
      %497 = vmatpush1.msra.mxu0 0.0
      %498 = vmatprep.subr.mxu0 0.0
      %499 = vmatpush1.msra.mxu0 0.0
      %500 = vmatprep.subr.mxu0 0.0
      %501 = vmatpush1.msra.mxu0 0.0
      %502 = vmatprep.subr.mxu0 0.0
      %503 = vmatpush1.msra.mxu0 0.0
      %504 = vmatprep.subr.mxu0 0.0
      %505 = vmatpush1.msra.mxu0 0.0
      %506 = vmatprep.subr.mxu0 0.0
      %507 = vmatpush1.msra.mxu0 0.0
      %508 = vmatprep.subr.mxu0 0.0
      %509 = vmatpush1.msra.mxu0 0.0
      %510 = vmatprep.subr.mxu0 0.0
      %511 = vmatpush1.msra.mxu0 0.0
      %512 = vmatprep.subr.mxu0 0.0
      %513 = vmatpush1.msra.mxu0 0.0
      %514 = vmatprep.subr.mxu0 0.0
      %515 = vmatpush1.msra.mxu0 0.0
      %516 = vmatprep.subr.mxu0 0.0
      %517 = vmatpush1.msra.mxu0 0.0
      %518 = vmatprep.subr.mxu0 0.0
      %519 = vmatpush1.msra.mxu0 0.0
      %520 = vmatprep.mubr.f32.mxu0 0.0
      %521 = vmatmul.mubr.f32.gmra.mrb[0].mxu0 %v451
      %v522 = vpop.f32.mrb[0].mxu0
      %v523 = vadd.f32 0.0, %v522
      %v524 = vpop.f32.mrb[0].mxu0
      %525 = vmatprep.mubr.f32.mxu0 0.0
      %526 = vmatmul.mubr.f32.gmra.mrb[0].mxu0 %v454
      %v527 = vpop.f32.mrb[0].mxu0
      %v528 = vadd.f32 0.0, %v527
      %v529 = vpop.f32.mrb[0].mxu0
      %530 = vdwg.mxu0
      %v532 = vsel %vm368, %v364, 0
      %v535 = vsel %vm368, %v365, 0
      %537 = vmatprep.subr.mxu0 0.0
      %538 = vmatpush1.msra.mxu0 %v277
      %539 = vmatprep.subr.mxu0 0.0
      %540 = vmatpush1.msra.mxu0 %v278
      %541 = vmatprep.subr.mxu0 0.0
      %542 = vmatpush1.msra.mxu0 0.0
      %543 = vmatprep.subr.mxu0 0.0
      %544 = vmatpush1.msra.mxu0 0.0
      %545 = vmatprep.subr.mxu0 0.0
      %546 = vmatpush1.msra.mxu0 0.0
      %547 = vmatprep.subr.mxu0 0.0
      %548 = vmatpush1.msra.mxu0 0.0
      %549 = vmatprep.subr.mxu0 0.0
      %550 = vmatpush1.msra.mxu0 0.0
      %551 = vmatprep.subr.mxu0 0.0
      %552 = vmatpush1.msra.mxu0 0.0
      %553 = vmatprep.subr.mxu0 0.0
      %554 = vmatpush1.msra.mxu0 0.0
      %555 = vmatprep.subr.mxu0 0.0
      %556 = vmatpush1.msra.mxu0 0.0
      %557 = vmatprep.subr.mxu0 0.0
      %558 = vmatpush1.msra.mxu0 0.0
      %559 = vmatprep.subr.mxu0 0.0
      %560 = vmatpush1.msra.mxu0 0.0
      %561 = vmatprep.subr.mxu0 0.0
      %562 = vmatpush1.msra.mxu0 0.0
      %563 = vmatprep.subr.mxu0 0.0
      %564 = vmatpush1.msra.mxu0 0.0
      %565 = vmatprep.subr.mxu0 0.0
      %566 = vmatpush1.msra.mxu0 0.0
      %567 = vmatprep.subr.mxu0 0.0
      %568 = vmatpush1.msra.mxu0 0.0
      %569 = vmatprep.subr.mxu0 0.0
      %570 = vmatpush1.msra.mxu0 0.0
      %571 = vmatprep.subr.mxu0 0.0
      %572 = vmatpush1.msra.mxu0 0.0
      %573 = vmatprep.subr.mxu0 0.0
      %574 = vmatpush1.msra.mxu0 0.0
      %575 = vmatprep.subr.mxu0 0.0
      %576 = vmatpush1.msra.mxu0 0.0
      %577 = vmatprep.subr.mxu0 0.0
      %578 = vmatpush1.msra.mxu0 0.0
      %579 = vmatprep.subr.mxu0 0.0
      %580 = vmatpush1.msra.mxu0 0.0
      %581 = vmatprep.subr.mxu0 0.0
      %582 = vmatpush1.msra.mxu0 0.0
      %583 = vmatprep.subr.mxu0 0.0
      %584 = vmatpush1.msra.mxu0 0.0
      %585 = vmatprep.subr.mxu0 0.0
      %586 = vmatpush1.msra.mxu0 0.0
      %587 = vmatprep.subr.mxu0 0.0
      %588 = vmatpush1.msra.mxu0 0.0
      %589 = vmatprep.subr.mxu0 0.0
      %590 = vmatpush1.msra.mxu0 0.0
      %591 = vmatprep.subr.mxu0 0.0
      %592 = vmatpush1.msra.mxu0 0.0
      %593 = vmatprep.subr.mxu0 0.0
      %594 = vmatpush1.msra.mxu0 0.0
      %595 = vmatprep.subr.mxu0 0.0
      %596 = vmatpush1.msra.mxu0 0.0
      %597 = vmatprep.subr.mxu0 0.0
      %598 = vmatpush1.msra.mxu0 0.0
      %599 = vmatprep.subr.mxu0 0.0
      %600 = vmatpush1.msra.mxu0 0.0
      %601 = vmatprep.mubr.f32.mxu0 0.0
      %602 = vmatmul.mubr.f32.gmra.mrb[0].mxu0 %v532
      %v603 = vpop.f32.mrb[0].mxu0
      %v604 = vadd.f32 0.0, %v603
      %v605 = vpop.f32.mrb[0].mxu0
      %606 = vmatprep.mubr.f32.mxu0 0.0
      %607 = vmatmul.mubr.f32.gmra.mrb[0].mxu0 %v535
      %v608 = vpop.f32.mrb[0].mxu0
      %v609 = vadd.f32 0.0, %v608
      %v610 = vpop.f32.mrb[0].mxu0
      %611 = vdwg.mxu0
      %v613 = vsel %vm368, %v366, 0
      %v616 = vsel %vm368, %v367, 0
      %618 = vmatprep.subr.mxu0 0.0
      %619 = vmatpush1.msra.mxu0 %v279
      %620 = vmatprep.subr.mxu0 0.0
      %621 = vmatpush1.msra.mxu0 %v280
      %622 = vmatprep.subr.mxu0 0.0
      %623 = vmatpush1.msra.mxu0 0.0
      %624 = vmatprep.subr.mxu0 0.0
      %625 = vmatpush1.msra.mxu0 0.0
      %626 = vmatprep.subr.mxu0 0.0
      %627 = vmatpush1.msra.mxu0 0.0
      %628 = vmatprep.subr.mxu0 0.0
      %629 = vmatpush1.msra.mxu0 0.0
      %630 = vmatprep.subr.mxu0 0.0
      %631 = vmatpush1.msra.mxu0 0.0
      %632 = vmatprep.subr.mxu0 0.0
      %633 = vmatpush1.msra.mxu0 0.0
      %634 = vmatprep.subr.mxu0 0.0
      %635 = vmatpush1.msra.mxu0 0.0
      %636 = vmatprep.subr.mxu0 0.0
      %637 = vmatpush1.msra.mxu0 0.0
      %638 = vmatprep.subr.mxu0 0.0
      %639 = vmatpush1.msra.mxu0 0.0
      %640 = vmatprep.subr.mxu0 0.0
      %641 = vmatpush1.msra.mxu0 0.0
      %642 = vmatprep.subr.mxu0 0.0
      %643 = vmatpush1.msra.mxu0 0.0
      %644 = vmatprep.subr.mxu0 0.0
      %645 = vmatpush1.msra.mxu0 0.0
      %646 = vmatprep.subr.mxu0 0.0
      %647 = vmatpush1.msra.mxu0 0.0
      %648 = vmatprep.subr.mxu0 0.0
      %649 = vmatpush1.msra.mxu0 0.0
      %650 = vmatprep.subr.mxu0 0.0
      %651 = vmatpush1.msra.mxu0 0.0
      %652 = vmatprep.subr.mxu0 0.0
      %653 = vmatpush1.msra.mxu0 0.0
      %654 = vmatprep.subr.mxu0 0.0
      %655 = vmatpush1.msra.mxu0 0.0
      %656 = vmatprep.subr.mxu0 0.0
      %657 = vmatpush1.msra.mxu0 0.0
      %658 = vmatprep.subr.mxu0 0.0
      %659 = vmatpush1.msra.mxu0 0.0
      %660 = vmatprep.subr.mxu0 0.0
      %661 = vmatpush1.msra.mxu0 0.0
      %662 = vmatprep.subr.mxu0 0.0
      %663 = vmatpush1.msra.mxu0 0.0
      %664 = vmatprep.subr.mxu0 0.0
      %665 = vmatpush1.msra.mxu0 0.0
      %666 = vmatprep.subr.mxu0 0.0
      %667 = vmatpush1.msra.mxu0 0.0
      %668 = vmatprep.subr.mxu0 0.0
      %669 = vmatpush1.msra.mxu0 0.0
      %670 = vmatprep.subr.mxu0 0.0
      %671 = vmatpush1.msra.mxu0 0.0
      %672 = vmatprep.subr.mxu0 0.0
      %673 = vmatpush1.msra.mxu0 0.0
      %674 = vmatprep.subr.mxu0 0.0
      %675 = vmatpush1.msra.mxu0 0.0
      %676 = vmatprep.subr.mxu0 0.0
      %677 = vmatpush1.msra.mxu0 0.0
      %678 = vmatprep.subr.mxu0 0.0
      %679 = vmatpush1.msra.mxu0 0.0
      %680 = vmatprep.subr.mxu0 0.0
      %681 = vmatpush1.msra.mxu0 0.0
      %682 = vmatprep.mubr.f32.mxu0 0.0
      %683 = vmatmul.mubr.f32.gmra.mrb[0].mxu0 %v613
      %v684 = vpop.f32.mrb[0].mxu0
      %v685 = vadd.f32 0.0, %v684
      %v686 = vpop.f32.mrb[0].mxu0
      %687 = vmatprep.mubr.f32.mxu0 0.0
      %688 = vmatmul.mubr.f32.gmra.mrb[0].mxu0 %v616
      %v689 = vpop.f32.mrb[0].mxu0
      %v690 = vadd.f32 0.0, %v689
      %v691 = vpop.f32.mrb[0].mxu0
      %692 = vdwg.mxu0
      %vm693 = vcmask 64512
      %v695 = vsel %vm693, %v442, 0
      %v698 = vsel %vm693, %v447, 0
      %v701 = vsel %vm693, %v281, 0
      %v704 = vsel %vm693, %v282, 0
      %706 = vmatprep.subr.mxu0 0.0
      %707 = vmatpush1.xpose.msra.mxu0 %v701
      %708 = vmatprep.subr.mxu0 0.0
      %709 = vmatpush1.xpose.msra.mxu0 %v704
      %710 = vmatprep.subr.mxu0 0.0
      %711 = vmatpush1.xpose.msra.mxu0 0.0
      %712 = vmatprep.subr.mxu0 0.0
      %713 = vmatpush1.xpose.msra.mxu0 0.0
      %714 = vmatprep.subr.mxu0 0.0
      %715 = vmatpush1.xpose.msra.mxu0 0.0
      %716 = vmatprep.subr.mxu0 0.0
      %717 = vmatpush1.xpose.msra.mxu0 0.0
      %718 = vmatprep.subr.mxu0 0.0
      %719 = vmatpush1.xpose.msra.mxu0 0.0
      %720 = vmatprep.subr.mxu0 0.0
      %721 = vmatpush1.xpose.msra.mxu0 0.0
      %722 = vmatprep.subr.mxu0 0.0
      %723 = vmatpush1.xpose.msra.mxu0 0.0
      %724 = vmatprep.subr.mxu0 0.0
      %725 = vmatpush1.xpose.msra.mxu0 0.0
      %726 = vmatprep.subr.mxu0 0.0
      %727 = vmatpush1.xpose.msra.mxu0 0.0
      %728 = vmatprep.subr.mxu0 0.0
      %729 = vmatpush1.xpose.msra.mxu0 0.0
      %730 = vmatprep.subr.mxu0 0.0
      %731 = vmatpush1.xpose.msra.mxu0 0.0
      %732 = vmatprep.subr.mxu0 0.0
      %733 = vmatpush1.xpose.msra.mxu0 0.0
      %734 = vmatprep.subr.mxu0 0.0
      %735 = vmatpush1.xpose.msra.mxu0 0.0
      %736 = vmatprep.subr.mxu0 0.0
      %737 = vmatpush1.xpose.msra.mxu0 0.0
      %738 = vmatprep.subr.mxu0 0.0
      %739 = vmatpush1.xpose.msra.mxu0 0.0
      %740 = vmatprep.subr.mxu0 0.0
      %741 = vmatpush1.xpose.msra.mxu0 0.0
      %742 = vmatprep.subr.mxu0 0.0
      %743 = vmatpush1.xpose.msra.mxu0 0.0
      %744 = vmatprep.subr.mxu0 0.0
      %745 = vmatpush1.xpose.msra.mxu0 0.0
      %746 = vmatprep.subr.mxu0 0.0
      %747 = vmatpush1.xpose.msra.mxu0 0.0
      %748 = vmatprep.subr.mxu0 0.0
      %749 = vmatpush1.xpose.msra.mxu0 0.0
      %750 = vmatprep.subr.mxu0 0.0
      %751 = vmatpush1.xpose.msra.mxu0 0.0
      %752 = vmatprep.subr.mxu0 0.0
      %753 = vmatpush1.xpose.msra.mxu0 0.0
      %754 = vmatprep.subr.mxu0 0.0
      %755 = vmatpush1.xpose.msra.mxu0 0.0
      %756 = vmatprep.subr.mxu0 0.0
      %757 = vmatpush1.xpose.msra.mxu0 0.0
      %758 = vmatprep.subr.mxu0 0.0
      %759 = vmatpush1.xpose.msra.mxu0 0.0
      %760 = vmatprep.subr.mxu0 0.0
      %761 = vmatpush1.xpose.msra.mxu0 0.0
      %762 = vmatprep.subr.mxu0 0.0
      %763 = vmatpush1.xpose.msra.mxu0 0.0
      %764 = vmatprep.subr.mxu0 0.0
      %765 = vmatpush1.xpose.msra.mxu0 0.0
      %766 = vmatprep.subr.mxu0 0.0
      %767 = vmatpush1.xpose.msra.mxu0 0.0
      %768 = vmatprep.subr.mxu0 0.0
      %769 = vmatpush1.xpose.msra.mxu0 0.0
      %770 = vmatprep.mubr.f32.mxu0 0.0
      %771 = vmatmul.mubr.f32.gmra.mrb[0].mxu0 %v695
      %v772 = vpop.f32.mrb[0].mxu0
      %v773 = vadd.f32 0.0, %v772
      %v774 = vpop.f32.mrb[0].mxu0
      %775 = vmatprep.mubr.f32.mxu0 0.0
      %776 = vmatmul.mubr.f32.gmra.mrb[0].mxu0 %v698
      %v777 = vpop.f32.mrb[0].mxu0
      %v778 = vadd.f32 0.0, %v777
      %v779 = vpop.f32.mrb[0].mxu0
      %780 = vdwg.mxu0
      %v782 = vsel %vm693, %v523, 0
      %v785 = vsel %vm693, %v528, 0
      %v788 = vsel %vm693, %v283, 0
      %v791 = vsel %vm693, %v284, 0
      %793 = vmatprep.subr.mxu0 0.0
      %794 = vmatpush1.xpose.msra.mxu0 %v788
      %795 = vmatprep.subr.mxu0 0.0
      %796 = vmatpush1.xpose.msra.mxu0 %v791
      %797 = vmatprep.subr.mxu0 0.0
      %798 = vmatpush1.xpose.msra.mxu0 0.0
      %799 = vmatprep.subr.mxu0 0.0
      %800 = vmatpush1.xpose.msra.mxu0 0.0
      %801 = vmatprep.subr.mxu0 0.0
      %802 = vmatpush1.xpose.msra.mxu0 0.0
      %803 = vmatprep.subr.mxu0 0.0
      %804 = vmatpush1.xpose.msra.mxu0 0.0
      %805 = vmatprep.subr.mxu0 0.0
      %806 = vmatpush1.xpose.msra.mxu0 0.0
      %807 = vmatprep.subr.mxu0 0.0
      %808 = vmatpush1.xpose.msra.mxu0 0.0
      %809 = vmatprep.subr.mxu0 0.0
      %810 = vmatpush1.xpose.msra.mxu0 0.0
      %811 = vmatprep.subr.mxu0 0.0
      %812 = vmatpush1.xpose.msra.mxu0 0.0
      %813 = vmatprep.subr.mxu0 0.0
      %814 = vmatpush1.xpose.msra.mxu0 0.0
      %815 = vmatprep.subr.mxu0 0.0
      %816 = vmatpush1.xpose.msra.mxu0 0.0
      %817 = vmatprep.subr.mxu0 0.0
      %818 = vmatpush1.xpose.msra.mxu0 0.0
      %819 = vmatprep.subr.mxu0 0.0
      %820 = vmatpush1.xpose.msra.mxu0 0.0
      %821 = vmatprep.subr.mxu0 0.0
      %822 = vmatpush1.xpose.msra.mxu0 0.0
      %823 = vmatprep.subr.mxu0 0.0
      %824 = vmatpush1.xpose.msra.mxu0 0.0
      %825 = vmatprep.subr.mxu0 0.0
      %826 = vmatpush1.xpose.msra.mxu0 0.0
      %827 = vmatprep.subr.mxu0 0.0
      %828 = vmatpush1.xpose.msra.mxu0 0.0
      %829 = vmatprep.subr.mxu0 0.0
      %830 = vmatpush1.xpose.msra.mxu0 0.0
      %831 = vmatprep.subr.mxu0 0.0
      %832 = vmatpush1.xpose.msra.mxu0 0.0
      %833 = vmatprep.subr.mxu0 0.0
      %834 = vmatpush1.xpose.msra.mxu0 0.0
      %835 = vmatprep.subr.mxu0 0.0
      %836 = vmatpush1.xpose.msra.mxu0 0.0
      %837 = vmatprep.subr.mxu0 0.0
      %838 = vmatpush1.xpose.msra.mxu0 0.0
      %839 = vmatprep.subr.mxu0 0.0
      %840 = vmatpush1.xpose.msra.mxu0 0.0
      %841 = vmatprep.subr.mxu0 0.0
      %842 = vmatpush1.xpose.msra.mxu0 0.0
      %843 = vmatprep.subr.mxu0 0.0
      %844 = vmatpush1.xpose.msra.mxu0 0.0
      %845 = vmatprep.subr.mxu0 0.0
      %846 = vmatpush1.xpose.msra.mxu0 0.0
      %847 = vmatprep.subr.mxu0 0.0
      %848 = vmatpush1.xpose.msra.mxu0 0.0
      %849 = vmatprep.subr.mxu0 0.0
      %850 = vmatpush1.xpose.msra.mxu0 0.0
      %851 = vmatprep.subr.mxu0 0.0
      %852 = vmatpush1.xpose.msra.mxu0 0.0
      %853 = vmatprep.subr.mxu0 0.0
      %854 = vmatpush1.xpose.msra.mxu0 0.0
      %855 = vmatprep.subr.mxu0 0.0
      %856 = vmatpush1.xpose.msra.mxu0 0.0
      %857 = vmatprep.mubr.f32.mxu0 0.0
      %858 = vmatmul.mubr.f32.gmra.mrb[0].mxu0 %v782
      %v859 = vpop.f32.mrb[0].mxu0
      %v860 = vadd.f32 0.0, %v859
      %v861 = vpop.f32.mrb[0].mxu0
      %862 = vmatprep.mubr.f32.mxu0 0.0
      %863 = vmatmul.mubr.f32.gmra.mrb[0].mxu0 %v785
      %v864 = vpop.f32.mrb[0].mxu0
      %v865 = vadd.f32 0.0, %v864
      %v866 = vpop.f32.mrb[0].mxu0
      %867 = vdwg.mxu0
      %v869 = vsel %vm693, %v604, 0
      %v872 = vsel %vm693, %v609, 0
      %v875 = vsel %vm693, %v285, 0
      %v878 = vsel %vm693, %v286, 0
      %880 = vmatprep.subr.mxu0 0.0
      %881 = vmatpush1.xpose.msra.mxu0 %v875
      %882 = vmatprep.subr.mxu0 0.0
      %883 = vmatpush1.xpose.msra.mxu0 %v878
      %884 = vmatprep.subr.mxu0 0.0
      %885 = vmatpush1.xpose.msra.mxu0 0.0
      %886 = vmatprep.subr.mxu0 0.0
      %887 = vmatpush1.xpose.msra.mxu0 0.0
      %888 = vmatprep.subr.mxu0 0.0
      %889 = vmatpush1.xpose.msra.mxu0 0.0
      %890 = vmatprep.subr.mxu0 0.0
      %891 = vmatpush1.xpose.msra.mxu0 0.0
      %892 = vmatprep.subr.mxu0 0.0
      %893 = vmatpush1.xpose.msra.mxu0 0.0
      %894 = vmatprep.subr.mxu0 0.0
      %895 = vmatpush1.xpose.msra.mxu0 0.0
      %896 = vmatprep.subr.mxu0 0.0
      %897 = vmatpush1.xpose.msra.mxu0 0.0
      %898 = vmatprep.subr.mxu0 0.0
      %899 = vmatpush1.xpose.msra.mxu0 0.0
      %900 = vmatprep.subr.mxu0 0.0
      %901 = vmatpush1.xpose.msra.mxu0 0.0
      %902 = vmatprep.subr.mxu0 0.0
      %903 = vmatpush1.xpose.msra.mxu0 0.0
      %904 = vmatprep.subr.mxu0 0.0
      %905 = vmatpush1.xpose.msra.mxu0 0.0
      %906 = vmatprep.subr.mxu0 0.0
      %907 = vmatpush1.xpose.msra.mxu0 0.0
      %908 = vmatprep.subr.mxu0 0.0
      %909 = vmatpush1.xpose.msra.mxu0 0.0
      %910 = vmatprep.subr.mxu0 0.0
      %911 = vmatpush1.xpose.msra.mxu0 0.0
      %912 = vmatprep.subr.mxu0 0.0
      %913 = vmatpush1.xpose.msra.mxu0 0.0
      %914 = vmatprep.subr.mxu0 0.0
      %915 = vmatpush1.xpose.msra.mxu0 0.0
      %916 = vmatprep.subr.mxu0 0.0
      %917 = vmatpush1.xpose.msra.mxu0 0.0
      %918 = vmatprep.subr.mxu0 0.0
      %919 = vmatpush1.xpose.msra.mxu0 0.0
      %920 = vmatprep.subr.mxu0 0.0
      %921 = vmatpush1.xpose.msra.mxu0 0.0
      %922 = vmatprep.subr.mxu0 0.0
      %923 = vmatpush1.xpose.msra.mxu0 0.0
      %924 = vmatprep.subr.mxu0 0.0
      %925 = vmatpush1.xpose.msra.mxu0 0.0
      %926 = vmatprep.subr.mxu0 0.0
      %927 = vmatpush1.xpose.msra.mxu0 0.0
      %928 = vmatprep.subr.mxu0 0.0
      %929 = vmatpush1.xpose.msra.mxu0 0.0
      %930 = vmatprep.subr.mxu0 0.0
      %931 = vmatpush1.xpose.msra.mxu0 0.0
      %932 = vmatprep.subr.mxu0 0.0
      %933 = vmatpush1.xpose.msra.mxu0 0.0
      %934 = vmatprep.subr.mxu0 0.0
      %935 = vmatpush1.xpose.msra.mxu0 0.0
      %936 = vmatprep.subr.mxu0 0.0
      %937 = vmatpush1.xpose.msra.mxu0 0.0
      %938 = vmatprep.subr.mxu0 0.0
      %939 = vmatpush1.xpose.msra.mxu0 0.0
      %940 = vmatprep.subr.mxu0 0.0
      %941 = vmatpush1.xpose.msra.mxu0 0.0
      %942 = vmatprep.subr.mxu0 0.0
      %943 = vmatpush1.xpose.msra.mxu0 0.0
      %944 = vmatprep.mubr.f32.mxu0 0.0
      %945 = vmatmul.mubr.f32.gmra.mrb[0].mxu0 %v869
      %v946 = vpop.f32.mrb[0].mxu0
      %v947 = vadd.f32 0.0, %v946
      %v948 = vpop.f32.mrb[0].mxu0
      %949 = vmatprep.mubr.f32.mxu0 0.0
      %950 = vmatmul.mubr.f32.gmra.mrb[0].mxu0 %v872
      %v951 = vpop.f32.mrb[0].mxu0
      %v952 = vadd.f32 0.0, %v951
      %v953 = vpop.f32.mrb[0].mxu0
      %954 = vdwg.mxu0
      %v956 = vsel %vm693, %v685, 0
      %v959 = vsel %vm693, %v690, 0
      %v962 = vsel %vm693, %v287, 0
      %v965 = vsel %vm693, %v288, 0
      %967 = vmatprep.subr.mxu0 0.0
      %968 = vmatpush1.xpose.msra.mxu0 %v962
      %969 = vmatprep.subr.mxu0 0.0
      %970 = vmatpush1.xpose.msra.mxu0 %v965
      %971 = vmatprep.subr.mxu0 0.0
      %972 = vmatpush1.xpose.msra.mxu0 0.0
      %973 = vmatprep.subr.mxu0 0.0
      %974 = vmatpush1.xpose.msra.mxu0 0.0
      %975 = vmatprep.subr.mxu0 0.0
      %976 = vmatpush1.xpose.msra.mxu0 0.0
      %977 = vmatprep.subr.mxu0 0.0
      %978 = vmatpush1.xpose.msra.mxu0 0.0
      %979 = vmatprep.subr.mxu0 0.0
      %980 = vmatpush1.xpose.msra.mxu0 0.0
      %981 = vmatprep.subr.mxu0 0.0
      %982 = vmatpush1.xpose.msra.mxu0 0.0
      %983 = vmatprep.subr.mxu0 0.0
      %984 = vmatpush1.xpose.msra.mxu0 0.0
      %985 = vmatprep.subr.mxu0 0.0
      %986 = vmatpush1.xpose.msra.mxu0 0.0
      %987 = vmatprep.subr.mxu0 0.0
      %988 = vmatpush1.xpose.msra.mxu0 0.0
      %989 = vmatprep.subr.mxu0 0.0
      %990 = vmatpush1.xpose.msra.mxu0 0.0
      %991 = vmatprep.subr.mxu0 0.0
      %992 = vmatpush1.xpose.msra.mxu0 0.0
      %993 = vmatprep.subr.mxu0 0.0
      %994 = vmatpush1.xpose.msra.mxu0 0.0
      %995 = vmatprep.subr.mxu0 0.0
      %996 = vmatpush1.xpose.msra.mxu0 0.0
      %997 = vmatprep.subr.mxu0 0.0
      %998 = vmatpush1.xpose.msra.mxu0 0.0
      %999 = vmatprep.subr.mxu0 0.0
      %1000 = vmatpush1.xpose.msra.mxu0 0.0
      %1001 = vmatprep.subr.mxu0 0.0
      %1002 = vmatpush1.xpose.msra.mxu0 0.0
      %1003 = vmatprep.subr.mxu0 0.0
      %1004 = vmatpush1.xpose.msra.mxu0 0.0
      %1005 = vmatprep.subr.mxu0 0.0
      %1006 = vmatpush1.xpose.msra.mxu0 0.0
      %1007 = vmatprep.subr.mxu0 0.0
      %1008 = vmatpush1.xpose.msra.mxu0 0.0
      %1009 = vmatprep.subr.mxu0 0.0
      %1010 = vmatpush1.xpose.msra.mxu0 0.0
      %1011 = vmatprep.subr.mxu0 0.0
      %1012 = vmatpush1.xpose.msra.mxu0 0.0
      %1013 = vmatprep.subr.mxu0 0.0
      %1014 = vmatpush1.xpose.msra.mxu0 0.0
      %1015 = vmatprep.subr.mxu0 0.0
      %1016 = vmatpush1.xpose.msra.mxu0 0.0
      %1017 = vmatprep.subr.mxu0 0.0
      %1018 = vmatpush1.xpose.msra.mxu0 0.0
      %1019 = vmatprep.subr.mxu0 0.0
      %1020 = vmatpush1.xpose.msra.mxu0 0.0
      %1021 = vmatprep.subr.mxu0 0.0
      %1022 = vmatpush1.xpose.msra.mxu0 0.0
      %1023 = vmatprep.subr.mxu0 0.0
      %1024 = vmatpush1.xpose.msra.mxu0 0.0
      %1025 = vmatprep.subr.mxu0 0.0
      %1026 = vmatpush1.xpose.msra.mxu0 0.0
      %1027 = vmatprep.subr.mxu0 0.0
      %1028 = vmatpush1.xpose.msra.mxu0 0.0
      %1029 = vmatprep.subr.mxu0 0.0
      %1030 = vmatpush1.xpose.msra.mxu0 0.0
      %1031 = vmatprep.mubr.f32.mxu0 0.0
      %1032 = vmatmul.mubr.f32.gmra.mrb[0].mxu0 %v956
      %v1033 = vpop.f32.mrb[0].mxu0
      %v1034 = vadd.f32 0.0, %v1033
      %v1035 = vpop.f32.mrb[0].mxu0
      %1036 = vmatprep.mubr.f32.mxu0 0.0
      %1037 = vmatmul.mubr.f32.gmra.mrb[0].mxu0 %v959
      %v1038 = vpop.f32.mrb[0].mxu0
      %v1039 = vadd.f32 0.0, %v1038
      %v1040 = vpop.f32.mrb[0].mxu0
      %1041 = vdwg.mxu0
      %v1042 = vmul.f32 %v773, 0.35355338
      %v1043 = vmul.f32 %v778, 0.35355338
      %v1044 = vmul.f32 %v860, 0.35355338
      %v1045 = vmul.f32 %v865, 0.35355338
      %v1046 = vmul.f32 %v947, 0.35355338
      %v1047 = vmul.f32 %v952, 0.35355338
      %v1048 = vmul.f32 %v1034, 0.35355338
      %v1049 = vmul.f32 %v1039, 0.35355338
      %vm1050 = vcmp.gt.s32.totalorder %v299, %v306
      %vm1051 = vcmp.gt.s32.totalorder %v299, %v310
      %vm1052 = vcmp.gt.s32.totalorder %v299, %v317
      %vm1053 = vcmp.gt.s32.totalorder %v299, %v321
      %vm1054 = vcmp.gt.s32.totalorder %v299, %v328
      %vm1055 = vcmp.gt.s32.totalorder %v299, %v332
      %vm1056 = vcmp.gt.s32.totalorder %v299, %v339
      %vm1057 = vcmp.gt.s32.totalorder %v299, %v343
      %v1058 = vsel %vm1050, -inf, %v1042
      %v1059 = vsel %vm1051, -inf, %v1043
      %v1060 = vsel %vm1052, -inf, %v1044
      %v1061 = vsel %vm1053, -inf, %v1045
      %v1062 = vsel %vm1054, -inf, %v1046
      %v1063 = vsel %vm1055, -inf, %v1047
      %v1064 = vsel %vm1056, -inf, %v1048
      %v1065 = vsel %vm1057, -inf, %v1049
      %v1066 = vsel %vm368, %v1058, -inf
      %1067 = vmax.xlane.f32.xlu0 %v1066
      %v1068 = vpop.xlane.xlu0 %1067
      %v1069 = vsel %vm368, %v1059, -inf
      %1070 = vmax.xlane.f32.xlu0 %v1069
      %v1071 = vpop.xlane.xlu0 %1070
      %v1072 = vsel %vm368, %v1060, -inf
      %1073 = vmax.xlane.f32.xlu0 %v1072
      %v1074 = vpop.xlane.xlu0 %1073
      %v1075 = vsel %vm368, %v1061, -inf
      %1076 = vmax.xlane.f32.xlu0 %v1075
      %v1077 = vpop.xlane.xlu0 %1076
      %v1078 = vsel %vm368, %v1062, -inf
      %1079 = vmax.xlane.f32.xlu0 %v1078
      %v1080 = vpop.xlane.xlu0 %1079
      %v1081 = vsel %vm368, %v1063, -inf
      %1082 = vmax.xlane.f32.xlu0 %v1081
      %v1083 = vpop.xlane.xlu0 %1082
      %v1084 = vsel %vm368, %v1064, -inf
      %1085 = vmax.xlane.f32.xlu0 %v1084
      %v1086 = vpop.xlane.xlu0 %1085
      %v1087 = vsel %vm368, %v1065, -inf
      %1088 = vmax.xlane.f32.xlu0 %v1087
      %v1089 = vpop.xlane.xlu0 %1088
      %v1090 = vsub.f32 %v1058, %v1068
      %v1091 = vsub.f32 %v1059, %v1071
      %v1092 = vsub.f32 %v1060, %v1074
      %v1093 = vsub.f32 %v1061, %v1077
      %v1094 = vsub.f32 %v1062, %v1080
      %v1095 = vsub.f32 %v1063, %v1083
      %v1096 = vsub.f32 %v1064, %v1086
      %v1097 = vsub.f32 %v1065, %v1089
      %v1098 = vmul.f32 %v1090, 1.442695
      %v1099 = vpow.pop %v1098
      %v1100 = vmul.f32 %v1091, 1.442695
      %v1101 = vpow.pop %v1100
      %v1102 = vmul.f32 %v1092, 1.442695
      %v1103 = vpow.pop %v1102
      %v1104 = vmul.f32 %v1093, 1.442695
      %v1105 = vpow.pop %v1104
      %v1106 = vmul.f32 %v1094, 1.442695
      %v1107 = vpow.pop %v1106
      %v1108 = vmul.f32 %v1095, 1.442695
      %v1109 = vpow.pop %v1108
      %v1110 = vmul.f32 %v1096, 1.442695
      %v1111 = vpow.pop %v1110
      %v1112 = vmul.f32 %v1097, 1.442695
      %v1113 = vpow.pop %v1112
      %v1114 = vsel %vm368, %v1099, 0.0
      %1115 = vadd.xlane.f32.xlu0 %v1114
      %v1116 = vpop.xlane.xlu0 %1115
      %v1117 = vsel %vm368, %v1101, 0.0
      %1118 = vadd.xlane.f32.xlu0 %v1117
      %v1119 = vpop.xlane.xlu0 %1118
      %v1120 = vsel %vm368, %v1103, 0.0
      %1121 = vadd.xlane.f32.xlu0 %v1120
      %v1122 = vpop.xlane.xlu0 %1121
      %v1123 = vsel %vm368, %v1105, 0.0
      %1124 = vadd.xlane.f32.xlu0 %v1123
      %v1125 = vpop.xlane.xlu0 %1124
      %v1126 = vsel %vm368, %v1107, 0.0
      %1127 = vadd.xlane.f32.xlu0 %v1126
      %v1128 = vpop.xlane.xlu0 %1127
      %v1129 = vsel %vm368, %v1109, 0.0
      %1130 = vadd.xlane.f32.xlu0 %v1129
      %v1131 = vpop.xlane.xlu0 %1130
      %v1132 = vsel %vm368, %v1111, 0.0
      %1133 = vadd.xlane.f32.xlu0 %v1132
      %v1134 = vpop.xlane.xlu0 %1133
      %v1135 = vsel %vm368, %v1113, 0.0
      %1136 = vadd.xlane.f32.xlu0 %v1135
      %v1137 = vpop.xlane.xlu0 %1136
      %v1138 = vrcp.pop %v1116
      %v1139 = vrcp.pop %v1119
      %v1140 = vrcp.pop %v1122
      %v1141 = vrcp.pop %v1125
      %v1142 = vrcp.pop %v1128
      %v1143 = vrcp.pop %v1131
      %v1144 = vrcp.pop %v1134
      %v1145 = vrcp.pop %v1137
      %v1146 = vmul.f32 %v1099, %v1138
      %v1147 = vmul.f32 %v1101, %v1139
      %v1148 = vmul.f32 %v1103, %v1140
      %v1149 = vmul.f32 %v1105, %v1141
      %v1150 = vmul.f32 %v1107, %v1142
      %v1151 = vmul.f32 %v1109, %v1143
      %v1152 = vmul.f32 %v1111, %v1144
      %v1153 = vmul.f32 %v1113, %v1145
      %v1155 = vsel %vm368, %v1146, 0
      %v1158 = vsel %vm368, %v1147, 0
      %1160 = vmatprep.subr.mxu0 0.0
      %1161 = vmatpush1.msra.mxu0 %v289
      %1162 = vmatprep.subr.mxu0 0.0
      %1163 = vmatpush1.msra.mxu0 %v290
      %1164 = vmatprep.subr.mxu0 0.0
      %1165 = vmatpush1.msra.mxu0 0.0
      %1166 = vmatprep.subr.mxu0 0.0
      %1167 = vmatpush1.msra.mxu0 0.0
      %1168 = vmatprep.subr.mxu0 0.0
      %1169 = vmatpush1.msra.mxu0 0.0
      %1170 = vmatprep.subr.mxu0 0.0
      %1171 = vmatpush1.msra.mxu0 0.0
      %1172 = vmatprep.subr.mxu0 0.0
      %1173 = vmatpush1.msra.mxu0 0.0
      %1174 = vmatprep.subr.mxu0 0.0
      %1175 = vmatpush1.msra.mxu0 0.0
      %1176 = vmatprep.subr.mxu0 0.0
      %1177 = vmatpush1.msra.mxu0 0.0
      %1178 = vmatprep.subr.mxu0 0.0
      %1179 = vmatpush1.msra.mxu0 0.0
      %1180 = vmatprep.subr.mxu0 0.0
      %1181 = vmatpush1.msra.mxu0 0.0
      %1182 = vmatprep.subr.mxu0 0.0
      %1183 = vmatpush1.msra.mxu0 0.0
      %1184 = vmatprep.subr.mxu0 0.0
      %1185 = vmatpush1.msra.mxu0 0.0
      %1186 = vmatprep.subr.mxu0 0.0
      %1187 = vmatpush1.msra.mxu0 0.0
      %1188 = vmatprep.subr.mxu0 0.0
      %1189 = vmatpush1.msra.mxu0 0.0
      %1190 = vmatprep.subr.mxu0 0.0
      %1191 = vmatpush1.msra.mxu0 0.0
      %1192 = vmatprep.subr.mxu0 0.0
      %1193 = vmatpush1.msra.mxu0 0.0
      %1194 = vmatprep.subr.mxu0 0.0
      %1195 = vmatpush1.msra.mxu0 0.0
      %1196 = vmatprep.subr.mxu0 0.0
      %1197 = vmatpush1.msra.mxu0 0.0
      %1198 = vmatprep.subr.mxu0 0.0
      %1199 = vmatpush1.msra.mxu0 0.0
      %1200 = vmatprep.subr.mxu0 0.0
      %1201 = vmatpush1.msra.mxu0 0.0
      %1202 = vmatprep.subr.mxu0 0.0
      %1203 = vmatpush1.msra.mxu0 0.0
      %1204 = vmatprep.subr.mxu0 0.0
      %1205 = vmatpush1.msra.mxu0 0.0
      %1206 = vmatprep.subr.mxu0 0.0
      %1207 = vmatpush1.msra.mxu0 0.0
      %1208 = vmatprep.subr.mxu0 0.0
      %1209 = vmatpush1.msra.mxu0 0.0
      %1210 = vmatprep.subr.mxu0 0.0
      %1211 = vmatpush1.msra.mxu0 0.0
      %1212 = vmatprep.subr.mxu0 0.0
      %1213 = vmatpush1.msra.mxu0 0.0
      %1214 = vmatprep.subr.mxu0 0.0
      %1215 = vmatpush1.msra.mxu0 0.0
      %1216 = vmatprep.subr.mxu0 0.0
      %1217 = vmatpush1.msra.mxu0 0.0
      %1218 = vmatprep.subr.mxu0 0.0
      %1219 = vmatpush1.msra.mxu0 0.0
      %1220 = vmatprep.subr.mxu0 0.0
      %1221 = vmatpush1.msra.mxu0 0.0
      %1222 = vmatprep.subr.mxu0 0.0
      %1223 = vmatpush1.msra.mxu0 0.0
      %1224 = vmatprep.mubr.f32.mxu0 0.0
      %1225 = vmatmul.mubr.f32.gmra.mrb[0].mxu0 %v1155
      %v1226 = vpop.f32.mrb[0].mxu0
      %v1227 = vadd.f32 0.0, %v1226
      %v1228 = vpop.f32.mrb[0].mxu0
      %1229 = vmatprep.mubr.f32.mxu0 0.0
      %1230 = vmatmul.mubr.f32.gmra.mrb[0].mxu0 %v1158
      %v1231 = vpop.f32.mrb[0].mxu0
      %v1232 = vadd.f32 0.0, %v1231
      %v1233 = vpop.f32.mrb[0].mxu0
      %1234 = vdwg.mxu0
      %v1236 = vsel %vm368, %v1148, 0
      %v1239 = vsel %vm368, %v1149, 0
      %1241 = vmatprep.subr.mxu0 0.0
      %1242 = vmatpush1.msra.mxu0 %v291
      %1243 = vmatprep.subr.mxu0 0.0
      %1244 = vmatpush1.msra.mxu0 %v292
      %1245 = vmatprep.subr.mxu0 0.0
      %1246 = vmatpush1.msra.mxu0 0.0
      %1247 = vmatprep.subr.mxu0 0.0
      %1248 = vmatpush1.msra.mxu0 0.0
      %1249 = vmatprep.subr.mxu0 0.0
      %1250 = vmatpush1.msra.mxu0 0.0
      %1251 = vmatprep.subr.mxu0 0.0
      %1252 = vmatpush1.msra.mxu0 0.0
      %1253 = vmatprep.subr.mxu0 0.0
      %1254 = vmatpush1.msra.mxu0 0.0
      %1255 = vmatprep.subr.mxu0 0.0
      %1256 = vmatpush1.msra.mxu0 0.0
      %1257 = vmatprep.subr.mxu0 0.0
      %1258 = vmatpush1.msra.mxu0 0.0
      %1259 = vmatprep.subr.mxu0 0.0
      %1260 = vmatpush1.msra.mxu0 0.0
      %1261 = vmatprep.subr.mxu0 0.0
      %1262 = vmatpush1.msra.mxu0 0.0
      %1263 = vmatprep.subr.mxu0 0.0
      %1264 = vmatpush1.msra.mxu0 0.0
      %1265 = vmatprep.subr.mxu0 0.0
      %1266 = vmatpush1.msra.mxu0 0.0
      %1267 = vmatprep.subr.mxu0 0.0
      %1268 = vmatpush1.msra.mxu0 0.0
      %1269 = vmatprep.subr.mxu0 0.0
      %1270 = vmatpush1.msra.mxu0 0.0
      %1271 = vmatprep.subr.mxu0 0.0
      %1272 = vmatpush1.msra.mxu0 0.0
      %1273 = vmatprep.subr.mxu0 0.0
      %1274 = vmatpush1.msra.mxu0 0.0
      %1275 = vmatprep.subr.mxu0 0.0
      %1276 = vmatpush1.msra.mxu0 0.0
      %1277 = vmatprep.subr.mxu0 0.0
      %1278 = vmatpush1.msra.mxu0 0.0
      %1279 = vmatprep.subr.mxu0 0.0
      %1280 = vmatpush1.msra.mxu0 0.0
      %1281 = vmatprep.subr.mxu0 0.0
      %1282 = vmatpush1.msra.mxu0 0.0
      %1283 = vmatprep.subr.mxu0 0.0
      %1284 = vmatpush1.msra.mxu0 0.0
      %1285 = vmatprep.subr.mxu0 0.0
      %1286 = vmatpush1.msra.mxu0 0.0
      %1287 = vmatprep.subr.mxu0 0.0
      %1288 = vmatpush1.msra.mxu0 0.0
      %1289 = vmatprep.subr.mxu0 0.0
      %1290 = vmatpush1.msra.mxu0 0.0
      %1291 = vmatprep.subr.mxu0 0.0
      %1292 = vmatpush1.msra.mxu0 0.0
      %1293 = vmatprep.subr.mxu0 0.0
      %1294 = vmatpush1.msra.mxu0 0.0
      %1295 = vmatprep.subr.mxu0 0.0
      %1296 = vmatpush1.msra.mxu0 0.0
      %1297 = vmatprep.subr.mxu0 0.0
      %1298 = vmatpush1.msra.mxu0 0.0
      %1299 = vmatprep.subr.mxu0 0.0
      %1300 = vmatpush1.msra.mxu0 0.0
      %1301 = vmatprep.subr.mxu0 0.0
      %1302 = vmatpush1.msra.mxu0 0.0
      %1303 = vmatprep.subr.mxu0 0.0
      %1304 = vmatpush1.msra.mxu0 0.0
      %1305 = vmatprep.mubr.f32.mxu0 0.0
      %1306 = vmatmul.mubr.f32.gmra.mrb[0].mxu0 %v1236
      %v1307 = vpop.f32.mrb[0].mxu0
      %v1308 = vadd.f32 0.0, %v1307
      %v1309 = vpop.f32.mrb[0].mxu0
      %1310 = vmatprep.mubr.f32.mxu0 0.0
      %1311 = vmatmul.mubr.f32.gmra.mrb[0].mxu0 %v1239
      %v1312 = vpop.f32.mrb[0].mxu0
      %v1313 = vadd.f32 0.0, %v1312
      %v1314 = vpop.f32.mrb[0].mxu0
      %1315 = vdwg.mxu0
      %v1317 = vsel %vm368, %v1150, 0
      %v1320 = vsel %vm368, %v1151, 0
      %1322 = vmatprep.subr.mxu0 0.0
      %1323 = vmatpush1.msra.mxu0 %v293
      %1324 = vmatprep.subr.mxu0 0.0
      %1325 = vmatpush1.msra.mxu0 %v294
      %1326 = vmatprep.subr.mxu0 0.0
      %1327 = vmatpush1.msra.mxu0 0.0
      %1328 = vmatprep.subr.mxu0 0.0
      %1329 = vmatpush1.msra.mxu0 0.0
      %1330 = vmatprep.subr.mxu0 0.0
      %1331 = vmatpush1.msra.mxu0 0.0
      %1332 = vmatprep.subr.mxu0 0.0
      %1333 = vmatpush1.msra.mxu0 0.0
      %1334 = vmatprep.subr.mxu0 0.0
      %1335 = vmatpush1.msra.mxu0 0.0
      %1336 = vmatprep.subr.mxu0 0.0
      %1337 = vmatpush1.msra.mxu0 0.0
      %1338 = vmatprep.subr.mxu0 0.0
      %1339 = vmatpush1.msra.mxu0 0.0
      %1340 = vmatprep.subr.mxu0 0.0
      %1341 = vmatpush1.msra.mxu0 0.0
      %1342 = vmatprep.subr.mxu0 0.0
      %1343 = vmatpush1.msra.mxu0 0.0
      %1344 = vmatprep.subr.mxu0 0.0
      %1345 = vmatpush1.msra.mxu0 0.0
      %1346 = vmatprep.subr.mxu0 0.0
      %1347 = vmatpush1.msra.mxu0 0.0
      %1348 = vmatprep.subr.mxu0 0.0
      %1349 = vmatpush1.msra.mxu0 0.0
      %1350 = vmatprep.subr.mxu0 0.0
      %1351 = vmatpush1.msra.mxu0 0.0
      %1352 = vmatprep.subr.mxu0 0.0
      %1353 = vmatpush1.msra.mxu0 0.0
      %1354 = vmatprep.subr.mxu0 0.0
      %1355 = vmatpush1.msra.mxu0 0.0
      %1356 = vmatprep.subr.mxu0 0.0
      %1357 = vmatpush1.msra.mxu0 0.0
      %1358 = vmatprep.subr.mxu0 0.0
      %1359 = vmatpush1.msra.mxu0 0.0
      %1360 = vmatprep.subr.mxu0 0.0
      %1361 = vmatpush1.msra.mxu0 0.0
      %1362 = vmatprep.subr.mxu0 0.0
      %1363 = vmatpush1.msra.mxu0 0.0
      %1364 = vmatprep.subr.mxu0 0.0
      %1365 = vmatpush1.msra.mxu0 0.0
      %1366 = vmatprep.subr.mxu0 0.0
      %1367 = vmatpush1.msra.mxu0 0.0
      %1368 = vmatprep.subr.mxu0 0.0
      %1369 = vmatpush1.msra.mxu0 0.0
      %1370 = vmatprep.subr.mxu0 0.0
      %1371 = vmatpush1.msra.mxu0 0.0
      %1372 = vmatprep.subr.mxu0 0.0
      %1373 = vmatpush1.msra.mxu0 0.0
      %1374 = vmatprep.subr.mxu0 0.0
      %1375 = vmatpush1.msra.mxu0 0.0
      %1376 = vmatprep.subr.mxu0 0.0
      %1377 = vmatpush1.msra.mxu0 0.0
      %1378 = vmatprep.subr.mxu0 0.0
      %1379 = vmatpush1.msra.mxu0 0.0
      %1380 = vmatprep.subr.mxu0 0.0
      %1381 = vmatpush1.msra.mxu0 0.0
      %1382 = vmatprep.subr.mxu0 0.0
      %1383 = vmatpush1.msra.mxu0 0.0
      %1384 = vmatprep.subr.mxu0 0.0
      %1385 = vmatpush1.msra.mxu0 0.0
      %1386 = vmatprep.mubr.f32.mxu0 0.0
      %1387 = vmatmul.mubr.f32.gmra.mrb[0].mxu0 %v1317
      %v1388 = vpop.f32.mrb[0].mxu0
      %v1389 = vadd.f32 0.0, %v1388
      %v1390 = vpop.f32.mrb[0].mxu0
      %1391 = vmatprep.mubr.f32.mxu0 0.0
      %1392 = vmatmul.mubr.f32.gmra.mrb[0].mxu0 %v1320
      %v1393 = vpop.f32.mrb[0].mxu0
      %v1394 = vadd.f32 0.0, %v1393
      %v1395 = vpop.f32.mrb[0].mxu0
      %1396 = vdwg.mxu0
      %v1398 = vsel %vm368, %v1152, 0
      %v1401 = vsel %vm368, %v1153, 0
      %1403 = vmatprep.subr.mxu0 0.0
      %1404 = vmatpush1.msra.mxu0 %v295
      %1405 = vmatprep.subr.mxu0 0.0
      %1406 = vmatpush1.msra.mxu0 %v296
      %1407 = vmatprep.subr.mxu0 0.0
      %1408 = vmatpush1.msra.mxu0 0.0
      %1409 = vmatprep.subr.mxu0 0.0
      %1410 = vmatpush1.msra.mxu0 0.0
      %1411 = vmatprep.subr.mxu0 0.0
      %1412 = vmatpush1.msra.mxu0 0.0
      %1413 = vmatprep.subr.mxu0 0.0
      %1414 = vmatpush1.msra.mxu0 0.0
      %1415 = vmatprep.subr.mxu0 0.0
      %1416 = vmatpush1.msra.mxu0 0.0
      %1417 = vmatprep.subr.mxu0 0.0
      %1418 = vmatpush1.msra.mxu0 0.0
      %1419 = vmatprep.subr.mxu0 0.0
      %1420 = vmatpush1.msra.mxu0 0.0
      %1421 = vmatprep.subr.mxu0 0.0
      %1422 = vmatpush1.msra.mxu0 0.0
      %1423 = vmatprep.subr.mxu0 0.0
      %1424 = vmatpush1.msra.mxu0 0.0
      %1425 = vmatprep.subr.mxu0 0.0
      %1426 = vmatpush1.msra.mxu0 0.0
      %1427 = vmatprep.subr.mxu0 0.0
      %1428 = vmatpush1.msra.mxu0 0.0
      %1429 = vmatprep.subr.mxu0 0.0
      %1430 = vmatpush1.msra.mxu0 0.0
      %1431 = vmatprep.subr.mxu0 0.0
      %1432 = vmatpush1.msra.mxu0 0.0
      %1433 = vmatprep.subr.mxu0 0.0
      %1434 = vmatpush1.msra.mxu0 0.0
      %1435 = vmatprep.subr.mxu0 0.0
      %1436 = vmatpush1.msra.mxu0 0.0
      %1437 = vmatprep.subr.mxu0 0.0
      %1438 = vmatpush1.msra.mxu0 0.0
      %1439 = vmatprep.subr.mxu0 0.0
      %1440 = vmatpush1.msra.mxu0 0.0
      %1441 = vmatprep.subr.mxu0 0.0
      %1442 = vmatpush1.msra.mxu0 0.0
      %1443 = vmatprep.subr.mxu0 0.0
      %1444 = vmatpush1.msra.mxu0 0.0
      %1445 = vmatprep.subr.mxu0 0.0
      %1446 = vmatpush1.msra.mxu0 0.0
      %1447 = vmatprep.subr.mxu0 0.0
      %1448 = vmatpush1.msra.mxu0 0.0
      %1449 = vmatprep.subr.mxu0 0.0
      %1450 = vmatpush1.msra.mxu0 0.0
      %1451 = vmatprep.subr.mxu0 0.0
      %1452 = vmatpush1.msra.mxu0 0.0
      %1453 = vmatprep.subr.mxu0 0.0
      %1454 = vmatpush1.msra.mxu0 0.0
      %1455 = vmatprep.subr.mxu0 0.0
      %1456 = vmatpush1.msra.mxu0 0.0
      %1457 = vmatprep.subr.mxu0 0.0
      %1458 = vmatpush1.msra.mxu0 0.0
      %1459 = vmatprep.subr.mxu0 0.0
      %1460 = vmatpush1.msra.mxu0 0.0
      %1461 = vmatprep.subr.mxu0 0.0
      %1462 = vmatpush1.msra.mxu0 0.0
      %1463 = vmatprep.subr.mxu0 0.0
      %1464 = vmatpush1.msra.mxu0 0.0
      %1465 = vmatprep.subr.mxu0 0.0
      %1466 = vmatpush1.msra.mxu0 0.0
      %1467 = vmatprep.mubr.f32.mxu0 0.0
      %1468 = vmatmul.mubr.f32.gmra.mrb[0].mxu0 %v1398
      %v1469 = vpop.f32.mrb[0].mxu0
      %v1470 = vadd.f32 0.0, %v1469
      %v1471 = vpop.f32.mrb[0].mxu0
      %1472 = vmatprep.mubr.f32.mxu0 0.0
      %1473 = vmatmul.mubr.f32.gmra.mrb[0].mxu0 %v1401
      %v1474 = vpop.f32.mrb[0].mxu0
      %v1475 = vadd.f32 0.0, %v1474
      %v1476 = vpop.f32.mrb[0].mxu0
      %1477 = vdwg.mxu0
      %v1478 = vlaneseq
      %v1479 = vshrl.u32 %v1478, 7
      %v1480 = vadd.s32 %v1479, 8
      %vm1481 = vcmp.le.s32.totalorder %v299, %v1479
      %vm1482 = vcmp.le.s32.totalorder %v299, %v1480
      %v1483 = vsel %vm1481, 1, 0
      %v1484 = vsel %vm1482, 1, 0
      %v1485 = vcvt.s32.f32 %v1483
      %v1486 = vcvt.s32.f32 %v1484
      %v1488 = vsel %vm368, %v1485, 0
      %v1491 = vsel %vm368, %v1486, 0
      %1493 = vmatprep.subr.mxu0 0.0
      %1494 = vmatpush1.msra.mxu0 %v289
      %1495 = vmatprep.subr.mxu0 0.0
      %1496 = vmatpush1.msra.mxu0 %v290
      %1497 = vmatprep.subr.mxu0 0.0
      %1498 = vmatpush1.msra.mxu0 0.0
      %1499 = vmatprep.subr.mxu0 0.0
      %1500 = vmatpush1.msra.mxu0 0.0
      %1501 = vmatprep.subr.mxu0 0.0
      %1502 = vmatpush1.msra.mxu0 0.0
      %1503 = vmatprep.subr.mxu0 0.0
      %1504 = vmatpush1.msra.mxu0 0.0
      %1505 = vmatprep.subr.mxu0 0.0
      %1506 = vmatpush1.msra.mxu0 0.0
      %1507 = vmatprep.subr.mxu0 0.0
      %1508 = vmatpush1.msra.mxu0 0.0
      %1509 = vmatprep.subr.mxu0 0.0
      %1510 = vmatpush1.msra.mxu0 0.0
      %1511 = vmatprep.subr.mxu0 0.0
      %1512 = vmatpush1.msra.mxu0 0.0
      %1513 = vmatprep.subr.mxu0 0.0
      %1514 = vmatpush1.msra.mxu0 0.0
      %1515 = vmatprep.subr.mxu0 0.0
      %1516 = vmatpush1.msra.mxu0 0.0
      %1517 = vmatprep.subr.mxu0 0.0
      %1518 = vmatpush1.msra.mxu0 0.0
      %1519 = vmatprep.subr.mxu0 0.0
      %1520 = vmatpush1.msra.mxu0 0.0
      %1521 = vmatprep.subr.mxu0 0.0
      %1522 = vmatpush1.msra.mxu0 0.0
      %1523 = vmatprep.subr.mxu0 0.0
      %1524 = vmatpush1.msra.mxu0 0.0
      %1525 = vmatprep.subr.mxu0 0.0
      %1526 = vmatpush1.msra.mxu0 0.0
      %1527 = vmatprep.subr.mxu0 0.0
      %1528 = vmatpush1.msra.mxu0 0.0
      %1529 = vmatprep.subr.mxu0 0.0
      %1530 = vmatpush1.msra.mxu0 0.0
      %1531 = vmatprep.subr.mxu0 0.0
      %1532 = vmatpush1.msra.mxu0 0.0
      %1533 = vmatprep.subr.mxu0 0.0
      %1534 = vmatpush1.msra.mxu0 0.0
      %1535 = vmatprep.subr.mxu0 0.0
      %1536 = vmatpush1.msra.mxu0 0.0
      %1537 = vmatprep.subr.mxu0 0.0
      %1538 = vmatpush1.msra.mxu0 0.0
      %1539 = vmatprep.subr.mxu0 0.0
      %1540 = vmatpush1.msra.mxu0 0.0
      %1541 = vmatprep.subr.mxu0 0.0
      %1542 = vmatpush1.msra.mxu0 0.0
      %1543 = vmatprep.subr.mxu0 0.0
      %1544 = vmatpush1.msra.mxu0 0.0
      %1545 = vmatprep.subr.mxu0 0.0
      %1546 = vmatpush1.msra.mxu0 0.0
      %1547 = vmatprep.subr.mxu0 0.0
      %1548 = vmatpush1.msra.mxu0 0.0
      %1549 = vmatprep.subr.mxu0 0.0
      %1550 = vmatpush1.msra.mxu0 0.0
      %1551 = vmatprep.subr.mxu0 0.0
      %1552 = vmatpush1.msra.mxu0 0.0
      %1553 = vmatprep.subr.mxu0 0.0
      %1554 = vmatpush1.msra.mxu0 0.0
      %1555 = vmatprep.subr.mxu0 0.0
      %1556 = vmatpush1.msra.mxu0 0.0
      %1557 = vmatprep.mubr.f32.mxu0 0.0
      %1558 = vmatmul.mubr.f32.gmra.mrb[0].mxu0 %v1488
      %v1559 = vpop.f32.mrb[0].mxu0
      %v1560 = vadd.f32 0.0, %v1559
      %v1561 = vpop.f32.mrb[0].mxu0
      %1562 = vmatprep.mubr.f32.mxu0 0.0
      %1563 = vmatmul.mubr.f32.gmra.mrb[0].mxu0 %v1491
      %v1564 = vpop.f32.mrb[0].mxu0
      %v1565 = vadd.f32 0.0, %v1564
      %v1566 = vpop.f32.mrb[0].mxu0
      %1567 = vdwg.mxu0
      %1568 = vmatprep.subr.mxu0 0.0
      %1569 = vmatpush1.msra.mxu0 %v291
      %1570 = vmatprep.subr.mxu0 0.0
      %1571 = vmatpush1.msra.mxu0 %v292
      %1572 = vmatprep.subr.mxu0 0.0
      %1573 = vmatpush1.msra.mxu0 0.0
      %1574 = vmatprep.subr.mxu0 0.0
      %1575 = vmatpush1.msra.mxu0 0.0
      %1576 = vmatprep.subr.mxu0 0.0
      %1577 = vmatpush1.msra.mxu0 0.0
      %1578 = vmatprep.subr.mxu0 0.0
      %1579 = vmatpush1.msra.mxu0 0.0
      %1580 = vmatprep.subr.mxu0 0.0
      %1581 = vmatpush1.msra.mxu0 0.0
      %1582 = vmatprep.subr.mxu0 0.0
      %1583 = vmatpush1.msra.mxu0 0.0
      %1584 = vmatprep.subr.mxu0 0.0
      %1585 = vmatpush1.msra.mxu0 0.0
      %1586 = vmatprep.subr.mxu0 0.0
      %1587 = vmatpush1.msra.mxu0 0.0
      %1588 = vmatprep.subr.mxu0 0.0
      %1589 = vmatpush1.msra.mxu0 0.0
      %1590 = vmatprep.subr.mxu0 0.0
      %1591 = vmatpush1.msra.mxu0 0.0
      %1592 = vmatprep.subr.mxu0 0.0
      %1593 = vmatpush1.msra.mxu0 0.0
      %1594 = vmatprep.subr.mxu0 0.0
      %1595 = vmatpush1.msra.mxu0 0.0
      %1596 = vmatprep.subr.mxu0 0.0
      %1597 = vmatpush1.msra.mxu0 0.0
      %1598 = vmatprep.subr.mxu0 0.0
      %1599 = vmatpush1.msra.mxu0 0.0
      %1600 = vmatprep.subr.mxu0 0.0
      %1601 = vmatpush1.msra.mxu0 0.0
      %1602 = vmatprep.subr.mxu0 0.0
      %1603 = vmatpush1.msra.mxu0 0.0
      %1604 = vmatprep.subr.mxu0 0.0
      %1605 = vmatpush1.msra.mxu0 0.0
      %1606 = vmatprep.subr.mxu0 0.0
      %1607 = vmatpush1.msra.mxu0 0.0
      %1608 = vmatprep.subr.mxu0 0.0
      %1609 = vmatpush1.msra.mxu0 0.0
      %1610 = vmatprep.subr.mxu0 0.0
      %1611 = vmatpush1.msra.mxu0 0.0
      %1612 = vmatprep.subr.mxu0 0.0
      %1613 = vmatpush1.msra.mxu0 0.0
      %1614 = vmatprep.subr.mxu0 0.0
      %1615 = vmatpush1.msra.mxu0 0.0
      %1616 = vmatprep.subr.mxu0 0.0
      %1617 = vmatpush1.msra.mxu0 0.0
      %1618 = vmatprep.subr.mxu0 0.0
      %1619 = vmatpush1.msra.mxu0 0.0
      %1620 = vmatprep.subr.mxu0 0.0
      %1621 = vmatpush1.msra.mxu0 0.0
      %1622 = vmatprep.subr.mxu0 0.0
      %1623 = vmatpush1.msra.mxu0 0.0
      %1624 = vmatprep.subr.mxu0 0.0
      %1625 = vmatpush1.msra.mxu0 0.0
      %1626 = vmatprep.subr.mxu0 0.0
      %1627 = vmatpush1.msra.mxu0 0.0
      %1628 = vmatprep.subr.mxu0 0.0
      %1629 = vmatpush1.msra.mxu0 0.0
      %1630 = vmatprep.subr.mxu0 0.0
      %1631 = vmatpush1.msra.mxu0 0.0
      %1632 = vmatprep.mubr.f32.mxu0 0.0
      %1633 = vmatmul.mubr.f32.gmra.mrb[0].mxu0 %v1488
      %v1634 = vpop.f32.mrb[0].mxu0
      %v1635 = vadd.f32 0.0, %v1634
      %v1636 = vpop.f32.mrb[0].mxu0
      %1637 = vmatprep.mubr.f32.mxu0 0.0
      %1638 = vmatmul.mubr.f32.gmra.mrb[0].mxu0 %v1491
      %v1639 = vpop.f32.mrb[0].mxu0
      %v1640 = vadd.f32 0.0, %v1639
      %v1641 = vpop.f32.mrb[0].mxu0
      %1642 = vdwg.mxu0
      %1643 = vmatprep.subr.mxu0 0.0
      %1644 = vmatpush1.msra.mxu0 %v293
      %1645 = vmatprep.subr.mxu0 0.0
      %1646 = vmatpush1.msra.mxu0 %v294
      %1647 = vmatprep.subr.mxu0 0.0
      %1648 = vmatpush1.msra.mxu0 0.0
      %1649 = vmatprep.subr.mxu0 0.0
      %1650 = vmatpush1.msra.mxu0 0.0
      %1651 = vmatprep.subr.mxu0 0.0
      %1652 = vmatpush1.msra.mxu0 0.0
      %1653 = vmatprep.subr.mxu0 0.0
      %1654 = vmatpush1.msra.mxu0 0.0
      %1655 = vmatprep.subr.mxu0 0.0
      %1656 = vmatpush1.msra.mxu0 0.0
      %1657 = vmatprep.subr.mxu0 0.0
      %1658 = vmatpush1.msra.mxu0 0.0
      %1659 = vmatprep.subr.mxu0 0.0
      %1660 = vmatpush1.msra.mxu0 0.0
      %1661 = vmatprep.subr.mxu0 0.0
      %1662 = vmatpush1.msra.mxu0 0.0
      %1663 = vmatprep.subr.mxu0 0.0
      %1664 = vmatpush1.msra.mxu0 0.0
      %1665 = vmatprep.subr.mxu0 0.0
      %1666 = vmatpush1.msra.mxu0 0.0
      %1667 = vmatprep.subr.mxu0 0.0
      %1668 = vmatpush1.msra.mxu0 0.0
      %1669 = vmatprep.subr.mxu0 0.0
      %1670 = vmatpush1.msra.mxu0 0.0
      %1671 = vmatprep.subr.mxu0 0.0
      %1672 = vmatpush1.msra.mxu0 0.0
      %1673 = vmatprep.subr.mxu0 0.0
      %1674 = vmatpush1.msra.mxu0 0.0
      %1675 = vmatprep.subr.mxu0 0.0
      %1676 = vmatpush1.msra.mxu0 0.0
      %1677 = vmatprep.subr.mxu0 0.0
      %1678 = vmatpush1.msra.mxu0 0.0
      %1679 = vmatprep.subr.mxu0 0.0
      %1680 = vmatpush1.msra.mxu0 0.0
      %1681 = vmatprep.subr.mxu0 0.0
      %1682 = vmatpush1.msra.mxu0 0.0
      %1683 = vmatprep.subr.mxu0 0.0
      %1684 = vmatpush1.msra.mxu0 0.0
      %1685 = vmatprep.subr.mxu0 0.0
      %1686 = vmatpush1.msra.mxu0 0.0
      %1687 = vmatprep.subr.mxu0 0.0
      %1688 = vmatpush1.msra.mxu0 0.0
      %1689 = vmatprep.subr.mxu0 0.0
      %1690 = vmatpush1.msra.mxu0 0.0
      %1691 = vmatprep.subr.mxu0 0.0
      %1692 = vmatpush1.msra.mxu0 0.0
      %1693 = vmatprep.subr.mxu0 0.0
      %1694 = vmatpush1.msra.mxu0 0.0
      %1695 = vmatprep.subr.mxu0 0.0
      %1696 = vmatpush1.msra.mxu0 0.0
      %1697 = vmatprep.subr.mxu0 0.0
      %1698 = vmatpush1.msra.mxu0 0.0
      %1699 = vmatprep.subr.mxu0 0.0
      %1700 = vmatpush1.msra.mxu0 0.0
      %1701 = vmatprep.subr.mxu0 0.0
      %1702 = vmatpush1.msra.mxu0 0.0
      %1703 = vmatprep.subr.mxu0 0.0
      %1704 = vmatpush1.msra.mxu0 0.0
      %1705 = vmatprep.subr.mxu0 0.0
      %1706 = vmatpush1.msra.mxu0 0.0
      %1707 = vmatprep.mubr.f32.mxu0 0.0
      %1708 = vmatmul.mubr.f32.gmra.mrb[0].mxu0 %v1488
      %v1709 = vpop.f32.mrb[0].mxu0
      %v1710 = vadd.f32 0.0, %v1709
      %v1711 = vpop.f32.mrb[0].mxu0
      %1712 = vmatprep.mubr.f32.mxu0 0.0
      %1713 = vmatmul.mubr.f32.gmra.mrb[0].mxu0 %v1491
      %v1714 = vpop.f32.mrb[0].mxu0
      %v1715 = vadd.f32 0.0, %v1714
      %v1716 = vpop.f32.mrb[0].mxu0
      %1717 = vdwg.mxu0
      %1718 = vmatprep.subr.mxu0 0.0
      %1719 = vmatpush1.msra.mxu0 %v295
      %1720 = vmatprep.subr.mxu0 0.0
      %1721 = vmatpush1.msra.mxu0 %v296
      %1722 = vmatprep.subr.mxu0 0.0
      %1723 = vmatpush1.msra.mxu0 0.0
      %1724 = vmatprep.subr.mxu0 0.0
      %1725 = vmatpush1.msra.mxu0 0.0
      %1726 = vmatprep.subr.mxu0 0.0
      %1727 = vmatpush1.msra.mxu0 0.0
      %1728 = vmatprep.subr.mxu0 0.0
      %1729 = vmatpush1.msra.mxu0 0.0
      %1730 = vmatprep.subr.mxu0 0.0
      %1731 = vmatpush1.msra.mxu0 0.0
      %1732 = vmatprep.subr.mxu0 0.0
      %1733 = vmatpush1.msra.mxu0 0.0
      %1734 = vmatprep.subr.mxu0 0.0
      %1735 = vmatpush1.msra.mxu0 0.0
      %1736 = vmatprep.subr.mxu0 0.0
      %1737 = vmatpush1.msra.mxu0 0.0
      %1738 = vmatprep.subr.mxu0 0.0
      %1739 = vmatpush1.msra.mxu0 0.0
      %1740 = vmatprep.subr.mxu0 0.0
      %1741 = vmatpush1.msra.mxu0 0.0
      %1742 = vmatprep.subr.mxu0 0.0
      %1743 = vmatpush1.msra.mxu0 0.0
      %1744 = vmatprep.subr.mxu0 0.0
      %1745 = vmatpush1.msra.mxu0 0.0
      %1746 = vmatprep.subr.mxu0 0.0
      %1747 = vmatpush1.msra.mxu0 0.0
      %1748 = vmatprep.subr.mxu0 0.0
      %1749 = vmatpush1.msra.mxu0 0.0
      %1750 = vmatprep.subr.mxu0 0.0
      %1751 = vmatpush1.msra.mxu0 0.0
      %1752 = vmatprep.subr.mxu0 0.0
      %1753 = vmatpush1.msra.mxu0 0.0
      %1754 = vmatprep.subr.mxu0 0.0
      %1755 = vmatpush1.msra.mxu0 0.0
      %1756 = vmatprep.subr.mxu0 0.0
      %1757 = vmatpush1.msra.mxu0 0.0
      %1758 = vmatprep.subr.mxu0 0.0
      %1759 = vmatpush1.msra.mxu0 0.0
      %1760 = vmatprep.subr.mxu0 0.0
      %1761 = vmatpush1.msra.mxu0 0.0
      %1762 = vmatprep.subr.mxu0 0.0
      %1763 = vmatpush1.msra.mxu0 0.0
      %1764 = vmatprep.subr.mxu0 0.0
      %1765 = vmatpush1.msra.mxu0 0.0
      %1766 = vmatprep.subr.mxu0 0.0
      %1767 = vmatpush1.msra.mxu0 0.0
      %1768 = vmatprep.subr.mxu0 0.0
      %1769 = vmatpush1.msra.mxu0 0.0
      %1770 = vmatprep.subr.mxu0 0.0
      %1771 = vmatpush1.msra.mxu0 0.0
      %1772 = vmatprep.subr.mxu0 0.0
      %1773 = vmatpush1.msra.mxu0 0.0
      %1774 = vmatprep.subr.mxu0 0.0
      %1775 = vmatpush1.msra.mxu0 0.0
      %1776 = vmatprep.subr.mxu0 0.0
      %1777 = vmatpush1.msra.mxu0 0.0
      %1778 = vmatprep.subr.mxu0 0.0
      %1779 = vmatpush1.msra.mxu0 0.0
      %1780 = vmatprep.subr.mxu0 0.0
      %1781 = vmatpush1.msra.mxu0 0.0
      %1782 = vmatprep.mubr.f32.mxu0 0.0
      %1783 = vmatmul.mubr.f32.gmra.mrb[0].mxu0 %v1488
      %v1784 = vpop.f32.mrb[0].mxu0
      %v1785 = vadd.f32 0.0, %v1784
      %v1786 = vpop.f32.mrb[0].mxu0
      %1787 = vmatprep.mubr.f32.mxu0 0.0
      %1788 = vmatmul.mubr.f32.gmra.mrb[0].mxu0 %v1491
      %v1789 = vpop.f32.mrb[0].mxu0
      %v1790 = vadd.f32 0.0, %v1789
      %v1791 = vpop.f32.mrb[0].mxu0
      %1792 = vdwg.mxu0
      %v1794 = vunpack.c.l.s4 1966171168
      %v1795 = vunpack.c.0.s8 %v1794
      %v1796 = vlaneseq
      %v1797 = vshrl.u32 %v1796, 7
      %v1798 = vsub.s32 %v1795, %v1797
      %v1799 = vrot.slane %v297, %v1798
      %v1800 = vcombine.high %v1799, %v1799
      %v1802 = vunpack.c.l.s4 1966171168
      %v1803 = vunpack.c.0.s8 %v1802
      %v1804 = vlaneseq
      %v1805 = vshrl.u32 %v1804, 7
      %v1806 = vsub.s32 %v1803, %v1805
      %v1807 = vrot.slane %v1799, %v1806
      %v1809 = vunpack.c.l.s4 1966171168
      %v1810 = vunpack.c.0.s8 %v1809
      %v1811 = vlaneseq
      %v1812 = vshrl.u32 %v1811, 7
      %v1813 = vsub.s32 %v1810, %v1812
      %v1814 = vrot.slane %v1800, %v1813
      %v1815 = vcombine.high %v1807, %v1807
      %v1816 = vcombine.high %v1814, %v1814
      %v1817 = vlaneseq
      %v1818 = vshrl.u32 %v1817, 7
      %v1819 = vsub.s32 0, %v1818
      %v1820 = vrot.slane %v1807, %v1819
      %v1821 = vlaneseq
      %v1822 = vshrl.u32 %v1821, 7
      %v1823 = vsub.s32 0, %v1822
      %v1824 = vrot.slane %v1814, %v1823
      %v1825 = vlaneseq
      %v1826 = vshrl.u32 %v1825, 7
      %v1827 = vsub.s32 0, %v1826
      %v1828 = vrot.slane %v1815, %v1827
      %v1829 = vlaneseq
      %v1830 = vshrl.u32 %v1829, 7
      %v1831 = vsub.s32 0, %v1830
      %v1832 = vrot.slane %v1816, %v1831
      %vm1833 = vcmp.eq.s32.totalorder %v1479, %v1820
      %vm1834 = vcmp.eq.s32.totalorder %v1480, %v1820
      %vm1835 = vcmp.eq.s32.totalorder %v1479, %v1824
      %vm1836 = vcmp.eq.s32.totalorder %v1480, %v1824
      %vm1837 = vcmp.eq.s32.totalorder %v1479, %v1828
      %vm1838 = vcmp.eq.s32.totalorder %v1480, %v1828
      %vm1839 = vcmp.eq.s32.totalorder %v1479, %v1832
      %vm1840 = vcmp.eq.s32.totalorder %v1480, %v1832
      %v1841 = vsel %vm1833, 1, 0
      %v1842 = vsel %vm1834, 1, 0
      %v1843 = vsel %vm1835, 1, 0
      %v1844 = vsel %vm1836, 1, 0
      %v1845 = vsel %vm1837, 1, 0
      %v1846 = vsel %vm1838, 1, 0
      %v1847 = vsel %vm1839, 1, 0
      %v1848 = vsel %vm1840, 1, 0
      %v1849 = vcvt.s32.f32 %v1841
      %v1850 = vcvt.s32.f32 %v1842
      %v1851 = vcvt.s32.f32 %v1843
      %v1852 = vcvt.s32.f32 %v1844
      %v1853 = vcvt.s32.f32 %v1845
      %v1854 = vcvt.s32.f32 %v1846
      %v1855 = vcvt.s32.f32 %v1847
      %v1856 = vcvt.s32.f32 %v1848
      %v1858 = vsel %vm368, %v1849, 0
      %v1861 = vsel %vm368, %v1850, 0
      %1863 = vmatprep.subr.mxu0 0.0
      %1864 = vmatpush1.msra.mxu0 %v1227
      %1865 = vmatprep.subr.mxu0 0.0
      %1866 = vmatpush1.msra.mxu0 %v1232
      %1867 = vmatprep.subr.mxu0 0.0
      %1868 = vmatpush1.msra.mxu0 0.0
      %1869 = vmatprep.subr.mxu0 0.0
      %1870 = vmatpush1.msra.mxu0 0.0
      %1871 = vmatprep.subr.mxu0 0.0
      %1872 = vmatpush1.msra.mxu0 0.0
      %1873 = vmatprep.subr.mxu0 0.0
      %1874 = vmatpush1.msra.mxu0 0.0
      %1875 = vmatprep.subr.mxu0 0.0
      %1876 = vmatpush1.msra.mxu0 0.0
      %1877 = vmatprep.subr.mxu0 0.0
      %1878 = vmatpush1.msra.mxu0 0.0
      %1879 = vmatprep.subr.mxu0 0.0
      %1880 = vmatpush1.msra.mxu0 0.0
      %1881 = vmatprep.subr.mxu0 0.0
      %1882 = vmatpush1.msra.mxu0 0.0
      %1883 = vmatprep.subr.mxu0 0.0
      %1884 = vmatpush1.msra.mxu0 0.0
      %1885 = vmatprep.subr.mxu0 0.0
      %1886 = vmatpush1.msra.mxu0 0.0
      %1887 = vmatprep.subr.mxu0 0.0
      %1888 = vmatpush1.msra.mxu0 0.0
      %1889 = vmatprep.subr.mxu0 0.0
      %1890 = vmatpush1.msra.mxu0 0.0
      %1891 = vmatprep.subr.mxu0 0.0
      %1892 = vmatpush1.msra.mxu0 0.0
      %1893 = vmatprep.subr.mxu0 0.0
      %1894 = vmatpush1.msra.mxu0 0.0
      %1895 = vmatprep.subr.mxu0 0.0
      %1896 = vmatpush1.msra.mxu0 0.0
      %1897 = vmatprep.subr.mxu0 0.0
      %1898 = vmatpush1.msra.mxu0 0.0
      %1899 = vmatprep.subr.mxu0 0.0
      %1900 = vmatpush1.msra.mxu0 0.0
      %1901 = vmatprep.subr.mxu0 0.0
      %1902 = vmatpush1.msra.mxu0 0.0
      %1903 = vmatprep.subr.mxu0 0.0
      %1904 = vmatpush1.msra.mxu0 0.0
      %1905 = vmatprep.subr.mxu0 0.0
      %1906 = vmatpush1.msra.mxu0 0.0
      %1907 = vmatprep.subr.mxu0 0.0
      %1908 = vmatpush1.msra.mxu0 0.0
      %1909 = vmatprep.subr.mxu0 0.0
      %1910 = vmatpush1.msra.mxu0 0.0
      %1911 = vmatprep.subr.mxu0 0.0
      %1912 = vmatpush1.msra.mxu0 0.0
      %1913 = vmatprep.subr.mxu0 0.0
      %1914 = vmatpush1.msra.mxu0 0.0
      %1915 = vmatprep.subr.mxu0 0.0
      %1916 = vmatpush1.msra.mxu0 0.0
      %1917 = vmatprep.subr.mxu0 0.0
      %1918 = vmatpush1.msra.mxu0 0.0
      %1919 = vmatprep.subr.mxu0 0.0
      %1920 = vmatpush1.msra.mxu0 0.0
      %1921 = vmatprep.subr.mxu0 0.0
      %1922 = vmatpush1.msra.mxu0 0.0
      %1923 = vmatprep.subr.mxu0 0.0
      %1924 = vmatpush1.msra.mxu0 0.0
      %1925 = vmatprep.subr.mxu0 0.0
      %1926 = vmatpush1.msra.mxu0 0.0
      %1927 = vmatprep.mubr.f32.mxu0 0.0
      %1928 = vmatmul.mubr.f32.gmra.mrb[0].mxu0 %v1858
      %v1929 = vpop.f32.mrb[0].mxu0
      %v1930 = vadd.f32 0.0, %v1929
      %v1931 = vpop.f32.mrb[0].mxu0
      %1932 = vmatprep.mubr.f32.mxu0 0.0
      %1933 = vmatmul.mubr.f32.gmra.mrb[0].mxu0 %v1861
      %v1934 = vpop.f32.mrb[0].mxu0
      %v1935 = vadd.f32 0.0, %v1934
      %v1936 = vpop.f32.mrb[0].mxu0
      %1937 = vdwg.mxu0
      %v1939 = vsel %vm368, %v1851, 0
      %v1942 = vsel %vm368, %v1852, 0
      %1944 = vmatprep.subr.mxu0 0.0
      %1945 = vmatpush1.msra.mxu0 %v1308
      %1946 = vmatprep.subr.mxu0 0.0
      %1947 = vmatpush1.msra.mxu0 %v1313
      %1948 = vmatprep.subr.mxu0 0.0
      %1949 = vmatpush1.msra.mxu0 0.0
      %1950 = vmatprep.subr.mxu0 0.0
      %1951 = vmatpush1.msra.mxu0 0.0
      %1952 = vmatprep.subr.mxu0 0.0
      %1953 = vmatpush1.msra.mxu0 0.0
      %1954 = vmatprep.subr.mxu0 0.0
      %1955 = vmatpush1.msra.mxu0 0.0
      %1956 = vmatprep.subr.mxu0 0.0
      %1957 = vmatpush1.msra.mxu0 0.0
      %1958 = vmatprep.subr.mxu0 0.0
      %1959 = vmatpush1.msra.mxu0 0.0
      %1960 = vmatprep.subr.mxu0 0.0
      %1961 = vmatpush1.msra.mxu0 0.0
      %1962 = vmatprep.subr.mxu0 0.0
      %1963 = vmatpush1.msra.mxu0 0.0
      %1964 = vmatprep.subr.mxu0 0.0
      %1965 = vmatpush1.msra.mxu0 0.0
      %1966 = vmatprep.subr.mxu0 0.0
      %1967 = vmatpush1.msra.mxu0 0.0
      %1968 = vmatprep.subr.mxu0 0.0
      %1969 = vmatpush1.msra.mxu0 0.0
      %1970 = vmatprep.subr.mxu0 0.0
      %1971 = vmatpush1.msra.mxu0 0.0
      %1972 = vmatprep.subr.mxu0 0.0
      %1973 = vmatpush1.msra.mxu0 0.0
      %1974 = vmatprep.subr.mxu0 0.0
      %1975 = vmatpush1.msra.mxu0 0.0
      %1976 = vmatprep.subr.mxu0 0.0
      %1977 = vmatpush1.msra.mxu0 0.0
      %1978 = vmatprep.subr.mxu0 0.0
      %1979 = vmatpush1.msra.mxu0 0.0
      %1980 = vmatprep.subr.mxu0 0.0
      %1981 = vmatpush1.msra.mxu0 0.0
      %1982 = vmatprep.subr.mxu0 0.0
      %1983 = vmatpush1.msra.mxu0 0.0
      %1984 = vmatprep.subr.mxu0 0.0
      %1985 = vmatpush1.msra.mxu0 0.0
      %1986 = vmatprep.subr.mxu0 0.0
      %1987 = vmatpush1.msra.mxu0 0.0
      %1988 = vmatprep.subr.mxu0 0.0
      %1989 = vmatpush1.msra.mxu0 0.0
      %1990 = vmatprep.subr.mxu0 0.0
      %1991 = vmatpush1.msra.mxu0 0.0
      %1992 = vmatprep.subr.mxu0 0.0
      %1993 = vmatpush1.msra.mxu0 0.0
      %1994 = vmatprep.subr.mxu0 0.0
      %1995 = vmatpush1.msra.mxu0 0.0
      %1996 = vmatprep.subr.mxu0 0.0
      %1997 = vmatpush1.msra.mxu0 0.0
      %1998 = vmatprep.subr.mxu0 0.0
      %1999 = vmatpush1.msra.mxu0 0.0
      %2000 = vmatprep.subr.mxu0 0.0
      %2001 = vmatpush1.msra.mxu0 0.0
      %2002 = vmatprep.subr.mxu0 0.0
      %2003 = vmatpush1.msra.mxu0 0.0
      %2004 = vmatprep.subr.mxu0 0.0
      %2005 = vmatpush1.msra.mxu0 0.0
      %2006 = vmatprep.subr.mxu0 0.0
      %2007 = vmatpush1.msra.mxu0 0.0
      %2008 = vmatprep.mubr.f32.mxu0 0.0
      %2009 = vmatmul.mubr.f32.gmra.mrb[0].mxu0 %v1939
      %v2010 = vpop.f32.mrb[0].mxu0
      %v2011 = vadd.f32 0.0, %v2010
      %v2012 = vpop.f32.mrb[0].mxu0
      %2013 = vmatprep.mubr.f32.mxu0 0.0
      %2014 = vmatmul.mubr.f32.gmra.mrb[0].mxu0 %v1942
      %v2015 = vpop.f32.mrb[0].mxu0
      %v2016 = vadd.f32 0.0, %v2015
      %v2017 = vpop.f32.mrb[0].mxu0
      %2018 = vdwg.mxu0
      %v2020 = vsel %vm368, %v1853, 0
      %v2023 = vsel %vm368, %v1854, 0
      %2025 = vmatprep.subr.mxu0 0.0
      %2026 = vmatpush1.msra.mxu0 %v1389
      %2027 = vmatprep.subr.mxu0 0.0
      %2028 = vmatpush1.msra.mxu0 %v1394
      %2029 = vmatprep.subr.mxu0 0.0
      %2030 = vmatpush1.msra.mxu0 0.0
      %2031 = vmatprep.subr.mxu0 0.0
      %2032 = vmatpush1.msra.mxu0 0.0
      %2033 = vmatprep.subr.mxu0 0.0
      %2034 = vmatpush1.msra.mxu0 0.0
      %2035 = vmatprep.subr.mxu0 0.0
      %2036 = vmatpush1.msra.mxu0 0.0
      %2037 = vmatprep.subr.mxu0 0.0
      %2038 = vmatpush1.msra.mxu0 0.0
      %2039 = vmatprep.subr.mxu0 0.0
      %2040 = vmatpush1.msra.mxu0 0.0
      %2041 = vmatprep.subr.mxu0 0.0
      %2042 = vmatpush1.msra.mxu0 0.0
      %2043 = vmatprep.subr.mxu0 0.0
      %2044 = vmatpush1.msra.mxu0 0.0
      %2045 = vmatprep.subr.mxu0 0.0
      %2046 = vmatpush1.msra.mxu0 0.0
      %2047 = vmatprep.subr.mxu0 0.0
      %2048 = vmatpush1.msra.mxu0 0.0
      %2049 = vmatprep.subr.mxu0 0.0
      %2050 = vmatpush1.msra.mxu0 0.0
      %2051 = vmatprep.subr.mxu0 0.0
      %2052 = vmatpush1.msra.mxu0 0.0
      %2053 = vmatprep.subr.mxu0 0.0
      %2054 = vmatpush1.msra.mxu0 0.0
      %2055 = vmatprep.subr.mxu0 0.0
      %2056 = vmatpush1.msra.mxu0 0.0
      %2057 = vmatprep.subr.mxu0 0.0
      %2058 = vmatpush1.msra.mxu0 0.0
      %2059 = vmatprep.subr.mxu0 0.0
      %2060 = vmatpush1.msra.mxu0 0.0
      %2061 = vmatprep.subr.mxu0 0.0
      %2062 = vmatpush1.msra.mxu0 0.0
      %2063 = vmatprep.subr.mxu0 0.0
      %2064 = vmatpush1.msra.mxu0 0.0
      %2065 = vmatprep.subr.mxu0 0.0
      %2066 = vmatpush1.msra.mxu0 0.0
      %2067 = vmatprep.subr.mxu0 0.0
      %2068 = vmatpush1.msra.mxu0 0.0
      %2069 = vmatprep.subr.mxu0 0.0
      %2070 = vmatpush1.msra.mxu0 0.0
      %2071 = vmatprep.subr.mxu0 0.0
      %2072 = vmatpush1.msra.mxu0 0.0
      %2073 = vmatprep.subr.mxu0 0.0
      %2074 = vmatpush1.msra.mxu0 0.0
      %2075 = vmatprep.subr.mxu0 0.0
      %2076 = vmatpush1.msra.mxu0 0.0
      %2077 = vmatprep.subr.mxu0 0.0
      %2078 = vmatpush1.msra.mxu0 0.0
      %2079 = vmatprep.subr.mxu0 0.0
      %2080 = vmatpush1.msra.mxu0 0.0
      %2081 = vmatprep.subr.mxu0 0.0
      %2082 = vmatpush1.msra.mxu0 0.0
      %2083 = vmatprep.subr.mxu0 0.0
      %2084 = vmatpush1.msra.mxu0 0.0
      %2085 = vmatprep.subr.mxu0 0.0
      %2086 = vmatpush1.msra.mxu0 0.0
      %2087 = vmatprep.subr.mxu0 0.0
      %2088 = vmatpush1.msra.mxu0 0.0
      %2089 = vmatprep.mubr.f32.mxu0 0.0
      %2090 = vmatmul.mubr.f32.gmra.mrb[0].mxu0 %v2020
      %v2091 = vpop.f32.mrb[0].mxu0
      %v2092 = vadd.f32 0.0, %v2091
      %v2093 = vpop.f32.mrb[0].mxu0
      %2094 = vmatprep.mubr.f32.mxu0 0.0
      %2095 = vmatmul.mubr.f32.gmra.mrb[0].mxu0 %v2023
      %v2096 = vpop.f32.mrb[0].mxu0
      %v2097 = vadd.f32 0.0, %v2096
      %v2098 = vpop.f32.mrb[0].mxu0
      %2099 = vdwg.mxu0
      %v2101 = vsel %vm368, %v1855, 0
      %v2104 = vsel %vm368, %v1856, 0
      %2106 = vmatprep.subr.mxu0 0.0
      %2107 = vmatpush1.msra.mxu0 %v1470
      %2108 = vmatprep.subr.mxu0 0.0
      %2109 = vmatpush1.msra.mxu0 %v1475
      %2110 = vmatprep.subr.mxu0 0.0
      %2111 = vmatpush1.msra.mxu0 0.0
      %2112 = vmatprep.subr.mxu0 0.0
      %2113 = vmatpush1.msra.mxu0 0.0
      %2114 = vmatprep.subr.mxu0 0.0
      %2115 = vmatpush1.msra.mxu0 0.0
      %2116 = vmatprep.subr.mxu0 0.0
      %2117 = vmatpush1.msra.mxu0 0.0
      %2118 = vmatprep.subr.mxu0 0.0
      %2119 = vmatpush1.msra.mxu0 0.0
      %2120 = vmatprep.subr.mxu0 0.0
      %2121 = vmatpush1.msra.mxu0 0.0
      %2122 = vmatprep.subr.mxu0 0.0
      %2123 = vmatpush1.msra.mxu0 0.0
      %2124 = vmatprep.subr.mxu0 0.0
      %2125 = vmatpush1.msra.mxu0 0.0
      %2126 = vmatprep.subr.mxu0 0.0
      %2127 = vmatpush1.msra.mxu0 0.0
      %2128 = vmatprep.subr.mxu0 0.0
      %2129 = vmatpush1.msra.mxu0 0.0
      %2130 = vmatprep.subr.mxu0 0.0
      %2131 = vmatpush1.msra.mxu0 0.0
      %2132 = vmatprep.subr.mxu0 0.0
      %2133 = vmatpush1.msra.mxu0 0.0
      %2134 = vmatprep.subr.mxu0 0.0
      %2135 = vmatpush1.msra.mxu0 0.0
      %2136 = vmatprep.subr.mxu0 0.0
      %2137 = vmatpush1.msra.mxu0 0.0
      %2138 = vmatprep.subr.mxu0 0.0
      %2139 = vmatpush1.msra.mxu0 0.0
      %2140 = vmatprep.subr.mxu0 0.0
      %2141 = vmatpush1.msra.mxu0 0.0
      %2142 = vmatprep.subr.mxu0 0.0
      %2143 = vmatpush1.msra.mxu0 0.0
      %2144 = vmatprep.subr.mxu0 0.0
      %2145 = vmatpush1.msra.mxu0 0.0
      %2146 = vmatprep.subr.mxu0 0.0
      %2147 = vmatpush1.msra.mxu0 0.0
      %2148 = vmatprep.subr.mxu0 0.0
      %2149 = vmatpush1.msra.mxu0 0.0
      %2150 = vmatprep.subr.mxu0 0.0
      %2151 = vmatpush1.msra.mxu0 0.0
      %2152 = vmatprep.subr.mxu0 0.0
      %2153 = vmatpush1.msra.mxu0 0.0
      %2154 = vmatprep.subr.mxu0 0.0
      %2155 = vmatpush1.msra.mxu0 0.0
      %2156 = vmatprep.subr.mxu0 0.0
      %2157 = vmatpush1.msra.mxu0 0.0
      %2158 = vmatprep.subr.mxu0 0.0
      %2159 = vmatpush1.msra.mxu0 0.0
      %2160 = vmatprep.subr.mxu0 0.0
      %2161 = vmatpush1.msra.mxu0 0.0
      %2162 = vmatprep.subr.mxu0 0.0
      %2163 = vmatpush1.msra.mxu0 0.0
      %2164 = vmatprep.subr.mxu0 0.0
      %2165 = vmatpush1.msra.mxu0 0.0
      %2166 = vmatprep.subr.mxu0 0.0
      %2167 = vmatpush1.msra.mxu0 0.0
      %2168 = vmatprep.subr.mxu0 0.0
      %2169 = vmatpush1.msra.mxu0 0.0
      %2170 = vmatprep.mubr.f32.mxu0 0.0
      %2171 = vmatmul.mubr.f32.gmra.mrb[0].mxu0 %v2101
      %v2172 = vpop.f32.mrb[0].mxu0
      %v2173 = vadd.f32 0.0, %v2172
      %v2174 = vpop.f32.mrb[0].mxu0
      %2175 = vmatprep.mubr.f32.mxu0 0.0
      %2176 = vmatmul.mubr.f32.gmra.mrb[0].mxu0 %v2104
      %v2177 = vpop.f32.mrb[0].mxu0
      %v2178 = vadd.f32 0.0, %v2177
      %v2179 = vpop.f32.mrb[0].mxu0
      %2180 = vdwg.mxu0
      %v2181 = vsel %vm368, %v1849, 0.0
      %2182 = vadd.xlane.f32.xlu0 %v2181
      %v2183 = vpop.xlane.xlu0 %2182
      %v2184 = vsel %vm368, %v1850, 0.0
      %2185 = vadd.xlane.f32.xlu0 %v2184
      %v2186 = vpop.xlane.xlu0 %2185
      %v2187 = vsel %vm368, %v1851, 0.0
      %2188 = vadd.xlane.f32.xlu0 %v2187
      %v2189 = vpop.xlane.xlu0 %2188
      %v2190 = vsel %vm368, %v1852, 0.0
      %2191 = vadd.xlane.f32.xlu0 %v2190
      %v2192 = vpop.xlane.xlu0 %2191
      %v2193 = vsel %vm368, %v1853, 0.0
      %2194 = vadd.xlane.f32.xlu0 %v2193
      %v2195 = vpop.xlane.xlu0 %2194
      %v2196 = vsel %vm368, %v1854, 0.0
      %2197 = vadd.xlane.f32.xlu0 %v2196
      %v2198 = vpop.xlane.xlu0 %2197
      %v2199 = vsel %vm368, %v1855, 0.0
      %2200 = vadd.xlane.f32.xlu0 %v2199
      %v2201 = vpop.xlane.xlu0 %2200
      %v2202 = vsel %vm368, %v1856, 0.0
      %2203 = vadd.xlane.f32.xlu0 %v2202
      %v2204 = vpop.xlane.xlu0 %2203
      %v2205 = vsub.f32 1.0, %v2183
      %v2206 = vsub.f32 1.0, %v2186
      %v2207 = vsub.f32 1.0, %v2189
      %v2208 = vsub.f32 1.0, %v2192
      %v2209 = vsub.f32 1.0, %v2195
      %v2210 = vsub.f32 1.0, %v2198
      %v2211 = vsub.f32 1.0, %v2201
      %v2212 = vsub.f32 1.0, %v2204
      %v2213 = vmul.f32 %v1560, %v2205
      %v2214 = vmul.f32 %v1565, %v2206
      %v2215 = vmul.f32 %v1635, %v2207
      %v2216 = vmul.f32 %v1640, %v2208
      %v2217 = vmul.f32 %v1710, %v2209
      %v2218 = vmul.f32 %v1715, %v2210
      %v2219 = vmul.f32 %v1785, %v2211
      %v2220 = vmul.f32 %v1790, %v2212
      %v2221 = vadd.f32 %v2213, %v1930
      %v2222 = vadd.f32 %v2214, %v1935
      %v2223 = vadd.f32 %v2215, %v2011
      %v2224 = vadd.f32 %v2216, %v2016
      %v2225 = vadd.f32 %v2217, %v2092
      %v2226 = vadd.f32 %v2218, %v2097
      %v2227 = vadd.f32 %v2219, %v2173
      %v2228 = vadd.f32 %v2220, %v2178
      %2229 = vst.msk [vmem:[%s271] sm:$0xff] %vm693, %v2221
      %2230 = vst.msk [vmem:[%s271 + $0x8] sm:$0xff] %vm693, %v2222
      %2231 = vst.msk [vmem:[%s271 + $0x10] sm:$0xff] %vm693, %v2223
      %2232 = vst.msk [vmem:[%s271 + $0x18] sm:$0xff] %vm693, %v2224
      %2233 = vst.msk [vmem:[%s271 + $0x20] sm:$0xff] %vm693, %v2225
      %2234 = vst.msk [vmem:[%s271 + $0x28] sm:$0xff] %vm693, %v2226
      %2235 = vst.msk [vmem:[%s271 + $0x30] sm:$0xff] %vm693, %v2227
      %2236 = vst.msk [vmem:[%s271 + $0x38] sm:$0xff] %vm693, %v2228
      %s2237 = smul.u32 4, %s15
      %p2238 = scmp.lt.s32.totalorder %s2237, 7
      %s2239 = scalar_select %p2238, %s2237, 7
      %s2240 = smul.addr %s2239, 2
      %s2241 = smul.addr %s2240, 8
      %s2242 = scalar_lea.vmem %s4, %s2241
      // Predicated region
      $region37: #{cross_attention_block_forward.7} parent=35 // pred_check
        %p2243 = pneg %p137
      $region38: #{cross_attention_block_forward.7} parent=35 // pred_check_branch
        %2245 = sbr.rel (%p2243) target = $region40
      $region39: #{cross_attention_block_forward.7} parent=35 // pred_region
        %s2246 = smul.u32 4, %s15
      $region40: #{cross_attention_block_forward.7} parent=35 // pred_fallthru
        _
    $region36: #{cross_attention_block_forward.7} parent=5 // pred_fallthru
      _
    %p2247 = scmp.le.s32.totalorder 2, %s10
    // Predicated region
    $region41: #{cross_attention_block_forward.7} parent=5 // pred_check
      %p2248 = pneg %p2247
    $region42: #{cross_attention_block_forward.7} parent=5 // pred_check_branch
      %2250 = sbr.rel (%p2248) target = $region44
    $region43: #{cross_attention_block_forward.7} parent=5 // pred_region
      %s2251 = ssub.s32 %s10, 2
      // Predicated region
      $region45: #{cross_attention_block_forward.7} parent=43 // pred_check
        %p2252 = pneg %p143
      $region46: #{cross_attention_block_forward.7} parent=43 // pred_check_branch
        %2254 = sbr.rel (%p2252) target = $region48
      $region47: #{cross_attention_block_forward.7} parent=43 // pred_region
        %s2255 = smul.u32 4, %s16
        %p2256 = scmp.lt.s32.totalorder %s2255, 7
        %s2257 = scalar_select %p2256, %s2255, 7
        %s2258 = smul.addr %s2257, 2
        %s2259 = smul.addr %s2258, 8
        %s2260 = scalar_lea.vmem %s4, %s2259
      $region48: #{cross_attention_block_forward.7} parent=43 // pred_fallthru
        _
    $region44: #{cross_attention_block_forward.7} parent=5 // pred_fallthru
      _
  $region6: #{cross_attention_block_forward.7} parent=0 // loop_footer
    %s14 = sadd.s32 1, %s10
  $region7: #{cross_attention_block_forward.7} parent=0 // loop_footer_branch
    %9 = sbr.rel target = $region3
  $region8: #{cross_attention_block_forward.7} parent=0 // loop_exit
    _

// kernel: cross_attention_block_forward.10
$region0: #{cross_attention_block_forward.10}
  #allocation0 [shape = 'u32[]', space=smem, size = 0x4, offset = 0x4, fixed_abs, tag = 'smem constant byte address 0x4 - core index']
  #allocation1 [shape = 'u32[144,128]{1,0:T(1,128)}', space=vmem, size = 0x12000, scoped, tag = 'internal scratch']
  %s0 = inlined_call_operand.vmem [shape: f32[8,16,8], index: 0, kind: input, shape index: {}]
  %s1 = inlined_call_operand.vmem [shape: f32[8,16,8], index: 1, kind: input, shape index: {}]
  %s2 = inlined_call_operand.vmem [shape: f32[8,16,8], index: 2, kind: input, shape index: {}]
  %s3 = inlined_call_operand.vmem [shape: f32[8,16,8], index: 3, kind: output, shape index: {}]
  %s4 = sld [smem:[#allocation0]]
  $region45: #{cross_attention_block_forward.10} parent=0
    _
  %s6 = ssub.s32 1, %s4
  %s7 = scalar_select 0, %s6, %s4
  loop: start=0, step=1, limit=4
  $region2: #{cross_attention_block_forward.10} parent=0 // loop_pre_header
    _
  $region3: #{cross_attention_block_forward.10} parent=0 // loop_header
    %s9 = sphi 0, %s13
    %p10 = scmp.ge.s32.totalorder %s9, 4
    %s19 = sphi 0, %s21
    %s22 = sphi 0, %s19
    %s23 = sphi 0, %s22
    %s39 = sphi 0, %s23
    %s45 = sphi 0, %s47
    %s48 = sphi 0, %s45
    %s49 = sphi 0, %s48
    %s65 = sphi 0, %s49
    %s71 = sphi 0, %s73
    %s74 = sphi 0, %s71
    %s75 = sphi 0, %s74
    %s91 = sphi 0, %s75
    %s97 = sphi 0, %s99
    %s100 = sphi 0, %s97
    %s101 = sphi 0, %s100
    %s117 = sphi 0, %s101
  $region4: #{cross_attention_block_forward.10} parent=0 // loop_header_branch
    %12 = sbr.rel (%p10) target = $region8
  $region5: #{cross_attention_block_forward.10} parent=0 // loop_body
    %s14 = ssub.s32 %s9, 1
    %s15 = ssub.s32 %s9, 2
    %s16 = sadd.s32 %s9, 1
    %s17 = ssub.s32 %s9, %s16
    %p18 = scmp.eq.s32.totalorder %s17, 0
    %s20 = sadd.s32 %s19, 1
    %s21 = scalar_select %p18, %s19, %s20
    %p24 = pneg %p18
    %p25 = scmp.eq.s32.totalorder %s9, 1
    %p26 = por %p24, %p25
    %p27 = scmp.ne.s32.totalorder %s19, %s22
    %p28 = scmp.eq.s32.totalorder %s9, 0
    %p29 = por %p27, %p28
    %p30 = scmp.ne.s32.totalorder %s19, %s22
    %p31 = scmp.eq.s32.totalorder %s14, 1
    %p32 = por %p30, %p31
    %p33 = scmp.ne.s32.totalorder %s22, %s23
    %p34 = scmp.eq.s32.totalorder %s14, 0
    %p35 = por %p33, %p34
    %p36 = scmp.ne.s32.totalorder %s22, %s23
    %p37 = scmp.eq.s32.totalorder %s15, 1
    %p38 = por %p36, %p37
    %p40 = scmp.ne.s32.totalorder %s23, %s39
    %p41 = scmp.eq.s32.totalorder %s15, 0
    %p42 = por %p40, %p41
    %s43 = ssub.s32 %s9, %s16
    %p44 = scmp.eq.s32.totalorder %s43, 0
    %s46 = sadd.s32 %s45, 1
    %s47 = scalar_select %p44, %s45, %s46
    %p50 = pneg %p44
    %p51 = scmp.eq.s32.totalorder %s9, 1
    %p52 = por %p50, %p51
    %p53 = scmp.ne.s32.totalorder %s45, %s48
    %p54 = scmp.eq.s32.totalorder %s9, 0
    %p55 = por %p53, %p54
    %p56 = scmp.ne.s32.totalorder %s45, %s48
    %p57 = scmp.eq.s32.totalorder %s14, 1
    %p58 = por %p56, %p57
    %p59 = scmp.ne.s32.totalorder %s48, %s49
    %p60 = scmp.eq.s32.totalorder %s14, 0
    %p61 = por %p59, %p60
    %p62 = scmp.ne.s32.totalorder %s48, %s49
    %p63 = scmp.eq.s32.totalorder %s15, 1
    %p64 = por %p62, %p63
    %p66 = scmp.ne.s32.totalorder %s49, %s65
    %p67 = scmp.eq.s32.totalorder %s15, 0
    %p68 = por %p66, %p67
    %s69 = ssub.s32 %s9, %s16
    %p70 = scmp.eq.s32.totalorder %s69, 0
    %s72 = sadd.s32 %s71, 1
    %s73 = scalar_select %p70, %s71, %s72
    %p76 = pneg %p70
    %p77 = scmp.eq.s32.totalorder %s9, 1
    %p78 = por %p76, %p77
    %p79 = scmp.ne.s32.totalorder %s71, %s74
    %p80 = scmp.eq.s32.totalorder %s9, 0
    %p81 = por %p79, %p80
    %p82 = scmp.ne.s32.totalorder %s71, %s74
    %p83 = scmp.eq.s32.totalorder %s14, 1
    %p84 = por %p82, %p83
    %p85 = scmp.ne.s32.totalorder %s74, %s75
    %p86 = scmp.eq.s32.totalorder %s14, 0
    %p87 = por %p85, %p86
    %p88 = scmp.ne.s32.totalorder %s74, %s75
    %p89 = scmp.eq.s32.totalorder %s15, 1
    %p90 = por %p88, %p89
    %p92 = scmp.ne.s32.totalorder %s75, %s91
    %p93 = scmp.eq.s32.totalorder %s15, 0
    %p94 = por %p92, %p93
    %s95 = ssub.s32 %s9, %s16
    %p96 = scmp.eq.s32.totalorder %s95, 0
    %s98 = sadd.s32 %s97, 1
    %s99 = scalar_select %p96, %s97, %s98
    %p102 = pneg %p96
    %p103 = scmp.eq.s32.totalorder %s9, 1
    %p104 = por %p102, %p103
    %p105 = scmp.ne.s32.totalorder %s97, %s100
    %p106 = scmp.eq.s32.totalorder %s9, 0
    %p107 = por %p105, %p106
    %p108 = scmp.ne.s32.totalorder %s97, %s100
    %p109 = scmp.eq.s32.totalorder %s14, 1
    %p110 = por %p108, %p109
    %p111 = scmp.ne.s32.totalorder %s100, %s101
    %p112 = scmp.eq.s32.totalorder %s14, 0
    %p113 = por %p111, %p112
    %p114 = scmp.ne.s32.totalorder %s100, %s101
    %p115 = scmp.eq.s32.totalorder %s15, 1
    %p116 = por %p114, %p115
    %p118 = scmp.ne.s32.totalorder %s101, %s117
    %p119 = scmp.eq.s32.totalorder %s15, 0
    %p120 = por %p118, %p119
    %p121 = scmp.le.s32.totalorder 1, %s9
    %p122 = scmp.lt.s32.totalorder %s9, 3
    %p123 = pnand %p121, %p122
    %p124 = pneg %p123
    // Predicated region
    $region9: #{cross_attention_block_forward.10} parent=5 // pred_check
      _
    $region10: #{cross_attention_block_forward.10} parent=5 // pred_check_branch
      %126 = sbr.rel (%p123) target = $region12
    $region11: #{cross_attention_block_forward.10} parent=5 // pred_region
      %s127 = ssub.s32 %s9, 1
    $region12: #{cross_attention_block_forward.10} parent=5 // pred_fallthru
      _
    %p128 = scmp.lt.s32.totalorder %s9, 2
    // Predicated region
    $region13: #{cross_attention_block_forward.10} parent=5 // pred_check
      %p129 = pneg %p128
    $region14: #{cross_attention_block_forward.10} parent=5 // pred_check_branch
      %131 = sbr.rel (%p129) target = $region16
    $region15: #{cross_attention_block_forward.10} parent=5 // pred_region
      // Predicated region
      $region17: #{cross_attention_block_forward.10} parent=15 // pred_check
        %p132 = pneg %p29
      $region18: #{cross_attention_block_forward.10} parent=15 // pred_check_branch
        %134 = sbr.rel (%p132) target = $region20
      $region19: #{cross_attention_block_forward.10} parent=15 // pred_region
        %s135 = smul.u32 4, %s9
        %p136 = scmp.lt.s32.totalorder %s135, 7
        %s137 = scalar_select %p136, %s135, 7
        %s138 = smul.addr %s137, 2
        %s139 = smul.addr %s138, 8
        %s140 = scalar_lea.vmem %s0, %s139
        %s141 = smul.u32 4, %s9
      $region20: #{cross_attention_block_forward.10} parent=15 // pred_fallthru
        _
      // Predicated region
      $region21: #{cross_attention_block_forward.10} parent=15 // pred_check
        %p142 = pneg %p55
      $region22: #{cross_attention_block_forward.10} parent=15 // pred_check_branch
        %144 = sbr.rel (%p142) target = $region24
      $region23: #{cross_attention_block_forward.10} parent=15 // pred_region
        %s145 = smul.u32 4, %s9
        %p146 = scmp.lt.s32.totalorder %s145, 7
        %s147 = scalar_select %p146, %s145, 7
        %s148 = smul.addr %s147, 2
        %s149 = smul.addr %s148, 8
        %s150 = scalar_lea.vmem %s1, %s149
        %s151 = smul.u32 4, %s9
      $region24: #{cross_attention_block_forward.10} parent=15 // pred_fallthru
        _
      // Predicated region
      $region25: #{cross_attention_block_forward.10} parent=15 // pred_check
        %p152 = pneg %p81
      $region26: #{cross_attention_block_forward.10} parent=15 // pred_check_branch
        %154 = sbr.rel (%p152) target = $region28
      $region27: #{cross_attention_block_forward.10} parent=15 // pred_region
        %s155 = smul.u32 4, %s9
        %p156 = scmp.lt.s32.totalorder %s155, 7
        %s157 = scalar_select %p156, %s155, 7
        %s158 = smul.addr %s157, 2
        %s159 = smul.addr %s158, 8
        %s160 = scalar_lea.vmem %s2, %s159
        %s161 = smul.u32 4, %s9
      $region28: #{cross_attention_block_forward.10} parent=15 // pred_fallthru
        _
    $region16: #{cross_attention_block_forward.10} parent=5 // pred_fallthru
      _
    %p162 = scmp.le.s32.totalorder 1, %s9
    %p163 = scmp.lt.s32.totalorder %s9, 3
    %p164 = pnand %p162, %p163
    %p165 = pneg %p164
    // Predicated region
    $region29: #{cross_attention_block_forward.10} parent=5 // pred_check
      _
    $region30: #{cross_attention_block_forward.10} parent=5 // pred_check_branch
      %167 = sbr.rel (%p164) target = $region32
    $region31: #{cross_attention_block_forward.10} parent=5 // pred_region
      %s168 = ssub.s32 %s9, 1
      %s169 = smul.u32 4, %s14
      %p170 = scmp.lt.s32.totalorder %s169, 7
      %s171 = scalar_select %p170, %s169, 7
      %s172 = smul.addr %s171, 2
      %s173 = smul.addr %s172, 8
      %s174 = scalar_lea.vmem %s0, %s173
      %p175 = pneg %p35
      %p176 = pneg %p32
      %s177 = smul.u32 4, %s14
      %p178 = scmp.lt.s32.totalorder %s177, 7
      %s179 = scalar_select %p178, %s177, 7
      %s180 = smul.addr %s179, 2
      %s181 = smul.addr %s180, 8
      %s182 = scalar_lea.vmem %s1, %s181
      %p183 = pneg %p61
      %p184 = pneg %p58
      %s185 = smul.u32 4, %s14
      %p186 = scmp.lt.s32.totalorder %s185, 7
      %s187 = scalar_select %p186, %s185, 7
      %s188 = smul.addr %s187, 2
      %s189 = smul.addr %s188, 8
      %s190 = scalar_lea.vmem %s2, %s189
      %p191 = pneg %p87
      %p192 = pneg %p84
      %p193 = pneg %p113
      %p194 = pneg %p110
      %s195 = smul.u32 4, %s14
      %p196 = scmp.lt.s32.totalorder %s195, 7
      %s197 = scalar_select %p196, %s195, 7
      %s198 = smul.addr %s197, 2
      %s199 = smul.addr %s198, 8
      %s200 = scalar_lea.vmem %s3, %s199
      %s201 = smul.u32 4, %s14
      %p202 = scmp.lt.s32.totalorder %s201, 7
      %s203 = scalar_select %p202, %s201, 7
      %s204 = smul.addr %s203, 2
      %s205 = smul.addr %s204, 8
      %s206 = scalar_lea.vmem %s0, %s205
      %s207 = smul.u32 4, %s14
      %s208 = smul.u32 4, %s14
      %p209 = scmp.lt.s32.totalorder %s208, 7
      %s210 = scalar_select %p209, %s208, 7
      %s211 = smul.addr %s210, 2
      %s212 = smul.addr %s211, 8
      %s213 = scalar_lea.vmem %s1, %s212
      %s214 = smul.u32 4, %s14
      %s215 = smul.u32 4, %s14
      %p216 = scmp.lt.s32.totalorder %s215, 7
      %s217 = scalar_select %p216, %s215, 7
      %s218 = smul.addr %s217, 2
      %s219 = smul.addr %s218, 8
      %s220 = scalar_lea.vmem %s2, %s219
      %s221 = smul.u32 4, %s14
      %s222 = smul.u32 4, %s14
      %p223 = scmp.lt.s32.totalorder %s222, 7
      %s224 = scalar_select %p223, %s222, 7
      %s225 = smul.addr %s224, 2
      %s226 = smul.addr %s225, 8
      %s227 = scalar_lea.vmem %s3, %s226
      %s228 = smul.u32 4, %s14
      %v229 = vld [vmem:[%s206] sm:$0xff]
      %v230 = vld [vmem:[%s206 + $0x8] sm:$0xff]
      %v231 = vld [vmem:[%s206 + $0x10] sm:$0xff]
      %v232 = vld [vmem:[%s206 + $0x18] sm:$0xff]
      %v233 = vld [vmem:[%s206 + $0x20] sm:$0xff]
      %v234 = vld [vmem:[%s206 + $0x28] sm:$0xff]
      %v235 = vld [vmem:[%s206 + $0x30] sm:$0xff]
      %v236 = vld [vmem:[%s206 + $0x38] sm:$0xff]
      %v237 = vld [vmem:[%s213] sm:$0xff]
      %v238 = vld [vmem:[%s213 + $0x8] sm:$0xff]
      %v239 = vld [vmem:[%s213 + $0x10] sm:$0xff]
      %v240 = vld [vmem:[%s213 + $0x18] sm:$0xff]
      %v241 = vld [vmem:[%s213 + $0x20] sm:$0xff]
      %v242 = vld [vmem:[%s213 + $0x28] sm:$0xff]
      %v243 = vld [vmem:[%s213 + $0x30] sm:$0xff]
      %v244 = vld [vmem:[%s213 + $0x38] sm:$0xff]
      %v245 = vld [vmem:[%s220] sm:$0xff]
      %v246 = vld [vmem:[%s220 + $0x8] sm:$0xff]
      %v247 = vld [vmem:[%s220 + $0x10] sm:$0xff]
      %v248 = vld [vmem:[%s220 + $0x18] sm:$0xff]
      %v249 = vld [vmem:[%s220 + $0x20] sm:$0xff]
      %v250 = vld [vmem:[%s220 + $0x28] sm:$0xff]
      %v251 = vld [vmem:[%s220 + $0x30] sm:$0xff]
      %v252 = vld [vmem:[%s220 + $0x38] sm:$0xff]
      %vm253 = vcmask 64512
      %v255 = vsel %vm253, %v229, 0
      %v258 = vsel %vm253, %v230, 0
      %v261 = vsel %vm253, %v237, 0
      %v264 = vsel %vm253, %v238, 0
      %266 = vmatprep.subr.mxu0 0.0
      %267 = vmatpush1.xpose.msra.mxu0 %v261
      %268 = vmatprep.subr.mxu0 0.0
      %269 = vmatpush1.xpose.msra.mxu0 %v264
      %270 = vmatprep.subr.mxu0 0.0
      %271 = vmatpush1.xpose.msra.mxu0 0.0
      %272 = vmatprep.subr.mxu0 0.0
      %273 = vmatpush1.xpose.msra.mxu0 0.0
      %274 = vmatprep.subr.mxu0 0.0
      %275 = vmatpush1.xpose.msra.mxu0 0.0
      %276 = vmatprep.subr.mxu0 0.0
      %277 = vmatpush1.xpose.msra.mxu0 0.0
      %278 = vmatprep.subr.mxu0 0.0
      %279 = vmatpush1.xpose.msra.mxu0 0.0
      %280 = vmatprep.subr.mxu0 0.0
      %281 = vmatpush1.xpose.msra.mxu0 0.0
      %282 = vmatprep.subr.mxu0 0.0
      %283 = vmatpush1.xpose.msra.mxu0 0.0
      %284 = vmatprep.subr.mxu0 0.0
      %285 = vmatpush1.xpose.msra.mxu0 0.0
      %286 = vmatprep.subr.mxu0 0.0
      %287 = vmatpush1.xpose.msra.mxu0 0.0
      %288 = vmatprep.subr.mxu0 0.0
      %289 = vmatpush1.xpose.msra.mxu0 0.0
      %290 = vmatprep.subr.mxu0 0.0
      %291 = vmatpush1.xpose.msra.mxu0 0.0
      %292 = vmatprep.subr.mxu0 0.0
      %293 = vmatpush1.xpose.msra.mxu0 0.0
      %294 = vmatprep.subr.mxu0 0.0
      %295 = vmatpush1.xpose.msra.mxu0 0.0
      %296 = vmatprep.subr.mxu0 0.0
      %297 = vmatpush1.xpose.msra.mxu0 0.0
      %298 = vmatprep.subr.mxu0 0.0
      %299 = vmatpush1.xpose.msra.mxu0 0.0
      %300 = vmatprep.subr.mxu0 0.0
      %301 = vmatpush1.xpose.msra.mxu0 0.0
      %302 = vmatprep.subr.mxu0 0.0
      %303 = vmatpush1.xpose.msra.mxu0 0.0
      %304 = vmatprep.subr.mxu0 0.0
      %305 = vmatpush1.xpose.msra.mxu0 0.0
      %306 = vmatprep.subr.mxu0 0.0
      %307 = vmatpush1.xpose.msra.mxu0 0.0
      %308 = vmatprep.subr.mxu0 0.0
      %309 = vmatpush1.xpose.msra.mxu0 0.0
      %310 = vmatprep.subr.mxu0 0.0
      %311 = vmatpush1.xpose.msra.mxu0 0.0
      %312 = vmatprep.subr.mxu0 0.0
      %313 = vmatpush1.xpose.msra.mxu0 0.0
      %314 = vmatprep.subr.mxu0 0.0
      %315 = vmatpush1.xpose.msra.mxu0 0.0
      %316 = vmatprep.subr.mxu0 0.0
      %317 = vmatpush1.xpose.msra.mxu0 0.0
      %318 = vmatprep.subr.mxu0 0.0
      %319 = vmatpush1.xpose.msra.mxu0 0.0
      %320 = vmatprep.subr.mxu0 0.0
      %321 = vmatpush1.xpose.msra.mxu0 0.0
      %322 = vmatprep.subr.mxu0 0.0
      %323 = vmatpush1.xpose.msra.mxu0 0.0
      %324 = vmatprep.subr.mxu0 0.0
      %325 = vmatpush1.xpose.msra.mxu0 0.0
      %326 = vmatprep.subr.mxu0 0.0
      %327 = vmatpush1.xpose.msra.mxu0 0.0
      %328 = vmatprep.subr.mxu0 0.0
      %329 = vmatpush1.xpose.msra.mxu0 0.0
      %330 = vmatprep.mubr.f32.mxu0 0.0
      %331 = vmatmul.mubr.f32.gmra.mrb[0].mxu0 %v255
      %v332 = vpop.f32.mrb[0].mxu0
      %v333 = vadd.f32 0.0, %v332
      %v334 = vpop.f32.mrb[0].mxu0
      %335 = vmatprep.mubr.f32.mxu0 0.0
      %336 = vmatmul.mubr.f32.gmra.mrb[0].mxu0 %v258
      %v337 = vpop.f32.mrb[0].mxu0
      %v338 = vadd.f32 0.0, %v337
      %v339 = vpop.f32.mrb[0].mxu0
      %340 = vdwg.mxu0
      %v342 = vsel %vm253, %v231, 0
      %v345 = vsel %vm253, %v232, 0
      %v348 = vsel %vm253, %v239, 0
      %v351 = vsel %vm253, %v240, 0
      %353 = vmatprep.subr.mxu0 0.0
      %354 = vmatpush1.xpose.msra.mxu0 %v348
      %355 = vmatprep.subr.mxu0 0.0
      %356 = vmatpush1.xpose.msra.mxu0 %v351
      %357 = vmatprep.subr.mxu0 0.0
      %358 = vmatpush1.xpose.msra.mxu0 0.0
      %359 = vmatprep.subr.mxu0 0.0
      %360 = vmatpush1.xpose.msra.mxu0 0.0
      %361 = vmatprep.subr.mxu0 0.0
      %362 = vmatpush1.xpose.msra.mxu0 0.0
      %363 = vmatprep.subr.mxu0 0.0
      %364 = vmatpush1.xpose.msra.mxu0 0.0
      %365 = vmatprep.subr.mxu0 0.0
      %366 = vmatpush1.xpose.msra.mxu0 0.0
      %367 = vmatprep.subr.mxu0 0.0
      %368 = vmatpush1.xpose.msra.mxu0 0.0
      %369 = vmatprep.subr.mxu0 0.0
      %370 = vmatpush1.xpose.msra.mxu0 0.0
      %371 = vmatprep.subr.mxu0 0.0
      %372 = vmatpush1.xpose.msra.mxu0 0.0
      %373 = vmatprep.subr.mxu0 0.0
      %374 = vmatpush1.xpose.msra.mxu0 0.0
      %375 = vmatprep.subr.mxu0 0.0
      %376 = vmatpush1.xpose.msra.mxu0 0.0
      %377 = vmatprep.subr.mxu0 0.0
      %378 = vmatpush1.xpose.msra.mxu0 0.0
      %379 = vmatprep.subr.mxu0 0.0
      %380 = vmatpush1.xpose.msra.mxu0 0.0
      %381 = vmatprep.subr.mxu0 0.0
      %382 = vmatpush1.xpose.msra.mxu0 0.0
      %383 = vmatprep.subr.mxu0 0.0
      %384 = vmatpush1.xpose.msra.mxu0 0.0
      %385 = vmatprep.subr.mxu0 0.0
      %386 = vmatpush1.xpose.msra.mxu0 0.0
      %387 = vmatprep.subr.mxu0 0.0
      %388 = vmatpush1.xpose.msra.mxu0 0.0
      %389 = vmatprep.subr.mxu0 0.0
      %390 = vmatpush1.xpose.msra.mxu0 0.0
      %391 = vmatprep.subr.mxu0 0.0
      %392 = vmatpush1.xpose.msra.mxu0 0.0
      %393 = vmatprep.subr.mxu0 0.0
      %394 = vmatpush1.xpose.msra.mxu0 0.0
      %395 = vmatprep.subr.mxu0 0.0
      %396 = vmatpush1.xpose.msra.mxu0 0.0
      %397 = vmatprep.subr.mxu0 0.0
      %398 = vmatpush1.xpose.msra.mxu0 0.0
      %399 = vmatprep.subr.mxu0 0.0
      %400 = vmatpush1.xpose.msra.mxu0 0.0
      %401 = vmatprep.subr.mxu0 0.0
      %402 = vmatpush1.xpose.msra.mxu0 0.0
      %403 = vmatprep.subr.mxu0 0.0
      %404 = vmatpush1.xpose.msra.mxu0 0.0
      %405 = vmatprep.subr.mxu0 0.0
      %406 = vmatpush1.xpose.msra.mxu0 0.0
      %407 = vmatprep.subr.mxu0 0.0
      %408 = vmatpush1.xpose.msra.mxu0 0.0
      %409 = vmatprep.subr.mxu0 0.0
      %410 = vmatpush1.xpose.msra.mxu0 0.0
      %411 = vmatprep.subr.mxu0 0.0
      %412 = vmatpush1.xpose.msra.mxu0 0.0
      %413 = vmatprep.subr.mxu0 0.0
      %414 = vmatpush1.xpose.msra.mxu0 0.0
      %415 = vmatprep.subr.mxu0 0.0
      %416 = vmatpush1.xpose.msra.mxu0 0.0
      %417 = vmatprep.mubr.f32.mxu0 0.0
      %418 = vmatmul.mubr.f32.gmra.mrb[0].mxu0 %v342
      %v419 = vpop.f32.mrb[0].mxu0
      %v420 = vadd.f32 0.0, %v419
      %v421 = vpop.f32.mrb[0].mxu0
      %422 = vmatprep.mubr.f32.mxu0 0.0
      %423 = vmatmul.mubr.f32.gmra.mrb[0].mxu0 %v345
      %v424 = vpop.f32.mrb[0].mxu0
      %v425 = vadd.f32 0.0, %v424
      %v426 = vpop.f32.mrb[0].mxu0
      %427 = vdwg.mxu0
      %v429 = vsel %vm253, %v233, 0
      %v432 = vsel %vm253, %v234, 0
      %v435 = vsel %vm253, %v241, 0
      %v438 = vsel %vm253, %v242, 0
      %440 = vmatprep.subr.mxu0 0.0
      %441 = vmatpush1.xpose.msra.mxu0 %v435
      %442 = vmatprep.subr.mxu0 0.0
      %443 = vmatpush1.xpose.msra.mxu0 %v438
      %444 = vmatprep.subr.mxu0 0.0
      %445 = vmatpush1.xpose.msra.mxu0 0.0
      %446 = vmatprep.subr.mxu0 0.0
      %447 = vmatpush1.xpose.msra.mxu0 0.0
      %448 = vmatprep.subr.mxu0 0.0
      %449 = vmatpush1.xpose.msra.mxu0 0.0
      %450 = vmatprep.subr.mxu0 0.0
      %451 = vmatpush1.xpose.msra.mxu0 0.0
      %452 = vmatprep.subr.mxu0 0.0
      %453 = vmatpush1.xpose.msra.mxu0 0.0
      %454 = vmatprep.subr.mxu0 0.0
      %455 = vmatpush1.xpose.msra.mxu0 0.0
      %456 = vmatprep.subr.mxu0 0.0
      %457 = vmatpush1.xpose.msra.mxu0 0.0
      %458 = vmatprep.subr.mxu0 0.0
      %459 = vmatpush1.xpose.msra.mxu0 0.0
      %460 = vmatprep.subr.mxu0 0.0
      %461 = vmatpush1.xpose.msra.mxu0 0.0
      %462 = vmatprep.subr.mxu0 0.0
      %463 = vmatpush1.xpose.msra.mxu0 0.0
      %464 = vmatprep.subr.mxu0 0.0
      %465 = vmatpush1.xpose.msra.mxu0 0.0
      %466 = vmatprep.subr.mxu0 0.0
      %467 = vmatpush1.xpose.msra.mxu0 0.0
      %468 = vmatprep.subr.mxu0 0.0
      %469 = vmatpush1.xpose.msra.mxu0 0.0
      %470 = vmatprep.subr.mxu0 0.0
      %471 = vmatpush1.xpose.msra.mxu0 0.0
      %472 = vmatprep.subr.mxu0 0.0
      %473 = vmatpush1.xpose.msra.mxu0 0.0
      %474 = vmatprep.subr.mxu0 0.0
      %475 = vmatpush1.xpose.msra.mxu0 0.0
      %476 = vmatprep.subr.mxu0 0.0
      %477 = vmatpush1.xpose.msra.mxu0 0.0
      %478 = vmatprep.subr.mxu0 0.0
      %479 = vmatpush1.xpose.msra.mxu0 0.0
      %480 = vmatprep.subr.mxu0 0.0
      %481 = vmatpush1.xpose.msra.mxu0 0.0
      %482 = vmatprep.subr.mxu0 0.0
      %483 = vmatpush1.xpose.msra.mxu0 0.0
      %484 = vmatprep.subr.mxu0 0.0
      %485 = vmatpush1.xpose.msra.mxu0 0.0
      %486 = vmatprep.subr.mxu0 0.0
      %487 = vmatpush1.xpose.msra.mxu0 0.0
      %488 = vmatprep.subr.mxu0 0.0
      %489 = vmatpush1.xpose.msra.mxu0 0.0
      %490 = vmatprep.subr.mxu0 0.0
      %491 = vmatpush1.xpose.msra.mxu0 0.0
      %492 = vmatprep.subr.mxu0 0.0
      %493 = vmatpush1.xpose.msra.mxu0 0.0
      %494 = vmatprep.subr.mxu0 0.0
      %495 = vmatpush1.xpose.msra.mxu0 0.0
      %496 = vmatprep.subr.mxu0 0.0
      %497 = vmatpush1.xpose.msra.mxu0 0.0
      %498 = vmatprep.subr.mxu0 0.0
      %499 = vmatpush1.xpose.msra.mxu0 0.0
      %500 = vmatprep.subr.mxu0 0.0
      %501 = vmatpush1.xpose.msra.mxu0 0.0
      %502 = vmatprep.subr.mxu0 0.0
      %503 = vmatpush1.xpose.msra.mxu0 0.0
      %504 = vmatprep.mubr.f32.mxu0 0.0
      %505 = vmatmul.mubr.f32.gmra.mrb[0].mxu0 %v429
      %v506 = vpop.f32.mrb[0].mxu0
      %v507 = vadd.f32 0.0, %v506
      %v508 = vpop.f32.mrb[0].mxu0
      %509 = vmatprep.mubr.f32.mxu0 0.0
      %510 = vmatmul.mubr.f32.gmra.mrb[0].mxu0 %v432
      %v511 = vpop.f32.mrb[0].mxu0
      %v512 = vadd.f32 0.0, %v511
      %v513 = vpop.f32.mrb[0].mxu0
      %514 = vdwg.mxu0
      %v516 = vsel %vm253, %v235, 0
      %v519 = vsel %vm253, %v236, 0
      %v522 = vsel %vm253, %v243, 0
      %v525 = vsel %vm253, %v244, 0
      %527 = vmatprep.subr.mxu0 0.0
      %528 = vmatpush1.xpose.msra.mxu0 %v522
      %529 = vmatprep.subr.mxu0 0.0
      %530 = vmatpush1.xpose.msra.mxu0 %v525
      %531 = vmatprep.subr.mxu0 0.0
      %532 = vmatpush1.xpose.msra.mxu0 0.0
      %533 = vmatprep.subr.mxu0 0.0
      %534 = vmatpush1.xpose.msra.mxu0 0.0
      %535 = vmatprep.subr.mxu0 0.0
      %536 = vmatpush1.xpose.msra.mxu0 0.0
      %537 = vmatprep.subr.mxu0 0.0
      %538 = vmatpush1.xpose.msra.mxu0 0.0
      %539 = vmatprep.subr.mxu0 0.0
      %540 = vmatpush1.xpose.msra.mxu0 0.0
      %541 = vmatprep.subr.mxu0 0.0
      %542 = vmatpush1.xpose.msra.mxu0 0.0
      %543 = vmatprep.subr.mxu0 0.0
      %544 = vmatpush1.xpose.msra.mxu0 0.0
      %545 = vmatprep.subr.mxu0 0.0
      %546 = vmatpush1.xpose.msra.mxu0 0.0
      %547 = vmatprep.subr.mxu0 0.0
      %548 = vmatpush1.xpose.msra.mxu0 0.0
      %549 = vmatprep.subr.mxu0 0.0
      %550 = vmatpush1.xpose.msra.mxu0 0.0
      %551 = vmatprep.subr.mxu0 0.0
      %552 = vmatpush1.xpose.msra.mxu0 0.0
      %553 = vmatprep.subr.mxu0 0.0
      %554 = vmatpush1.xpose.msra.mxu0 0.0
      %555 = vmatprep.subr.mxu0 0.0
      %556 = vmatpush1.xpose.msra.mxu0 0.0
      %557 = vmatprep.subr.mxu0 0.0
      %558 = vmatpush1.xpose.msra.mxu0 0.0
      %559 = vmatprep.subr.mxu0 0.0
      %560 = vmatpush1.xpose.msra.mxu0 0.0
      %561 = vmatprep.subr.mxu0 0.0
      %562 = vmatpush1.xpose.msra.mxu0 0.0
      %563 = vmatprep.subr.mxu0 0.0
      %564 = vmatpush1.xpose.msra.mxu0 0.0
      %565 = vmatprep.subr.mxu0 0.0
      %566 = vmatpush1.xpose.msra.mxu0 0.0
      %567 = vmatprep.subr.mxu0 0.0
      %568 = vmatpush1.xpose.msra.mxu0 0.0
      %569 = vmatprep.subr.mxu0 0.0
      %570 = vmatpush1.xpose.msra.mxu0 0.0
      %571 = vmatprep.subr.mxu0 0.0
      %572 = vmatpush1.xpose.msra.mxu0 0.0
      %573 = vmatprep.subr.mxu0 0.0
      %574 = vmatpush1.xpose.msra.mxu0 0.0
      %575 = vmatprep.subr.mxu0 0.0
      %576 = vmatpush1.xpose.msra.mxu0 0.0
      %577 = vmatprep.subr.mxu0 0.0
      %578 = vmatpush1.xpose.msra.mxu0 0.0
      %579 = vmatprep.subr.mxu0 0.0
      %580 = vmatpush1.xpose.msra.mxu0 0.0
      %581 = vmatprep.subr.mxu0 0.0
      %582 = vmatpush1.xpose.msra.mxu0 0.0
      %583 = vmatprep.subr.mxu0 0.0
      %584 = vmatpush1.xpose.msra.mxu0 0.0
      %585 = vmatprep.subr.mxu0 0.0
      %586 = vmatpush1.xpose.msra.mxu0 0.0
      %587 = vmatprep.subr.mxu0 0.0
      %588 = vmatpush1.xpose.msra.mxu0 0.0
      %589 = vmatprep.subr.mxu0 0.0
      %590 = vmatpush1.xpose.msra.mxu0 0.0
      %591 = vmatprep.mubr.f32.mxu0 0.0
      %592 = vmatmul.mubr.f32.gmra.mrb[0].mxu0 %v516
      %v593 = vpop.f32.mrb[0].mxu0
      %v594 = vadd.f32 0.0, %v593
      %v595 = vpop.f32.mrb[0].mxu0
      %596 = vmatprep.mubr.f32.mxu0 0.0
      %597 = vmatmul.mubr.f32.gmra.mrb[0].mxu0 %v519
      %v598 = vpop.f32.mrb[0].mxu0
      %v599 = vadd.f32 0.0, %v598
      %v600 = vpop.f32.mrb[0].mxu0
      %601 = vdwg.mxu0
      %v602 = vmul.f32 %v333, 0.35355338
      %v603 = vmul.f32 %v338, 0.35355338
      %v604 = vmul.f32 %v420, 0.35355338
      %v605 = vmul.f32 %v425, 0.35355338
      %v606 = vmul.f32 %v507, 0.35355338
      %v607 = vmul.f32 %v512, 0.35355338
      %v608 = vmul.f32 %v594, 0.35355338
      %v609 = vmul.f32 %v599, 0.35355338
      %vm610 = vcmask 130048
      %v611 = vsel %vm610, %v602, -inf
      %612 = vmax.xlane.f32.xlu0 %v611
      %v613 = vpop.xlane.xlu0 %612
      %v614 = vsel %vm610, %v603, -inf
      %615 = vmax.xlane.f32.xlu0 %v614
      %v616 = vpop.xlane.xlu0 %615
      %v617 = vsel %vm610, %v604, -inf
      %618 = vmax.xlane.f32.xlu0 %v617
      %v619 = vpop.xlane.xlu0 %618
      %v620 = vsel %vm610, %v605, -inf
      %621 = vmax.xlane.f32.xlu0 %v620
      %v622 = vpop.xlane.xlu0 %621
      %v623 = vsel %vm610, %v606, -inf
      %624 = vmax.xlane.f32.xlu0 %v623
      %v625 = vpop.xlane.xlu0 %624
      %v626 = vsel %vm610, %v607, -inf
      %627 = vmax.xlane.f32.xlu0 %v626
      %v628 = vpop.xlane.xlu0 %627
      %v629 = vsel %vm610, %v608, -inf
      %630 = vmax.xlane.f32.xlu0 %v629
      %v631 = vpop.xlane.xlu0 %630
      %v632 = vsel %vm610, %v609, -inf
      %633 = vmax.xlane.f32.xlu0 %v632
      %v634 = vpop.xlane.xlu0 %633
      %v635 = vsub.f32 %v602, %v613
      %v636 = vsub.f32 %v603, %v616
      %v637 = vsub.f32 %v604, %v619
      %v638 = vsub.f32 %v605, %v622
      %v639 = vsub.f32 %v606, %v625
      %v640 = vsub.f32 %v607, %v628
      %v641 = vsub.f32 %v608, %v631
      %v642 = vsub.f32 %v609, %v634
      %v643 = vmul.f32 %v635, 1.442695
      %v644 = vpow.pop %v643
      %v645 = vmul.f32 %v636, 1.442695
      %v646 = vpow.pop %v645
      %v647 = vmul.f32 %v637, 1.442695
      %v648 = vpow.pop %v647
      %v649 = vmul.f32 %v638, 1.442695
      %v650 = vpow.pop %v649
      %v651 = vmul.f32 %v639, 1.442695
      %v652 = vpow.pop %v651
      %v653 = vmul.f32 %v640, 1.442695
      %v654 = vpow.pop %v653
      %v655 = vmul.f32 %v641, 1.442695
      %v656 = vpow.pop %v655
      %v657 = vmul.f32 %v642, 1.442695
      %v658 = vpow.pop %v657
      %v659 = vsel %vm610, %v644, 0.0
      %660 = vadd.xlane.f32.xlu0 %v659
      %v661 = vpop.xlane.xlu0 %660
      %v662 = vsel %vm610, %v646, 0.0
      %663 = vadd.xlane.f32.xlu0 %v662
      %v664 = vpop.xlane.xlu0 %663
      %v665 = vsel %vm610, %v648, 0.0
      %666 = vadd.xlane.f32.xlu0 %v665
      %v667 = vpop.xlane.xlu0 %666
      %v668 = vsel %vm610, %v650, 0.0
      %669 = vadd.xlane.f32.xlu0 %v668
      %v670 = vpop.xlane.xlu0 %669
      %v671 = vsel %vm610, %v652, 0.0
      %672 = vadd.xlane.f32.xlu0 %v671
      %v673 = vpop.xlane.xlu0 %672
      %v674 = vsel %vm610, %v654, 0.0
      %675 = vadd.xlane.f32.xlu0 %v674
      %v676 = vpop.xlane.xlu0 %675
      %v677 = vsel %vm610, %v656, 0.0
      %678 = vadd.xlane.f32.xlu0 %v677
      %v679 = vpop.xlane.xlu0 %678
      %v680 = vsel %vm610, %v658, 0.0
      %681 = vadd.xlane.f32.xlu0 %v680
      %v682 = vpop.xlane.xlu0 %681
      %v683 = vrcp.pop %v661
      %v684 = vrcp.pop %v664
      %v685 = vrcp.pop %v667
      %v686 = vrcp.pop %v670
      %v687 = vrcp.pop %v673
      %v688 = vrcp.pop %v676
      %v689 = vrcp.pop %v679
      %v690 = vrcp.pop %v682
      %v691 = vmul.f32 %v644, %v683
      %v692 = vmul.f32 %v646, %v684
      %v693 = vmul.f32 %v648, %v685
      %v694 = vmul.f32 %v650, %v686
      %v695 = vmul.f32 %v652, %v687
      %v696 = vmul.f32 %v654, %v688
      %v697 = vmul.f32 %v656, %v689
      %v698 = vmul.f32 %v658, %v690
      %v700 = vsel %vm610, %v691, 0
      %v703 = vsel %vm610, %v692, 0
      %705 = vmatprep.subr.mxu0 0.0
      %706 = vmatpush1.msra.mxu0 %v245
      %707 = vmatprep.subr.mxu0 0.0
      %708 = vmatpush1.msra.mxu0 %v246
      %709 = vmatprep.subr.mxu0 0.0
      %710 = vmatpush1.msra.mxu0 0.0
      %711 = vmatprep.subr.mxu0 0.0
      %712 = vmatpush1.msra.mxu0 0.0
      %713 = vmatprep.subr.mxu0 0.0
      %714 = vmatpush1.msra.mxu0 0.0
      %715 = vmatprep.subr.mxu0 0.0
      %716 = vmatpush1.msra.mxu0 0.0
      %717 = vmatprep.subr.mxu0 0.0
      %718 = vmatpush1.msra.mxu0 0.0
      %719 = vmatprep.subr.mxu0 0.0
      %720 = vmatpush1.msra.mxu0 0.0
      %721 = vmatprep.subr.mxu0 0.0
      %722 = vmatpush1.msra.mxu0 0.0
      %723 = vmatprep.subr.mxu0 0.0
      %724 = vmatpush1.msra.mxu0 0.0
      %725 = vmatprep.subr.mxu0 0.0
      %726 = vmatpush1.msra.mxu0 0.0
      %727 = vmatprep.subr.mxu0 0.0
      %728 = vmatpush1.msra.mxu0 0.0
      %729 = vmatprep.subr.mxu0 0.0
      %730 = vmatpush1.msra.mxu0 0.0
      %731 = vmatprep.subr.mxu0 0.0
      %732 = vmatpush1.msra.mxu0 0.0
      %733 = vmatprep.subr.mxu0 0.0
      %734 = vmatpush1.msra.mxu0 0.0
      %735 = vmatprep.subr.mxu0 0.0
      %736 = vmatpush1.msra.mxu0 0.0
      %737 = vmatprep.subr.mxu0 0.0
      %738 = vmatpush1.msra.mxu0 0.0
      %739 = vmatprep.subr.mxu0 0.0
      %740 = vmatpush1.msra.mxu0 0.0
      %741 = vmatprep.subr.mxu0 0.0
      %742 = vmatpush1.msra.mxu0 0.0
      %743 = vmatprep.subr.mxu0 0.0
      %744 = vmatpush1.msra.mxu0 0.0
      %745 = vmatprep.subr.mxu0 0.0
      %746 = vmatpush1.msra.mxu0 0.0
      %747 = vmatprep.subr.mxu0 0.0
      %748 = vmatpush1.msra.mxu0 0.0
      %749 = vmatprep.subr.mxu0 0.0
      %750 = vmatpush1.msra.mxu0 0.0
      %751 = vmatprep.subr.mxu0 0.0
      %752 = vmatpush1.msra.mxu0 0.0
      %753 = vmatprep.subr.mxu0 0.0
      %754 = vmatpush1.msra.mxu0 0.0
      %755 = vmatprep.subr.mxu0 0.0
      %756 = vmatpush1.msra.mxu0 0.0
      %757 = vmatprep.subr.mxu0 0.0
      %758 = vmatpush1.msra.mxu0 0.0
      %759 = vmatprep.subr.mxu0 0.0
      %760 = vmatpush1.msra.mxu0 0.0
      %761 = vmatprep.subr.mxu0 0.0
      %762 = vmatpush1.msra.mxu0 0.0
      %763 = vmatprep.subr.mxu0 0.0
      %764 = vmatpush1.msra.mxu0 0.0
      %765 = vmatprep.subr.mxu0 0.0
      %766 = vmatpush1.msra.mxu0 0.0
      %767 = vmatprep.subr.mxu0 0.0
      %768 = vmatpush1.msra.mxu0 0.0
      %769 = vmatprep.mubr.f32.mxu0 0.0
      %770 = vmatmul.mubr.f32.gmra.mrb[0].mxu0 %v700
      %v771 = vpop.f32.mrb[0].mxu0
      %v772 = vadd.f32 0.0, %v771
      %v773 = vpop.f32.mrb[0].mxu0
      %774 = vmatprep.mubr.f32.mxu0 0.0
      %775 = vmatmul.mubr.f32.gmra.mrb[0].mxu0 %v703
      %v776 = vpop.f32.mrb[0].mxu0
      %v777 = vadd.f32 0.0, %v776
      %v778 = vpop.f32.mrb[0].mxu0
      %779 = vdwg.mxu0
      %v781 = vsel %vm610, %v693, 0
      %v784 = vsel %vm610, %v694, 0
      %786 = vmatprep.subr.mxu0 0.0
      %787 = vmatpush1.msra.mxu0 %v247
      %788 = vmatprep.subr.mxu0 0.0
      %789 = vmatpush1.msra.mxu0 %v248
      %790 = vmatprep.subr.mxu0 0.0
      %791 = vmatpush1.msra.mxu0 0.0
      %792 = vmatprep.subr.mxu0 0.0
      %793 = vmatpush1.msra.mxu0 0.0
      %794 = vmatprep.subr.mxu0 0.0
      %795 = vmatpush1.msra.mxu0 0.0
      %796 = vmatprep.subr.mxu0 0.0
      %797 = vmatpush1.msra.mxu0 0.0
      %798 = vmatprep.subr.mxu0 0.0
      %799 = vmatpush1.msra.mxu0 0.0
      %800 = vmatprep.subr.mxu0 0.0
      %801 = vmatpush1.msra.mxu0 0.0
      %802 = vmatprep.subr.mxu0 0.0
      %803 = vmatpush1.msra.mxu0 0.0
      %804 = vmatprep.subr.mxu0 0.0
      %805 = vmatpush1.msra.mxu0 0.0
      %806 = vmatprep.subr.mxu0 0.0
      %807 = vmatpush1.msra.mxu0 0.0
      %808 = vmatprep.subr.mxu0 0.0
      %809 = vmatpush1.msra.mxu0 0.0
      %810 = vmatprep.subr.mxu0 0.0
      %811 = vmatpush1.msra.mxu0 0.0
      %812 = vmatprep.subr.mxu0 0.0
      %813 = vmatpush1.msra.mxu0 0.0
      %814 = vmatprep.subr.mxu0 0.0
      %815 = vmatpush1.msra.mxu0 0.0
      %816 = vmatprep.subr.mxu0 0.0
      %817 = vmatpush1.msra.mxu0 0.0
      %818 = vmatprep.subr.mxu0 0.0
      %819 = vmatpush1.msra.mxu0 0.0
      %820 = vmatprep.subr.mxu0 0.0
      %821 = vmatpush1.msra.mxu0 0.0
      %822 = vmatprep.subr.mxu0 0.0
      %823 = vmatpush1.msra.mxu0 0.0
      %824 = vmatprep.subr.mxu0 0.0
      %825 = vmatpush1.msra.mxu0 0.0
      %826 = vmatprep.subr.mxu0 0.0
      %827 = vmatpush1.msra.mxu0 0.0
      %828 = vmatprep.subr.mxu0 0.0
      %829 = vmatpush1.msra.mxu0 0.0
      %830 = vmatprep.subr.mxu0 0.0
      %831 = vmatpush1.msra.mxu0 0.0
      %832 = vmatprep.subr.mxu0 0.0
      %833 = vmatpush1.msra.mxu0 0.0
      %834 = vmatprep.subr.mxu0 0.0
      %835 = vmatpush1.msra.mxu0 0.0
      %836 = vmatprep.subr.mxu0 0.0
      %837 = vmatpush1.msra.mxu0 0.0
      %838 = vmatprep.subr.mxu0 0.0
      %839 = vmatpush1.msra.mxu0 0.0
      %840 = vmatprep.subr.mxu0 0.0
      %841 = vmatpush1.msra.mxu0 0.0
      %842 = vmatprep.subr.mxu0 0.0
      %843 = vmatpush1.msra.mxu0 0.0
      %844 = vmatprep.subr.mxu0 0.0
      %845 = vmatpush1.msra.mxu0 0.0
      %846 = vmatprep.subr.mxu0 0.0
      %847 = vmatpush1.msra.mxu0 0.0
      %848 = vmatprep.subr.mxu0 0.0
      %849 = vmatpush1.msra.mxu0 0.0
      %850 = vmatprep.mubr.f32.mxu0 0.0
      %851 = vmatmul.mubr.f32.gmra.mrb[0].mxu0 %v781
      %v852 = vpop.f32.mrb[0].mxu0
      %v853 = vadd.f32 0.0, %v852
      %v854 = vpop.f32.mrb[0].mxu0
      %855 = vmatprep.mubr.f32.mxu0 0.0
      %856 = vmatmul.mubr.f32.gmra.mrb[0].mxu0 %v784
      %v857 = vpop.f32.mrb[0].mxu0
      %v858 = vadd.f32 0.0, %v857
      %v859 = vpop.f32.mrb[0].mxu0
      %860 = vdwg.mxu0
      %v862 = vsel %vm610, %v695, 0
      %v865 = vsel %vm610, %v696, 0
      %867 = vmatprep.subr.mxu0 0.0
      %868 = vmatpush1.msra.mxu0 %v249
      %869 = vmatprep.subr.mxu0 0.0
      %870 = vmatpush1.msra.mxu0 %v250
      %871 = vmatprep.subr.mxu0 0.0
      %872 = vmatpush1.msra.mxu0 0.0
      %873 = vmatprep.subr.mxu0 0.0
      %874 = vmatpush1.msra.mxu0 0.0
      %875 = vmatprep.subr.mxu0 0.0
      %876 = vmatpush1.msra.mxu0 0.0
      %877 = vmatprep.subr.mxu0 0.0
      %878 = vmatpush1.msra.mxu0 0.0
      %879 = vmatprep.subr.mxu0 0.0
      %880 = vmatpush1.msra.mxu0 0.0
      %881 = vmatprep.subr.mxu0 0.0
      %882 = vmatpush1.msra.mxu0 0.0
      %883 = vmatprep.subr.mxu0 0.0
      %884 = vmatpush1.msra.mxu0 0.0
      %885 = vmatprep.subr.mxu0 0.0
      %886 = vmatpush1.msra.mxu0 0.0
      %887 = vmatprep.subr.mxu0 0.0
      %888 = vmatpush1.msra.mxu0 0.0
      %889 = vmatprep.subr.mxu0 0.0
      %890 = vmatpush1.msra.mxu0 0.0
      %891 = vmatprep.subr.mxu0 0.0
      %892 = vmatpush1.msra.mxu0 0.0
      %893 = vmatprep.subr.mxu0 0.0
      %894 = vmatpush1.msra.mxu0 0.0
      %895 = vmatprep.subr.mxu0 0.0
      %896 = vmatpush1.msra.mxu0 0.0
      %897 = vmatprep.subr.mxu0 0.0
      %898 = vmatpush1.msra.mxu0 0.0
      %899 = vmatprep.subr.mxu0 0.0
      %900 = vmatpush1.msra.mxu0 0.0
      %901 = vmatprep.subr.mxu0 0.0
      %902 = vmatpush1.msra.mxu0 0.0
      %903 = vmatprep.subr.mxu0 0.0
      %904 = vmatpush1.msra.mxu0 0.0
      %905 = vmatprep.subr.mxu0 0.0
      %906 = vmatpush1.msra.mxu0 0.0
      %907 = vmatprep.subr.mxu0 0.0
      %908 = vmatpush1.msra.mxu0 0.0
      %909 = vmatprep.subr.mxu0 0.0
      %910 = vmatpush1.msra.mxu0 0.0
      %911 = vmatprep.subr.mxu0 0.0
      %912 = vmatpush1.msra.mxu0 0.0
      %913 = vmatprep.subr.mxu0 0.0
      %914 = vmatpush1.msra.mxu0 0.0
      %915 = vmatprep.subr.mxu0 0.0
      %916 = vmatpush1.msra.mxu0 0.0
      %917 = vmatprep.subr.mxu0 0.0
      %918 = vmatpush1.msra.mxu0 0.0
      %919 = vmatprep.subr.mxu0 0.0
      %920 = vmatpush1.msra.mxu0 0.0
      %921 = vmatprep.subr.mxu0 0.0
      %922 = vmatpush1.msra.mxu0 0.0
      %923 = vmatprep.subr.mxu0 0.0
      %924 = vmatpush1.msra.mxu0 0.0
      %925 = vmatprep.subr.mxu0 0.0
      %926 = vmatpush1.msra.mxu0 0.0
      %927 = vmatprep.subr.mxu0 0.0
      %928 = vmatpush1.msra.mxu0 0.0
      %929 = vmatprep.subr.mxu0 0.0
      %930 = vmatpush1.msra.mxu0 0.0
      %931 = vmatprep.mubr.f32.mxu0 0.0
      %932 = vmatmul.mubr.f32.gmra.mrb[0].mxu0 %v862
      %v933 = vpop.f32.mrb[0].mxu0
      %v934 = vadd.f32 0.0, %v933
      %v935 = vpop.f32.mrb[0].mxu0
      %936 = vmatprep.mubr.f32.mxu0 0.0
      %937 = vmatmul.mubr.f32.gmra.mrb[0].mxu0 %v865
      %v938 = vpop.f32.mrb[0].mxu0
      %v939 = vadd.f32 0.0, %v938
      %v940 = vpop.f32.mrb[0].mxu0
      %941 = vdwg.mxu0
      %v943 = vsel %vm610, %v697, 0
      %v946 = vsel %vm610, %v698, 0
      %948 = vmatprep.subr.mxu0 0.0
      %949 = vmatpush1.msra.mxu0 %v251
      %950 = vmatprep.subr.mxu0 0.0
      %951 = vmatpush1.msra.mxu0 %v252
      %952 = vmatprep.subr.mxu0 0.0
      %953 = vmatpush1.msra.mxu0 0.0
      %954 = vmatprep.subr.mxu0 0.0
      %955 = vmatpush1.msra.mxu0 0.0
      %956 = vmatprep.subr.mxu0 0.0
      %957 = vmatpush1.msra.mxu0 0.0
      %958 = vmatprep.subr.mxu0 0.0
      %959 = vmatpush1.msra.mxu0 0.0
      %960 = vmatprep.subr.mxu0 0.0
      %961 = vmatpush1.msra.mxu0 0.0
      %962 = vmatprep.subr.mxu0 0.0
      %963 = vmatpush1.msra.mxu0 0.0
      %964 = vmatprep.subr.mxu0 0.0
      %965 = vmatpush1.msra.mxu0 0.0
      %966 = vmatprep.subr.mxu0 0.0
      %967 = vmatpush1.msra.mxu0 0.0
      %968 = vmatprep.subr.mxu0 0.0
      %969 = vmatpush1.msra.mxu0 0.0
      %970 = vmatprep.subr.mxu0 0.0
      %971 = vmatpush1.msra.mxu0 0.0
      %972 = vmatprep.subr.mxu0 0.0
      %973 = vmatpush1.msra.mxu0 0.0
      %974 = vmatprep.subr.mxu0 0.0
      %975 = vmatpush1.msra.mxu0 0.0
      %976 = vmatprep.subr.mxu0 0.0
      %977 = vmatpush1.msra.mxu0 0.0
      %978 = vmatprep.subr.mxu0 0.0
      %979 = vmatpush1.msra.mxu0 0.0
      %980 = vmatprep.subr.mxu0 0.0
      %981 = vmatpush1.msra.mxu0 0.0
      %982 = vmatprep.subr.mxu0 0.0
      %983 = vmatpush1.msra.mxu0 0.0
      %984 = vmatprep.subr.mxu0 0.0
      %985 = vmatpush1.msra.mxu0 0.0
      %986 = vmatprep.subr.mxu0 0.0
      %987 = vmatpush1.msra.mxu0 0.0
      %988 = vmatprep.subr.mxu0 0.0
      %989 = vmatpush1.msra.mxu0 0.0
      %990 = vmatprep.subr.mxu0 0.0
      %991 = vmatpush1.msra.mxu0 0.0
      %992 = vmatprep.subr.mxu0 0.0
      %993 = vmatpush1.msra.mxu0 0.0
      %994 = vmatprep.subr.mxu0 0.0
      %995 = vmatpush1.msra.mxu0 0.0
      %996 = vmatprep.subr.mxu0 0.0
      %997 = vmatpush1.msra.mxu0 0.0
      %998 = vmatprep.subr.mxu0 0.0
      %999 = vmatpush1.msra.mxu0 0.0
      %1000 = vmatprep.subr.mxu0 0.0
      %1001 = vmatpush1.msra.mxu0 0.0
      %1002 = vmatprep.subr.mxu0 0.0
      %1003 = vmatpush1.msra.mxu0 0.0
      %1004 = vmatprep.subr.mxu0 0.0
      %1005 = vmatpush1.msra.mxu0 0.0
      %1006 = vmatprep.subr.mxu0 0.0
      %1007 = vmatpush1.msra.mxu0 0.0
      %1008 = vmatprep.subr.mxu0 0.0
      %1009 = vmatpush1.msra.mxu0 0.0
      %1010 = vmatprep.subr.mxu0 0.0
      %1011 = vmatpush1.msra.mxu0 0.0
      %1012 = vmatprep.mubr.f32.mxu0 0.0
      %1013 = vmatmul.mubr.f32.gmra.mrb[0].mxu0 %v943
      %v1014 = vpop.f32.mrb[0].mxu0
      %v1015 = vadd.f32 0.0, %v1014
      %v1016 = vpop.f32.mrb[0].mxu0
      %1017 = vmatprep.mubr.f32.mxu0 0.0
      %1018 = vmatmul.mubr.f32.gmra.mrb[0].mxu0 %v946
      %v1019 = vpop.f32.mrb[0].mxu0
      %v1020 = vadd.f32 0.0, %v1019
      %v1021 = vpop.f32.mrb[0].mxu0
      %1022 = vdwg.mxu0
      %1023 = vst.msk [vmem:[%s227] sm:$0xff] %vm253, %v772
      %1024 = vst.msk [vmem:[%s227 + $0x8] sm:$0xff] %vm253, %v777
      %1025 = vst.msk [vmem:[%s227 + $0x10] sm:$0xff] %vm253, %v853
      %1026 = vst.msk [vmem:[%s227 + $0x18] sm:$0xff] %vm253, %v858
      %1027 = vst.msk [vmem:[%s227 + $0x20] sm:$0xff] %vm253, %v934
      %1028 = vst.msk [vmem:[%s227 + $0x28] sm:$0xff] %vm253, %v939
      %1029 = vst.msk [vmem:[%s227 + $0x30] sm:$0xff] %vm253, %v1015
      %1030 = vst.msk [vmem:[%s227 + $0x38] sm:$0xff] %vm253, %v1020
      %s1031 = smul.u32 4, %s14
      %p1032 = scmp.lt.s32.totalorder %s1031, 7
      %s1033 = scalar_select %p1032, %s1031, 7
      %s1034 = smul.addr %s1033, 2
      %s1035 = smul.addr %s1034, 8
      %s1036 = scalar_lea.vmem %s3, %s1035
      // Predicated region
      $region33: #{cross_attention_block_forward.10} parent=31 // pred_check
        %p1037 = pneg %p110
      $region34: #{cross_attention_block_forward.10} parent=31 // pred_check_branch
        %1039 = sbr.rel (%p1037) target = $region36
      $region35: #{cross_attention_block_forward.10} parent=31 // pred_region
        %s1040 = smul.u32 4, %s14
      $region36: #{cross_attention_block_forward.10} parent=31 // pred_fallthru
        _
    $region32: #{cross_attention_block_forward.10} parent=5 // pred_fallthru
      _
    %p1041 = scmp.le.s32.totalorder 2, %s9
    // Predicated region
    $region37: #{cross_attention_block_forward.10} parent=5 // pred_check
      %p1042 = pneg %p1041
    $region38: #{cross_attention_block_forward.10} parent=5 // pred_check_branch
      %1044 = sbr.rel (%p1042) target = $region40
    $region39: #{cross_attention_block_forward.10} parent=5 // pred_region
      %s1045 = ssub.s32 %s9, 2
      // Predicated region
      $region41: #{cross_attention_block_forward.10} parent=39 // pred_check
        %p1046 = pneg %p116
      $region42: #{cross_attention_block_forward.10} parent=39 // pred_check_branch
        %1048 = sbr.rel (%p1046) target = $region44
      $region43: #{cross_attention_block_forward.10} parent=39 // pred_region
        %s1049 = smul.u32 4, %s15
        %p1050 = scmp.lt.s32.totalorder %s1049, 7
        %s1051 = scalar_select %p1050, %s1049, 7
        %s1052 = smul.addr %s1051, 2
        %s1053 = smul.addr %s1052, 8
        %s1054 = scalar_lea.vmem %s3, %s1053
      $region44: #{cross_attention_block_forward.10} parent=39 // pred_fallthru
        _
    $region40: #{cross_attention_block_forward.10} parent=5 // pred_fallthru
      _
  $region6: #{cross_attention_block_forward.10} parent=0 // loop_footer
    %s13 = sadd.s32 1, %s9
  $region7: #{cross_attention_block_forward.10} parent=0 // loop_footer_branch
    %8 = sbr.rel target = $region3
  $region8: #{cross_attention_block_forward.10} parent=0 // loop_exit
    _

// kernel: cross_attention_block_forward.11
$region0: #{cross_attention_block_forward.11}
  #allocation0 [shape = 'u32[]', space=smem, size = 0x4, offset = 0x4, fixed_abs, tag = 'smem constant byte address 0x4 - core index']
  #allocation1 [shape = 'u32[144,128]{1,0:T(1,128)}', space=vmem, size = 0x12000, scoped, tag = 'internal scratch']
  %s0 = inlined_call_operand.vmem [shape: f32[32,32], index: 0, kind: input, shape index: {}]
  %s1 = inlined_call_operand.vmem [shape: f32[32,32], index: 1, kind: input, shape index: {}]
  %s2 = inlined_call_operand.vmem [shape: f32[32,32], index: 2, kind: input, shape index: {}]
  %s3 = inlined_call_operand.vmem [shape: f32[1,32], index: 3, kind: input, shape index: {}]
  %s4 = inlined_call_operand.vmem [shape: f32[1,32], index: 4, kind: input, shape index: {}]
  %s5 = inlined_call_operand.vmem [shape: f32[1,32], index: 5, kind: input, shape index: {}]
  %s6 = inlined_call_operand.vmem [shape: f32[32,32], index: 6, kind: input, shape index: {}]
  %s7 = inlined_call_operand.vmem [shape: f32[1,32], index: 7, kind: input, shape index: {}]
  %s8 = inlined_call_operand.vmem [shape: f32[32,32], index: 8, kind: input, shape index: {}]
  %s9 = inlined_call_operand.vmem [shape: f32[1,32], index: 9, kind: input, shape index: {}]
  %s10 = inlined_call_operand.vmem [shape: f32[1,32], index: 10, kind: input, shape index: {}]
  %s11 = inlined_call_operand.vmem [shape: f32[1,32], index: 11, kind: input, shape index: {}]
  %s12 = inlined_call_operand.hbm [shape: f32[32,32], index: 12, kind: output, shape index: {}]
  %s13 = sld [smem:[#allocation0]]
  $region58: #{cross_attention_block_forward.11} parent=0
    _
  %s15 = ssub.s32 1, %s13
  %s16 = scalar_select 0, %s15, %s13
  $region1: #{cross_attention_block_forward.11} parent=0
    #allocation2 [shape = 'u8[16384]{0}', space=vmem, size = 0x4000, scoped, tag = 'output window, operand 0, single buffered']
    #allocation3 [shape = 's32[1]{0}', space=sflag, size = 0x4, scoped, tag = 'scoped memory for cross_attention_block_forward.11']
    %17 = vsyncpa [#allocation3], 0
    // Predicated region
    $region2: #{cross_attention_block_forward.11} parent=1 // pred_check
      _
    $region3: #{cross_attention_block_forward.11} parent=1 // pred_check_branch
      %19 = sbr.rel (0) target = $region5
    $region4: #{cross_attention_block_forward.11} parent=1 // pred_region
      _
    $region5: #{cross_attention_block_forward.11} parent=1 // pred_fallthru
      _
    // Predicated region
    $region6: #{cross_attention_block_forward.11} parent=1 // pred_check
      _
    $region7: #{cross_attention_block_forward.11} parent=1 // pred_check_branch
      %21 = sbr.rel (0) target = $region9
    $region8: #{cross_attention_block_forward.11} parent=1 // pred_region
      _
    $region9: #{cross_attention_block_forward.11} parent=1 // pred_fallthru
      _
    // Predicated region
    $region10: #{cross_attention_block_forward.11} parent=1 // pred_check
      _
    $region11: #{cross_attention_block_forward.11} parent=1 // pred_check_branch
      %23 = sbr.rel (0) target = $region13
    $region12: #{cross_attention_block_forward.11} parent=1 // pred_region
      _
    $region13: #{cross_attention_block_forward.11} parent=1 // pred_fallthru
      _
    // Predicated region
    $region14: #{cross_attention_block_forward.11} parent=1 // pred_check
      _
    $region15: #{cross_attention_block_forward.11} parent=1 // pred_check_branch
      %25 = sbr.rel (0) target = $region17
    $region16: #{cross_attention_block_forward.11} parent=1 // pred_region
      _
    $region17: #{cross_attention_block_forward.11} parent=1 // pred_fallthru
      _
    // Predicated region
    $region18: #{cross_attention_block_forward.11} parent=1 // pred_check
      _
    $region19: #{cross_attention_block_forward.11} parent=1 // pred_check_branch
      %27 = sbr.rel (0) target = $region21
    $region20: #{cross_attention_block_forward.11} parent=1 // pred_region
      _
    $region21: #{cross_attention_block_forward.11} parent=1 // pred_fallthru
      _
    // Predicated region
    $region22: #{cross_attention_block_forward.11} parent=1 // pred_check
      _
    $region23: #{cross_attention_block_forward.11} parent=1 // pred_check_branch
      %29 = sbr.rel (0) target = $region25
    $region24: #{cross_attention_block_forward.11} parent=1 // pred_region
      _
    $region25: #{cross_attention_block_forward.11} parent=1 // pred_fallthru
      _
    // Predicated region
    $region26: #{cross_attention_block_forward.11} parent=1 // pred_check
      _
    $region27: #{cross_attention_block_forward.11} parent=1 // pred_check_branch
      %31 = sbr.rel (0) target = $region29
    $region28: #{cross_attention_block_forward.11} parent=1 // pred_region
      _
    $region29: #{cross_attention_block_forward.11} parent=1 // pred_fallthru
      _
    // Predicated region
    $region30: #{cross_attention_block_forward.11} parent=1 // pred_check
      _
    $region31: #{cross_attention_block_forward.11} parent=1 // pred_check_branch
      %33 = sbr.rel (0) target = $region33
    $region32: #{cross_attention_block_forward.11} parent=1 // pred_region
      _
    $region33: #{cross_attention_block_forward.11} parent=1 // pred_fallthru
      _
    // Predicated region
    $region34: #{cross_attention_block_forward.11} parent=1 // pred_check
      _
    $region35: #{cross_attention_block_forward.11} parent=1 // pred_check_branch
      %35 = sbr.rel (0) target = $region37
    $region36: #{cross_attention_block_forward.11} parent=1 // pred_region
      _
    $region37: #{cross_attention_block_forward.11} parent=1 // pred_fallthru
      _
    // Predicated region
    $region38: #{cross_attention_block_forward.11} parent=1 // pred_check
      _
    $region39: #{cross_attention_block_forward.11} parent=1 // pred_check_branch
      %37 = sbr.rel (0) target = $region41
    $region40: #{cross_attention_block_forward.11} parent=1 // pred_region
      _
    $region41: #{cross_attention_block_forward.11} parent=1 // pred_fallthru
      _
    // Predicated region
    $region42: #{cross_attention_block_forward.11} parent=1 // pred_check
      _
    $region43: #{cross_attention_block_forward.11} parent=1 // pred_check_branch
      %39 = sbr.rel (0) target = $region45
    $region44: #{cross_attention_block_forward.11} parent=1 // pred_region
      _
    $region45: #{cross_attention_block_forward.11} parent=1 // pred_fallthru
      _
    // Predicated region
    $region46: #{cross_attention_block_forward.11} parent=1 // pred_check
      _
    $region47: #{cross_attention_block_forward.11} parent=1 // pred_check_branch
      %41 = sbr.rel (0) target = $region49
    $region48: #{cross_attention_block_forward.11} parent=1 // pred_region
      _
    $region49: #{cross_attention_block_forward.11} parent=1 // pred_fallthru
      _
    %v42 = vld [vmem:[%s0] sm:$0xff]
    %v43 = vld [vmem:[%s0 + $0x8] sm:$0xff]
    %v44 = vld [vmem:[%s0 + $0x10] sm:$0xff]
    %v45 = vld [vmem:[%s0 + $0x18] sm:$0xff]
    %v46 = vld [vmem:[%s2] sm:$0xff]
    %v47 = vld [vmem:[%s2 + $0x8] sm:$0xff]
    %v48 = vld [vmem:[%s2 + $0x10] sm:$0xff]
    %v49 = vld [vmem:[%s2 + $0x18] sm:$0xff]
    %v50 = vld [vmem:[%s3] sm:$0x1]
    %v52 = vlaneseq
    %v53 = vshrl.u32 %v52, 7
    %v54 = vsub.s32 0, %v53
    %v55 = vrot.slane %v50, %v54
    %vm57 = vcmask 261120
    %v59 = vsel %vm57, %v42, 0
    %v62 = vsel %vm57, %v43, 0
    %v65 = vsel %vm57, %v44, 0
    %v68 = vsel %vm57, %v45, 0
    %70 = vmatprep.subr.mxu0 0.0
    %71 = vmatpush1.msra.mxu0 %v46
    %72 = vmatprep.subr.mxu0 0.0
    %73 = vmatpush1.msra.mxu0 %v47
    %74 = vmatprep.subr.mxu0 0.0
    %75 = vmatpush1.msra.mxu0 %v48
    %76 = vmatprep.subr.mxu0 0.0
    %77 = vmatpush1.msra.mxu0 %v49
    %78 = vmatprep.subr.mxu0 0.0
    %79 = vmatpush1.msra.mxu0 0.0
    %80 = vmatprep.subr.mxu0 0.0
    %81 = vmatpush1.msra.mxu0 0.0
    %82 = vmatprep.subr.mxu0 0.0
    %83 = vmatpush1.msra.mxu0 0.0
    %84 = vmatprep.subr.mxu0 0.0
    %85 = vmatpush1.msra.mxu0 0.0
    %86 = vmatprep.subr.mxu0 0.0
    %87 = vmatpush1.msra.mxu0 0.0
    %88 = vmatprep.subr.mxu0 0.0
    %89 = vmatpush1.msra.mxu0 0.0
    %90 = vmatprep.subr.mxu0 0.0
    %91 = vmatpush1.msra.mxu0 0.0
    %92 = vmatprep.subr.mxu0 0.0
    %93 = vmatpush1.msra.mxu0 0.0
    %94 = vmatprep.subr.mxu0 0.0
    %95 = vmatpush1.msra.mxu0 0.0
    %96 = vmatprep.subr.mxu0 0.0
    %97 = vmatpush1.msra.mxu0 0.0
    %98 = vmatprep.subr.mxu0 0.0
    %99 = vmatpush1.msra.mxu0 0.0
    %100 = vmatprep.subr.mxu0 0.0
    %101 = vmatpush1.msra.mxu0 0.0
    %102 = vmatprep.subr.mxu0 0.0
    %103 = vmatpush1.msra.mxu0 0.0
    %104 = vmatprep.subr.mxu0 0.0
    %105 = vmatpush1.msra.mxu0 0.0
    %106 = vmatprep.subr.mxu0 0.0
    %107 = vmatpush1.msra.mxu0 0.0
    %108 = vmatprep.subr.mxu0 0.0
    %109 = vmatpush1.msra.mxu0 0.0
    %110 = vmatprep.subr.mxu0 0.0
    %111 = vmatpush1.msra.mxu0 0.0
    %112 = vmatprep.subr.mxu0 0.0
    %113 = vmatpush1.msra.mxu0 0.0
    %114 = vmatprep.subr.mxu0 0.0
    %115 = vmatpush1.msra.mxu0 0.0
    %116 = vmatprep.subr.mxu0 0.0
    %117 = vmatpush1.msra.mxu0 0.0
    %118 = vmatprep.subr.mxu0 0.0
    %119 = vmatpush1.msra.mxu0 0.0
    %120 = vmatprep.subr.mxu0 0.0
    %121 = vmatpush1.msra.mxu0 0.0
    %122 = vmatprep.subr.mxu0 0.0
    %123 = vmatpush1.msra.mxu0 0.0
    %124 = vmatprep.subr.mxu0 0.0
    %125 = vmatpush1.msra.mxu0 0.0
    %126 = vmatprep.subr.mxu0 0.0
    %127 = vmatpush1.msra.mxu0 0.0
    %128 = vmatprep.subr.mxu0 0.0
    %129 = vmatpush1.msra.mxu0 0.0
    %130 = vmatprep.subr.mxu0 0.0
    %131 = vmatpush1.msra.mxu0 0.0
    %132 = vmatprep.subr.mxu0 0.0
    %133 = vmatpush1.msra.mxu0 0.0
    %134 = vmatprep.mubr.f32.mxu0 0.0
    %135 = vmatmul.mubr.f32.gmra.mrb[0].mxu0 %v59
    %v136 = vpop.f32.mrb[0].mxu0
    %v137 = vadd.f32 %v55, %v136
    %v138 = vpop.f32.mrb[0].mxu0
    %139 = vmatprep.mubr.f32.mxu0 0.0
    %140 = vmatmul.mubr.f32.gmra.mrb[0].mxu0 %v62
    %v141 = vpop.f32.mrb[0].mxu0
    %v142 = vadd.f32 %v55, %v141
    %v143 = vpop.f32.mrb[0].mxu0
    %144 = vmatprep.mubr.f32.mxu0 0.0
    %145 = vmatmul.mubr.f32.gmra.mrb[0].mxu0 %v65
    %v146 = vpop.f32.mrb[0].mxu0
    %v147 = vadd.f32 %v55, %v146
    %v148 = vpop.f32.mrb[0].mxu0
    %149 = vmatprep.mubr.f32.mxu0 0.0
    %150 = vmatmul.mubr.f32.gmra.mrb[0].mxu0 %v68
    %v151 = vpop.f32.mrb[0].mxu0
    %v152 = vadd.f32 %v55, %v151
    %v153 = vpop.f32.mrb[0].mxu0
    %154 = vdwg.mxu0
    %v155 = vld [vmem:[%s1] sm:$0xff]
    %v156 = vld [vmem:[%s1 + $0x8] sm:$0xff]
    %v157 = vld [vmem:[%s1 + $0x10] sm:$0xff]
    %v158 = vld [vmem:[%s1 + $0x18] sm:$0xff]
    %v159 = vadd.f32 %v155, %v137
    %v160 = vadd.f32 %v156, %v142
    %v161 = vadd.f32 %v157, %v147
    %v162 = vadd.f32 %v158, %v152
    %v163 = vld [vmem:[%s4] sm:$0x1]
    %v164 = vld [vmem:[%s5] sm:$0x1]
    %v165 = vsel %vm57, %v159, 0.0
    %166 = vadd.xlane.f32.xlu0 %v165
    %v167 = vpop.xlane.xlu0 %166
    %v168 = vsel %vm57, %v160, 0.0
    %169 = vadd.xlane.f32.xlu0 %v168
    %v170 = vpop.xlane.xlu0 %169
    %v171 = vsel %vm57, %v161, 0.0
    %172 = vadd.xlane.f32.xlu0 %v171
    %v173 = vpop.xlane.xlu0 %172
    %v174 = vsel %vm57, %v162, 0.0
    %175 = vadd.xlane.f32.xlu0 %v174
    %v176 = vpop.xlane.xlu0 %175
    %v177 = vrcp.pop 32.0
    %v178 = vmul.f32 %v167, %v177
    %v179 = vmul.f32 %v170, %v177
    %v180 = vmul.f32 %v173, %v177
    %v181 = vmul.f32 %v176, %v177
    %v182 = vsub.f32 %v159, %v178
    %v183 = vsub.f32 %v160, %v179
    %v184 = vsub.f32 %v161, %v180
    %v185 = vsub.f32 %v162, %v181
    %v186 = vmul.f32 %v182, %v182
    %v187 = vmul.f32 %v183, %v183
    %v188 = vmul.f32 %v184, %v184
    %v189 = vmul.f32 %v185, %v185
    %v190 = vsel %vm57, %v186, 0.0
    %191 = vadd.xlane.f32.xlu0 %v190
    %v192 = vpop.xlane.xlu0 %191
    %v193 = vsel %vm57, %v187, 0.0
    %194 = vadd.xlane.f32.xlu0 %v193
    %v195 = vpop.xlane.xlu0 %194
    %v196 = vsel %vm57, %v188, 0.0
    %197 = vadd.xlane.f32.xlu0 %v196
    %v198 = vpop.xlane.xlu0 %197
    %v199 = vsel %vm57, %v189, 0.0
    %200 = vadd.xlane.f32.xlu0 %v199
    %v201 = vpop.xlane.xlu0 %200
    %v202 = vmul.f32 %v192, %v177
    %v203 = vmul.f32 %v195, %v177
    %v204 = vmul.f32 %v198, %v177
    %v205 = vmul.f32 %v201, %v177
    %v206 = vadd.f32 %v202, 1e-05
    %v207 = vadd.f32 %v203, 1e-05
    %v208 = vadd.f32 %v204, 1e-05
    %v209 = vadd.f32 %v205, 1e-05
    %v210 = vrsqrt.pop %v206
    %v211 = vrsqrt.pop %v207
    %v212 = vrsqrt.pop %v208
    %v213 = vrsqrt.pop %v209
    %v214 = vmul.f32 %v182, %v210
    %v215 = vmul.f32 %v183, %v211
    %v216 = vmul.f32 %v184, %v212
    %v217 = vmul.f32 %v185, %v213
    %v219 = vlaneseq
    %v220 = vshrl.u32 %v219, 7
    %v221 = vsub.s32 0, %v220
    %v222 = vrot.slane %v163, %v221
    %v224 = vmul.f32 %v214, %v222
    %v225 = vmul.f32 %v215, %v222
    %v226 = vmul.f32 %v216, %v222
    %v227 = vmul.f32 %v217, %v222
    %v229 = vlaneseq
    %v230 = vshrl.u32 %v229, 7
    %v231 = vsub.s32 0, %v230
    %v232 = vrot.slane %v164, %v231
    %v234 = vadd.f32 %v224, %v232
    %v235 = vadd.f32 %v225, %v232
    %v236 = vadd.f32 %v226, %v232
    %v237 = vadd.f32 %v227, %v232
    %v238 = vld [vmem:[%s6] sm:$0xff]
    %v239 = vld [vmem:[%s6 + $0x8] sm:$0xff]
    %v240 = vld [vmem:[%s6 + $0x10] sm:$0xff]
    %v241 = vld [vmem:[%s6 + $0x18] sm:$0xff]
    %v242 = vld [vmem:[%s7] sm:$0x1]
    %v244 = vlaneseq
    %v245 = vshrl.u32 %v244, 7
    %v246 = vsub.s32 0, %v245
    %v247 = vrot.slane %v242, %v246
    %v250 = vsel %vm57, %v234, 0
    %v253 = vsel %vm57, %v235, 0
    %v256 = vsel %vm57, %v236, 0
    %v259 = vsel %vm57, %v237, 0
    %261 = vmatprep.subr.mxu0 0.0
    %262 = vmatpush1.msra.mxu0 %v238
    %263 = vmatprep.subr.mxu0 0.0
    %264 = vmatpush1.msra.mxu0 %v239
    %265 = vmatprep.subr.mxu0 0.0
    %266 = vmatpush1.msra.mxu0 %v240
    %267 = vmatprep.subr.mxu0 0.0
    %268 = vmatpush1.msra.mxu0 %v241
    %269 = vmatprep.subr.mxu0 0.0
    %270 = vmatpush1.msra.mxu0 0.0
    %271 = vmatprep.subr.mxu0 0.0
    %272 = vmatpush1.msra.mxu0 0.0
    %273 = vmatprep.subr.mxu0 0.0
    %274 = vmatpush1.msra.mxu0 0.0
    %275 = vmatprep.subr.mxu0 0.0
    %276 = vmatpush1.msra.mxu0 0.0
    %277 = vmatprep.subr.mxu0 0.0
    %278 = vmatpush1.msra.mxu0 0.0
    %279 = vmatprep.subr.mxu0 0.0
    %280 = vmatpush1.msra.mxu0 0.0
    %281 = vmatprep.subr.mxu0 0.0
    %282 = vmatpush1.msra.mxu0 0.0
    %283 = vmatprep.subr.mxu0 0.0
    %284 = vmatpush1.msra.mxu0 0.0
    %285 = vmatprep.subr.mxu0 0.0
    %286 = vmatpush1.msra.mxu0 0.0
    %287 = vmatprep.subr.mxu0 0.0
    %288 = vmatpush1.msra.mxu0 0.0
    %289 = vmatprep.subr.mxu0 0.0
    %290 = vmatpush1.msra.mxu0 0.0
    %291 = vmatprep.subr.mxu0 0.0
    %292 = vmatpush1.msra.mxu0 0.0
    %293 = vmatprep.subr.mxu0 0.0
    %294 = vmatpush1.msra.mxu0 0.0
    %295 = vmatprep.subr.mxu0 0.0
    %296 = vmatpush1.msra.mxu0 0.0
    %297 = vmatprep.subr.mxu0 0.0
    %298 = vmatpush1.msra.mxu0 0.0
    %299 = vmatprep.subr.mxu0 0.0
    %300 = vmatpush1.msra.mxu0 0.0
    %301 = vmatprep.subr.mxu0 0.0
    %302 = vmatpush1.msra.mxu0 0.0
    %303 = vmatprep.subr.mxu0 0.0
    %304 = vmatpush1.msra.mxu0 0.0
    %305 = vmatprep.subr.mxu0 0.0
    %306 = vmatpush1.msra.mxu0 0.0
    %307 = vmatprep.subr.mxu0 0.0
    %308 = vmatpush1.msra.mxu0 0.0
    %309 = vmatprep.subr.mxu0 0.0
    %310 = vmatpush1.msra.mxu0 0.0
    %311 = vmatprep.subr.mxu0 0.0
    %312 = vmatpush1.msra.mxu0 0.0
    %313 = vmatprep.subr.mxu0 0.0
    %314 = vmatpush1.msra.mxu0 0.0
    %315 = vmatprep.subr.mxu0 0.0
    %316 = vmatpush1.msra.mxu0 0.0
    %317 = vmatprep.subr.mxu0 0.0
    %318 = vmatpush1.msra.mxu0 0.0
    %319 = vmatprep.subr.mxu0 0.0
    %320 = vmatpush1.msra.mxu0 0.0
    %321 = vmatprep.subr.mxu0 0.0
    %322 = vmatpush1.msra.mxu0 0.0
    %323 = vmatprep.subr.mxu0 0.0
    %324 = vmatpush1.msra.mxu0 0.0
    %325 = vmatprep.mubr.f32.mxu0 0.0
    %326 = vmatmul.mubr.f32.gmra.mrb[0].mxu0 %v250
    %v327 = vpop.f32.mrb[0].mxu0
    %v328 = vadd.f32 %v247, %v327
    %v329 = vpop.f32.mrb[0].mxu0
    %330 = vmatprep.mubr.f32.mxu0 0.0
    %331 = vmatmul.mubr.f32.gmra.mrb[0].mxu0 %v253
    %v332 = vpop.f32.mrb[0].mxu0
    %v333 = vadd.f32 %v247, %v332
    %v334 = vpop.f32.mrb[0].mxu0
    %335 = vmatprep.mubr.f32.mxu0 0.0
    %336 = vmatmul.mubr.f32.gmra.mrb[0].mxu0 %v256
    %v337 = vpop.f32.mrb[0].mxu0
    %v338 = vadd.f32 %v247, %v337
    %v339 = vpop.f32.mrb[0].mxu0
    %340 = vmatprep.mubr.f32.mxu0 0.0
    %341 = vmatmul.mubr.f32.gmra.mrb[0].mxu0 %v259
    %v342 = vpop.f32.mrb[0].mxu0
    %v343 = vadd.f32 %v247, %v342
    %v344 = vpop.f32.mrb[0].mxu0
    %345 = vdwg.mxu0
    %v346 = vmul.f32 %v328, 0.5
    %v347 = vmul.f32 %v333, 0.5
    %v348 = vmul.f32 %v338, 0.5
    %v349 = vmul.f32 %v343, 0.5
    %v350 = vmul.f32 %v328, 0.044715
    %v351 = vmul.f32 %v333, 0.044715
    %v352 = vmul.f32 %v338, 0.044715
    %v353 = vmul.f32 %v343, 0.044715
    %v354 = vmul.f32 %v350, %v328
    %v355 = vmul.f32 %v351, %v333
    %v356 = vmul.f32 %v352, %v338
    %v357 = vmul.f32 %v353, %v343
    %v358 = vmul.f32 %v354, %v328
    %v359 = vmul.f32 %v355, %v333
    %v360 = vmul.f32 %v356, %v338
    %v361 = vmul.f32 %v357, %v343
    %v362 = vadd.f32 %v328, %v358
    %v363 = vadd.f32 %v333, %v359
    %v364 = vadd.f32 %v338, %v360
    %v365 = vadd.f32 %v343, %v361
    %v366 = vmul.f32 %v362, 0.7978846
    %v367 = vmul.f32 %v363, 0.7978846
    %v368 = vmul.f32 %v364, 0.7978846
    %v369 = vmul.f32 %v365, 0.7978846
    %v370 = vtanh.pop %v366
    %v371 = vtanh.pop %v367
    %v372 = vtanh.pop %v368
    %v373 = vtanh.pop %v369
    %v374 = vadd.f32 %v370, 1.0
    %v375 = vadd.f32 %v371, 1.0
    %v376 = vadd.f32 %v372, 1.0
    %v377 = vadd.f32 %v373, 1.0
    %v378 = vmul.f32 %v346, %v374
    %v379 = vmul.f32 %v347, %v375
    %v380 = vmul.f32 %v348, %v376
    %v381 = vmul.f32 %v349, %v377
    %v382 = vld [vmem:[%s8] sm:$0xff]
    %v383 = vld [vmem:[%s8 + $0x8] sm:$0xff]
    %v384 = vld [vmem:[%s8 + $0x10] sm:$0xff]
    %v385 = vld [vmem:[%s8 + $0x18] sm:$0xff]
    %v386 = vld [vmem:[%s9] sm:$0x1]
    %v388 = vlaneseq
    %v389 = vshrl.u32 %v388, 7
    %v390 = vsub.s32 0, %v389
    %v391 = vrot.slane %v386, %v390
    %v394 = vsel %vm57, %v378, 0
    %v397 = vsel %vm57, %v379, 0
    %v400 = vsel %vm57, %v380, 0
    %v403 = vsel %vm57, %v381, 0
    %405 = vmatprep.subr.mxu0 0.0
    %406 = vmatpush1.msra.mxu0 %v382
    %407 = vmatprep.subr.mxu0 0.0
    %408 = vmatpush1.msra.mxu0 %v383
    %409 = vmatprep.subr.mxu0 0.0
    %410 = vmatpush1.msra.mxu0 %v384
    %411 = vmatprep.subr.mxu0 0.0
    %412 = vmatpush1.msra.mxu0 %v385
    %413 = vmatprep.subr.mxu0 0.0
    %414 = vmatpush1.msra.mxu0 0.0
    %415 = vmatprep.subr.mxu0 0.0
    %416 = vmatpush1.msra.mxu0 0.0
    %417 = vmatprep.subr.mxu0 0.0
    %418 = vmatpush1.msra.mxu0 0.0
    %419 = vmatprep.subr.mxu0 0.0
    %420 = vmatpush1.msra.mxu0 0.0
    %421 = vmatprep.subr.mxu0 0.0
    %422 = vmatpush1.msra.mxu0 0.0
    %423 = vmatprep.subr.mxu0 0.0
    %424 = vmatpush1.msra.mxu0 0.0
    %425 = vmatprep.subr.mxu0 0.0
    %426 = vmatpush1.msra.mxu0 0.0
    %427 = vmatprep.subr.mxu0 0.0
    %428 = vmatpush1.msra.mxu0 0.0
    %429 = vmatprep.subr.mxu0 0.0
    %430 = vmatpush1.msra.mxu0 0.0
    %431 = vmatprep.subr.mxu0 0.0
    %432 = vmatpush1.msra.mxu0 0.0
    %433 = vmatprep.subr.mxu0 0.0
    %434 = vmatpush1.msra.mxu0 0.0
    %435 = vmatprep.subr.mxu0 0.0
    %436 = vmatpush1.msra.mxu0 0.0
    %437 = vmatprep.subr.mxu0 0.0
    %438 = vmatpush1.msra.mxu0 0.0
    %439 = vmatprep.subr.mxu0 0.0
    %440 = vmatpush1.msra.mxu0 0.0
    %441 = vmatprep.subr.mxu0 0.0
    %442 = vmatpush1.msra.mxu0 0.0
    %443 = vmatprep.subr.mxu0 0.0
    %444 = vmatpush1.msra.mxu0 0.0
    %445 = vmatprep.subr.mxu0 0.0
    %446 = vmatpush1.msra.mxu0 0.0
    %447 = vmatprep.subr.mxu0 0.0
    %448 = vmatpush1.msra.mxu0 0.0
    %449 = vmatprep.subr.mxu0 0.0
    %450 = vmatpush1.msra.mxu0 0.0
    %451 = vmatprep.subr.mxu0 0.0
    %452 = vmatpush1.msra.mxu0 0.0
    %453 = vmatprep.subr.mxu0 0.0
    %454 = vmatpush1.msra.mxu0 0.0
    %455 = vmatprep.subr.mxu0 0.0
    %456 = vmatpush1.msra.mxu0 0.0
    %457 = vmatprep.subr.mxu0 0.0
    %458 = vmatpush1.msra.mxu0 0.0
    %459 = vmatprep.subr.mxu0 0.0
    %460 = vmatpush1.msra.mxu0 0.0
    %461 = vmatprep.subr.mxu0 0.0
    %462 = vmatpush1.msra.mxu0 0.0
    %463 = vmatprep.subr.mxu0 0.0
    %464 = vmatpush1.msra.mxu0 0.0
    %465 = vmatprep.subr.mxu0 0.0
    %466 = vmatpush1.msra.mxu0 0.0
    %467 = vmatprep.subr.mxu0 0.0
    %468 = vmatpush1.msra.mxu0 0.0
    %469 = vmatprep.mubr.f32.mxu0 0.0
    %470 = vmatmul.mubr.f32.gmra.mrb[0].mxu0 %v394
    %v471 = vpop.f32.mrb[0].mxu0
    %v472 = vadd.f32 %v391, %v471
    %v473 = vpop.f32.mrb[0].mxu0
    %474 = vmatprep.mubr.f32.mxu0 0.0
    %475 = vmatmul.mubr.f32.gmra.mrb[0].mxu0 %v397
    %v476 = vpop.f32.mrb[0].mxu0
    %v477 = vadd.f32 %v391, %v476
    %v478 = vpop.f32.mrb[0].mxu0
    %479 = vmatprep.mubr.f32.mxu0 0.0
    %480 = vmatmul.mubr.f32.gmra.mrb[0].mxu0 %v400
    %v481 = vpop.f32.mrb[0].mxu0
    %v482 = vadd.f32 %v391, %v481
    %v483 = vpop.f32.mrb[0].mxu0
    %484 = vmatprep.mubr.f32.mxu0 0.0
    %485 = vmatmul.mubr.f32.gmra.mrb[0].mxu0 %v403
    %v486 = vpop.f32.mrb[0].mxu0
    %v487 = vadd.f32 %v391, %v486
    %v488 = vpop.f32.mrb[0].mxu0
    %489 = vdwg.mxu0
    %v490 = vadd.f32 %v234, %v472
    %v491 = vadd.f32 %v235, %v477
    %v492 = vadd.f32 %v236, %v482
    %v493 = vadd.f32 %v237, %v487
    %v494 = vld [vmem:[%s10] sm:$0x1]
    %v495 = vld [vmem:[%s11] sm:$0x1]
    %v496 = vsel %vm57, %v490, 0.0
    %497 = vadd.xlane.f32.xlu0 %v496
    %v498 = vpop.xlane.xlu0 %497
    %v499 = vsel %vm57, %v491, 0.0
    %500 = vadd.xlane.f32.xlu0 %v499
    %v501 = vpop.xlane.xlu0 %500
    %v502 = vsel %vm57, %v492, 0.0
    %503 = vadd.xlane.f32.xlu0 %v502
    %v504 = vpop.xlane.xlu0 %503
    %v505 = vsel %vm57, %v493, 0.0
    %506 = vadd.xlane.f32.xlu0 %v505
    %v507 = vpop.xlane.xlu0 %506
    %v508 = vmul.f32 %v498, %v177
    %v509 = vmul.f32 %v501, %v177
    %v510 = vmul.f32 %v504, %v177
    %v511 = vmul.f32 %v507, %v177
    %v512 = vsub.f32 %v490, %v508
    %v513 = vsub.f32 %v491, %v509
    %v514 = vsub.f32 %v492, %v510
    %v515 = vsub.f32 %v493, %v511
    %v516 = vmul.f32 %v512, %v512
    %v517 = vmul.f32 %v513, %v513
    %v518 = vmul.f32 %v514, %v514
    %v519 = vmul.f32 %v515, %v515
    %v520 = vsel %vm57, %v516, 0.0
    %521 = vadd.xlane.f32.xlu0 %v520
    %v522 = vpop.xlane.xlu0 %521
    %v523 = vsel %vm57, %v517, 0.0
    %524 = vadd.xlane.f32.xlu0 %v523
    %v525 = vpop.xlane.xlu0 %524
    %v526 = vsel %vm57, %v518, 0.0
    %527 = vadd.xlane.f32.xlu0 %v526
    %v528 = vpop.xlane.xlu0 %527
    %v529 = vsel %vm57, %v519, 0.0
    %530 = vadd.xlane.f32.xlu0 %v529
    %v531 = vpop.xlane.xlu0 %530
    %v532 = vmul.f32 %v522, %v177
    %v533 = vmul.f32 %v525, %v177
    %v534 = vmul.f32 %v528, %v177
    %v535 = vmul.f32 %v531, %v177
    %v536 = vadd.f32 %v532, 1e-05
    %v537 = vadd.f32 %v533, 1e-05
    %v538 = vadd.f32 %v534, 1e-05
    %v539 = vadd.f32 %v535, 1e-05
    %v540 = vrsqrt.pop %v536
    %v541 = vrsqrt.pop %v537
    %v542 = vrsqrt.pop %v538
    %v543 = vrsqrt.pop %v539
    %v544 = vmul.f32 %v512, %v540
    %v545 = vmul.f32 %v513, %v541
    %v546 = vmul.f32 %v514, %v542
    %v547 = vmul.f32 %v515, %v543
    %v549 = vlaneseq
    %v550 = vshrl.u32 %v549, 7
    %v551 = vsub.s32 0, %v550
    %v552 = vrot.slane %v494, %v551
    %v554 = vmul.f32 %v544, %v552
    %v555 = vmul.f32 %v545, %v552
    %v556 = vmul.f32 %v546, %v552
    %v557 = vmul.f32 %v547, %v552
    %v559 = vlaneseq
    %v560 = vshrl.u32 %v559, 7
    %v561 = vsub.s32 0, %v560
    %v562 = vrot.slane %v495, %v561
    %v564 = vadd.f32 %v554, %v562
    %v565 = vadd.f32 %v555, %v562
    %v566 = vadd.f32 %v556, %v562
    %v567 = vadd.f32 %v557, %v562
    %568 = vst.msk [vmem:[#allocation2] sm:$0xff] %vm57, %v564
    %569 = vst.msk [vmem:[#allocation2 + $0x8] sm:$0xff] %vm57, %v565
    %570 = vst.msk [vmem:[#allocation2 + $0x10] sm:$0xff] %vm57, %v566
    %571 = vst.msk [vmem:[#allocation2 + $0x18] sm:$0xff] %vm57, %v567
    // Predicated region
    $region50: #{cross_attention_block_forward.11} parent=1 // pred_check
      _
    $region51: #{cross_attention_block_forward.11} parent=1 // pred_check_branch
      %573 = sbr.rel (0) target = $region53
    $region52: #{cross_attention_block_forward.11} parent=1 // pred_region
      %s575 = ssub.s32 512, 512
      %576 = vsyncadd [#allocation3], %s575
      %s577 = sshll.u32 [#allocation2], 4
      %s578 = int_to_ptr.vmem [resolvable:$true] %s577
      %583 = dma.vmem_to_hbm [thread:$0]  %s578, 512, %s12, [#allocation3], 128, 128, 8
    $region53: #{cross_attention_block_forward.11} parent=1 // pred_fallthru
      _
    // Predicated region
    $region54: #{cross_attention_block_forward.11} parent=1 // pred_check
      _
    $region55: #{cross_attention_block_forward.11} parent=1 // pred_check_branch
      %585 = sbr.rel (0) target = $region57
    $region56: #{cross_attention_block_forward.11} parent=1 // pred_region
      %586 = dma.done [#allocation3], 512
    $region57: #{cross_attention_block_forward.11} parent=1 // pred_fallthru
      _
    %587 = vsyncpa [#allocation3], 1

</llo_original>
